<compile_context>
chip_gen: v7x
topology: tpu7x:2x2x1
jax: 0.10.0
libtpu: 0.0.40
codegen_flags: <defaults>
</compile_context>

<pallas_src>
import numpy as np
import jax
import jax.numpy as jnp
from jax import lax
from jax.experimental import pallas as pl
from jax.experimental.pallas import tpu as pltpu


# ----------------------------------------------------------------------------- utils
def _bilinear_matrix(out_size, in_size):
    """PyTorch F.interpolate(mode='bilinear', align_corners=False) row weights."""
    m = np.zeros((out_size, in_size), np.float32)
    if in_size == 1:
        m[:, 0] = 1.0
        return m
    scale = in_size / out_size
    for d in range(out_size):
        src = max((d + 0.5) * scale - 0.5, 0.0)
        i0 = min(int(np.floor(src)), in_size - 1)
        i1 = min(i0 + 1, in_size - 1)
        l1 = src - i0
        m[d, i0] += 1.0 - l1
        m[d, i1] += l1
    return m


def _shape_info(C, H, W):
    f = C // 4
    H2, W2 = (H - 3) // 2 + 1, (W - 3) // 2 + 1      # conv2: 3x3, stride 2, VALID
    H3, W3 = (H2 - 7) // 3 + 1, (W2 - 7) // 3 + 1     # max_pool2d(7, stride=3)
    return f, H2, W2, H3, W3


def _build_operands(params, C, H, W):
    """Small matmul operators (kron / one-hot) built on host from runtime weights."""
    f, H2, W2, H3, W3 = _shape_info(C, H, W)
    f32 = jnp.float32

    def arr(k):
        return jnp.asarray(params[k], f32)

    eyeW = jnp.eye(W, dtype=f32)

    # conv1 (1x1, C -> f): c1_[y, o*W+x] = sum_i x_slab[y, i*W+x] * w1[o, i] + b1[o]
    M1 = jnp.kron(arr("w1")[:, :, 0, 0].T, eyeW)                    # (C*W, f*W)
    b1row = jnp.repeat(arr("b1"), W)[None, :]                       # (1, f*W)

    # conv2 (3x3, stride 2, VALID, f -> f) at stride-2 resolution:
    #   c1 = sum_ky  R2[ky] @ c1_slab @ M2[ky]  + b2
    R2 = np.zeros((3, H2, H), np.float32)
    for ky in range(3):
        R2[ky, np.arange(H2), 2 * np.arange(H2) + ky] = 1.0
    S2 = np.zeros((3, W, W2), np.float32)
    for kx in range(3):
        S2[kx, 2 * np.arange(W2) + kx, np.arange(W2)] = 1.0
    w2 = arr("w2")
    M2 = jnp.stack([
        sum(jnp.kron(w2[:, :, ky, kx].T, jnp.asarray(S2[kx])) for kx in range(3))
        for ky in range(3)])                                        # (3, f*W, f*W2)
    b2row = jnp.repeat(arr("b2"), W2)[None, :]                      # (1, f*W2)

    # max_pool2d(7, stride 3): separable one-hot row / column window selectors.
    Rpool = np.zeros((7, H3, H2), np.float32)
    for dy in range(7):
        Rpool[dy, np.arange(H3), 3 * np.arange(H3) + dy] = 1.0
    Cpool = np.zeros((7, f * W2, f * W3), np.float32)
    for dx in range(7):
        for o in range(f):
            Cpool[dx, o * W2 + 3 * np.arange(W3) + dx,
                  o * W3 + np.arange(W3)] = 1.0

    # 3x3 SAME bottleneck convs (conv_max, conv3, conv3_):
    #   out = sum_dy  Rb[dy] @ in @ Mb[layer, dy]  + bias
    Rb = np.zeros((3, H3, H3), np.float32)
    for dy in range(3):
        for j in range(H3):
            y = j + dy - 1
            if 0 <= y < H3:
                Rb[dy, j, y] = 1.0
    Sb = np.zeros((3, W3, W3), np.float32)
    for dx in range(3):
        for i in range(W3):
            xin = i + dx - 1
            if 0 <= xin < W3:
                Sb[dx, xin, i] = 1.0

    def bneck(wk):
        wk = jnp.asarray(wk, f32)
        return jnp.stack([
            sum(jnp.kron(wk[:, :, dy, dx].T, jnp.asarray(Sb[dx])) for dx in range(3))
            for dy in range(3)])                                    # (3, f*W3, f*W3)

    Mb = jnp.stack([bneck(params["wmax"]), bneck(params["w3"]),
                    bneck(params["w3_"])])                          # (3, 3, f*W3, f*W3)
    bb = jnp.stack([jnp.repeat(arr("bmax"), W3),
                    jnp.repeat(arr("b3"), W3),
                    jnp.repeat(arr("b3_"), W3)])[:, None, :]        # (3, 1, f*W3)

    # bilinear upsample (align_corners=False), all f channels batched:
    #   c3_up = ry @ c3_slab @ Mup,  Mup = blockdiag(rx.T)
    ry = jnp.asarray(_bilinear_matrix(H, H3))                       # (H, H3)
    rx = _bilinear_matrix(W, W3)                                    # (W, W3)
    Mup = jnp.asarray(np.kron(np.eye(f, dtype=np.float32), rx.T))   # (f*W3, f*W)

    # conv_f (1x1, f -> f) and conv4 (1x1, f -> C)
    Mf = jnp.kron(arr("wf")[:, :, 0, 0].T, eyeW)                    # (f*W, f*W)
    bfrow = jnp.repeat(arr("bf"), W)[None, :]                       # (1, f*W)
    M4 = jnp.kron(arr("w4")[:, :, 0, 0].T, eyeW)                    # (f*W, C*W)
    b4row = jnp.repeat(arr("b4"), W)[None, :]                       # (1, C*W)

    return (M1, b1row, jnp.asarray(R2), M2, b2row, jnp.asarray(Rpool),
            jnp.asarray(Cpool), jnp.asarray(Rb), Mb, bb, ry, Mup, Mf, bfrow,
            M4, b4row)


# --------------------------------------------------------------------------- kernel
def _expert1_kernel(x_ref, M1_ref, b1_ref, R2_ref, M2_ref, b2_ref,
                    Rpool_ref, Cpool_ref, Rb_ref, Mb_ref, bb_ref,
                    ry_ref, Mup_ref, Mf_ref, bf_ref, M4_ref, b4_ref, out_ref):
    def dot(a, b):
        return jnp.dot(a, b, preferred_element_type=jnp.float32)

    # conv1: 1x1, C -> f.      (H, C*W) @ (C*W, f*W) -> (H, f*W), lane dense.
    c1_ = dot(x_ref[0], M1_ref[...]) + b1_ref[...]

    # conv2: 3x3, stride 2, VALID, f -> f — computed at stride-2 resolution.
    c1 = dot(dot(R2_ref[0], c1_), M2_ref[0])
    c1 = c1 + dot(dot(R2_ref[1], c1_), M2_ref[1])
    c1 = c1 + dot(dot(R2_ref[2], c1_), M2_ref[2])
    c1 = c1 + b2_ref[...]                                       # (H2, f*W2)

    # max_pool2d(kernel=7, stride=3): one-hot window selects (MXU) + elementwise max.
    rmax = dot(Rpool_ref[0], c1)
    for dy in range(1, 7):
        rmax = jnp.maximum(rmax, dot(Rpool_ref[dy], c1))        # (H3, f*W2)
    vmax = dot(rmax, Cpool_ref[0])
    for dx in range(1, 7):
        vmax = jnp.maximum(vmax, dot(rmax, Cpool_ref[dx]))      # (H3, f*W3)

    # 3x3 SAME bottleneck convs: conv_max(+relu), conv3(+relu), conv3_.
    def bconv(t, layer, relu):
        a = dot(dot(Rb_ref[0], t), Mb_ref[layer, 0])
        a = a + dot(dot(Rb_ref[1], t), Mb_ref[layer, 1])
        a = a + dot(dot(Rb_ref[2], t), Mb_ref[layer, 2])
        a = a + bb_ref[layer]
        return jnp.maximum(a, 0.0) if relu else a

    c3 = bconv(bconv(bconv(vmax, 0, True), 1, True), 2, False)  # (H3, f*W3)

    # bilinear upsample to (H, W), all f channels at once (block-diagonal operator).
    c3_up = dot(dot(ry_ref[...], c3), Mup_ref[...])             # (H, f*W)

    # conv_f: 1x1, f -> f on c1_; s = c3_up + cf.
    s = c3_up + dot(c1_, Mf_ref[...]) + bf_ref[...]             # (H, f*W)

    # conv4: 1x1, f -> C, sigmoid gate.  Re-read x from VMEM (short live range),
    # single lane-dense (H, C*W) store.
    c4 = dot(s, M4_ref[...]) + b4_ref[...]                      # (H, C*W)
    out_ref[0] = (x_ref[0] * jax.nn.sigmoid(c4)).astype(out_ref.dtype)


# -------------------------------------------------------------------------- wrapper
def expert1_forward(x, params):
    """x: (B, n_feats, H, W) f32 NCHW; params: PyTorch-layout (OIHW) conv weights."""
    B, C, H, W = x.shape
    f, H2, W2, H3, W3 = _shape_info(C, H, W)
    assert C % 4 == 0 and f >= 1
    assert H2 >= 7 and W2 >= 7, "spatial size too small for max_pool2d(7, stride=3)"

    ops = _build_operands(params, C, H, W)

    # NCHW -> lane-dense (B, H, C*W) slab: channels side by side on the lane axis.
    x_slab = jnp.transpose(x.astype(jnp.float32), (0, 2, 1, 3)).reshape(B, H, C * W)

    def full_spec(a):
        nd = a.ndim

        def imap(b):
            return (0,) * nd

        return pl.BlockSpec(a.shape, imap)

    grid_spec = pltpu.PrefetchScalarGridSpec(
        num_scalar_prefetch=0,
        grid=(B,),
        in_specs=[pl.BlockSpec((1, H, C * W), lambda b: (b, 0, 0))]
                 + [full_spec(a) for a in ops],
        out_specs=pl.BlockSpec((1, H, C * W), lambda b: (b, 0, 0)),
    )

    out_slab = pl.pallas_call(
        _expert1_kernel,
        out_shape=jax.ShapeDtypeStruct((B, H, C * W), jnp.float32),
        grid_spec=grid_spec,
        compiler_params=pltpu.CompilerParams(
            dimension_semantics=("parallel",),     # batch images are independent
            vmem_limit_bytes=32 * 1024 * 1024,
        ),
    )(x_slab, *ops)

    # back to NCHW
    return jnp.transpose(out_slab.reshape(B, H, C, W), (0, 2, 1, 3))


# ------------------------------------------------------------------------ reference
def expert1_reference(x, p):
    """Pure-JAX (XLA) reference of Expert1.forward for verification."""
    B, C, H, W = x.shape
    f, H2, W2, H3, W3 = _shape_info(C, H, W)
    # NOTE: the bilinear operator follows PyTorch's align_corners=False formula and
    # is shared with the kernel, so it is not an independent oracle for
    # F.interpolate edge handling (flagged in review; semantics follow the spec).
    ry = jnp.asarray(_bilinear_matrix(H, H3))
    rxt = jnp.asarray(_bilinear_matrix(W, W3).T)
    dn = ("NCHW", "OIHW", "NCHW")
    prec = lax.Precision.HIGHEST

    def conv(a, wk, pad, stride=(1, 1)):
        return lax.conv_general_dilated(a, jnp.asarray(wk, jnp.float32), stride, pad,
                                        dimension_numbers=dn, precision=prec)

    def bias(bk):
        return jnp.asarray(bk, jnp.float32)[None, :, None, None]

    c1_ = conv(x, p["w1"], [(0, 0), (0, 0)]) + bias(p["b1"])
    c1 = conv(c1_, p["w2"], [(0, 0), (0, 0)], (2, 2)) + bias(p["b2"])
    v_max = lax.reduce_window(c1, -jnp.inf, lax.max,
                              (1, 1, 7, 7), (1, 1, 3, 3), "VALID")
    v_range = jax.nn.relu(conv(v_max, p["wmax"], [(1, 1), (1, 1)]) + bias(p["bmax"]))
    c3 = jax.nn.relu(conv(v_range, p["w3"], [(1, 1), (1, 1)]) + bias(p["b3"]))
    c3 = conv(c3, p["w3_"], [(1, 1), (1, 1)]) + bias(p["b3_"])
    c3_up = jnp.einsum("hy,bcyx,xw->bchw", ry, c3, rxt, precision=prec)
    cf = conv(c1_, p["wf"], [(0, 0), (0, 0)]) + bias(p["bf"])
    c4 = conv(c3_up + cf, p["w4"], [(0, 0), (0, 0)]) + bias(p["b4"])
    return x * jax.nn.sigmoid(c4)


def init_params(key, n_feats):
    f = n_feats // 4
    ks = jax.random.split(key, 14)
    s = 0.2

    def w(k, o, i, kh, kw):
        return s * jax.random.normal(k, (o, i, kh, kw), jnp.float32)

    def b(k, n):
        return s * jax.random.normal(k, (n,), jnp.float32)

    return {
        "w1": w(ks[0], f, n_feats, 1, 1), "b1": b(ks[1], f),
        "w2": w(ks[2], f, f, 3, 3),       "b2": b(ks[3], f),
        "wmax": w(ks[4], f, f, 3, 3),     "bmax": b(ks[5], f),
        "w3": w(ks[6], f, f, 3, 3),       "b3": b(ks[7], f),
        "w3_": w(ks[8], f, f, 3, 3),      "b3_": b(ks[9], f),
        "wf": w(ks[10], f, f, 1, 1),      "bf": b(ks[11], f),
        "w4": w(ks[12], n_feats, f, 1, 1), "b4": b(ks[13], n_feats),
    }


if __name__ == "__main__":
    # Shapes implied by the forward: n_feats divisible by 4, spatial size large
    # enough that conv2 (3x3 / stride 2) and max_pool2d(7, stride 3) are
    # non-degenerate: 32x32 -> 15x15 -> 3x3.
    B, n_feats, H, W = 2, 16, 32, 32
    key = jax.random.PRNGKey(0)
    kx, kp = jax.random.split(key)
    x = jax.random.normal(kx, (B, n_feats, H, W), jnp.float32)
    params = init_params(kp, n_feats)

    out = expert1_forward(x, params)
    jax.block_until_ready(out)

    ref = expert1_reference(x, params)
    np.testing.assert_allclose(np.asarray(out), np.asarray(ref),
                               atol=3e-4, rtol=3e-3)
    print("KERNEL_OK")
</pallas_src>

<mosaic_0001>
module attributes {stable_mosaic.version = 11 : i64} {
  func.func @_expert1_kernel(%arg0: i32, %arg1: memref<1x32x512xf32, #tpu.memory_space<vmem>>, %arg2: memref<512x128xf32, #tpu.memory_space<vmem>>, %arg3: memref<1x128xf32, #tpu.memory_space<vmem>>, %arg4: memref<3x15x32xf32, #tpu.memory_space<vmem>>, %arg5: memref<3x128x60xf32, #tpu.memory_space<vmem>>, %arg6: memref<1x60xf32, #tpu.memory_space<vmem>>, %arg7: memref<7x3x15xf32, #tpu.memory_space<vmem>>, %arg8: memref<7x60x12xf32, #tpu.memory_space<vmem>>, %arg9: memref<3x3x3xf32, #tpu.memory_space<vmem>>, %arg10: memref<3x3x12x12xf32, #tpu.memory_space<vmem>>, %arg11: memref<3x1x12xf32, #tpu.memory_space<vmem>>, %arg12: memref<32x3xf32, #tpu.memory_space<vmem>>, %arg13: memref<12x128xf32, #tpu.memory_space<vmem>>, %arg14: memref<128x128xf32, #tpu.memory_space<vmem>>, %arg15: memref<1x128xf32, #tpu.memory_space<vmem>>, %arg16: memref<128x512xf32, #tpu.memory_space<vmem>>, %arg17: memref<1x512xf32, #tpu.memory_space<vmem>>, %arg18: memref<1x32x512xf32, #tpu.memory_space<vmem>>) attributes {dimension_semantics = [#tpu.dimension_semantics<parallel>], iteration_bounds = array<i64: 2>, scalar_prefetch = 0 : i64, scratch_operands = 0 : i64, tpu.core_type = #tpu.core_type<tc>, window_params = [{transform_indices = @transform_0, window_bounds = array<i64: 1, 32, 512>}, {pipeline_mode = #tpu.pipeline_mode<synchronous>, transform_indices = @transform_1, window_bounds = array<i64: 512, 128>}, {pipeline_mode = #tpu.pipeline_mode<synchronous>, transform_indices = @transform_2, window_bounds = array<i64: 1, 128>}, {pipeline_mode = #tpu.pipeline_mode<synchronous>, transform_indices = @transform_3, window_bounds = array<i64: 3, 15, 32>}, {pipeline_mode = #tpu.pipeline_mode<synchronous>, transform_indices = @transform_4, window_bounds = array<i64: 3, 128, 60>}, {pipeline_mode = #tpu.pipeline_mode<synchronous>, transform_indices = @transform_5, window_bounds = array<i64: 1, 60>}, {pipeline_mode = #tpu.pipeline_mode<synchronous>, transform_indices = @transform_6, window_bounds = array<i64: 7, 3, 15>}, {pipeline_mode = #tpu.pipeline_mode<synchronous>, transform_indices = @transform_7, window_bounds = array<i64: 7, 60, 12>}, {pipeline_mode = #tpu.pipeline_mode<synchronous>, transform_indices = @transform_8, window_bounds = array<i64: 3, 3, 3>}, {pipeline_mode = #tpu.pipeline_mode<synchronous>, transform_indices = @transform_9, window_bounds = array<i64: 3, 3, 12, 12>}, {pipeline_mode = #tpu.pipeline_mode<synchronous>, transform_indices = @transform_10, window_bounds = array<i64: 3, 1, 12>}, {pipeline_mode = #tpu.pipeline_mode<synchronous>, transform_indices = @transform_11, window_bounds = array<i64: 32, 3>}, {pipeline_mode = #tpu.pipeline_mode<synchronous>, transform_indices = @transform_12, window_bounds = array<i64: 12, 128>}, {pipeline_mode = #tpu.pipeline_mode<synchronous>, transform_indices = @transform_13, window_bounds = array<i64: 128, 128>}, {pipeline_mode = #tpu.pipeline_mode<synchronous>, transform_indices = @transform_14, window_bounds = array<i64: 1, 128>}, {pipeline_mode = #tpu.pipeline_mode<synchronous>, transform_indices = @transform_15, window_bounds = array<i64: 128, 512>}, {pipeline_mode = #tpu.pipeline_mode<synchronous>, transform_indices = @transform_16, window_bounds = array<i64: 1, 512>}, {transform_indices = @transform_17, window_bounds = array<i64: 1, 32, 512>}]} {
    %c0 = arith.constant 0 : index
    %c0_0 = arith.constant 0 : index
    %c0_1 = arith.constant 0 : index
    %0 = vector.load %arg1[%c0, %c0_0, %c0_1] : memref<1x32x512xf32, #tpu.memory_space<vmem>>, vector<1x32x512xf32>
    %1 = vector.shape_cast %0 : vector<1x32x512xf32> to vector<32x512xf32>
    %c0_2 = arith.constant 0 : index
    %c0_3 = arith.constant 0 : index
    %2 = vector.load %arg2[%c0_2, %c0_3] : memref<512x128xf32, #tpu.memory_space<vmem>>, vector<512x128xf32>
    %cst = arith.constant dense<0.000000e+00> : vector<32x128xf32>
    %3 = tpu.matmul %1, %2, %cst {dimension_numbers = #tpu.dot_dimension_numbers<[1], [0], [0], [1], [0, 0, 1, 1], [], []>} : vector<32x512xf32>, vector<512x128xf32>, vector<32x128xf32> -> vector<32x128xf32>
    %c0_4 = arith.constant 0 : index
    %c0_5 = arith.constant 0 : index
    %4 = vector.load %arg3[%c0_4, %c0_5] : memref<1x128xf32, #tpu.memory_space<vmem>>, vector<1x128xf32>
    %5 = vector.broadcast %4 : vector<1x128xf32> to vector<32x128xf32>
    %6 = arith.addf %3, %5 : vector<32x128xf32>
    %c0_6 = arith.constant 0 : index
    %c0_7 = arith.constant 0 : index
    %c0_8 = arith.constant 0 : index
    %7 = vector.load %arg4[%c0_6, %c0_7, %c0_8] : memref<3x15x32xf32, #tpu.memory_space<vmem>>, vector<1x15x32xf32>
    %8 = vector.shape_cast %7 : vector<1x15x32xf32> to vector<15x32xf32>
    %cst_9 = arith.constant dense<0.000000e+00> : vector<15x128xf32>
    %9 = tpu.matmul %8, %6, %cst_9 {dimension_numbers = #tpu.dot_dimension_numbers<[1], [0], [0], [1], [0, 0, 1, 1], [], []>} : vector<15x32xf32>, vector<32x128xf32>, vector<15x128xf32> -> vector<15x128xf32>
    %c0_10 = arith.constant 0 : index
    %c0_11 = arith.constant 0 : index
    %c0_12 = arith.constant 0 : index
    %10 = vector.load %arg5[%c0_10, %c0_11, %c0_12] : memref<3x128x60xf32, #tpu.memory_space<vmem>>, vector<1x128x60xf32>
    %11 = vector.shape_cast %10 : vector<1x128x60xf32> to vector<128x60xf32>
    %cst_13 = arith.constant dense<0.000000e+00> : vector<15x60xf32>
    %12 = tpu.matmul %9, %11, %cst_13 {dimension_numbers = #tpu.dot_dimension_numbers<[1], [0], [0], [1], [0, 0, 1, 1], [], []>} : vector<15x128xf32>, vector<128x60xf32>, vector<15x60xf32> -> vector<15x60xf32>
    %c1 = arith.constant 1 : index
    %c0_14 = arith.constant 0 : index
    %c0_15 = arith.constant 0 : index
    %13 = vector.load %arg4[%c1, %c0_14, %c0_15] : memref<3x15x32xf32, #tpu.memory_space<vmem>>, vector<1x15x32xf32>
    %14 = vector.shape_cast %13 : vector<1x15x32xf32> to vector<15x32xf32>
    %cst_16 = arith.constant dense<0.000000e+00> : vector<15x128xf32>
    %15 = tpu.matmul %14, %6, %cst_16 {dimension_numbers = #tpu.dot_dimension_numbers<[1], [0], [0], [1], [0, 0, 1, 1], [], []>} : vector<15x32xf32>, vector<32x128xf32>, vector<15x128xf32> -> vector<15x128xf32>
    %c1_17 = arith.constant 1 : index
    %c0_18 = arith.constant 0 : index
    %c0_19 = arith.constant 0 : index
    %16 = vector.load %arg5[%c1_17, %c0_18, %c0_19] : memref<3x128x60xf32, #tpu.memory_space<vmem>>, vector<1x128x60xf32>
    %17 = vector.shape_cast %16 : vector<1x128x60xf32> to vector<128x60xf32>
    %cst_20 = arith.constant dense<0.000000e+00> : vector<15x60xf32>
    %18 = tpu.matmul %15, %17, %cst_20 {dimension_numbers = #tpu.dot_dimension_numbers<[1], [0], [0], [1], [0, 0, 1, 1], [], []>} : vector<15x128xf32>, vector<128x60xf32>, vector<15x60xf32> -> vector<15x60xf32>
    %19 = arith.addf %12, %18 : vector<15x60xf32>
    %c2 = arith.constant 2 : index
    %c0_21 = arith.constant 0 : index
    %c0_22 = arith.constant 0 : index
    %20 = vector.load %arg4[%c2, %c0_21, %c0_22] : memref<3x15x32xf32, #tpu.memory_space<vmem>>, vector<1x15x32xf32>
    %21 = vector.shape_cast %20 : vector<1x15x32xf32> to vector<15x32xf32>
    %cst_23 = arith.constant dense<0.000000e+00> : vector<15x128xf32>
    %22 = tpu.matmul %21, %6, %cst_23 {dimension_numbers = #tpu.dot_dimension_numbers<[1], [0], [0], [1], [0, 0, 1, 1], [], []>} : vector<15x32xf32>, vector<32x128xf32>, vector<15x128xf32> -> vector<15x128xf32>
    %c2_24 = arith.constant 2 : index
    %c0_25 = arith.constant 0 : index
    %c0_26 = arith.constant 0 : index
    %23 = vector.load %arg5[%c2_24, %c0_25, %c0_26] : memref<3x128x60xf32, #tpu.memory_space<vmem>>, vector<1x128x60xf32>
    %24 = vector.shape_cast %23 : vector<1x128x60xf32> to vector<128x60xf32>
    %cst_27 = arith.constant dense<0.000000e+00> : vector<15x60xf32>
    %25 = tpu.matmul %22, %24, %cst_27 {dimension_numbers = #tpu.dot_dimension_numbers<[1], [0], [0], [1], [0, 0, 1, 1], [], []>} : vector<15x128xf32>, vector<128x60xf32>, vector<15x60xf32> -> vector<15x60xf32>
    %26 = arith.addf %19, %25 : vector<15x60xf32>
    %c0_28 = arith.constant 0 : index
    %c0_29 = arith.constant 0 : index
    %27 = vector.load %arg6[%c0_28, %c0_29] : memref<1x60xf32, #tpu.memory_space<vmem>>, vector<1x60xf32>
    %28 = vector.broadcast %27 : vector<1x60xf32> to vector<15x60xf32>
    %29 = arith.addf %26, %28 : vector<15x60xf32>
    %c0_30 = arith.constant 0 : index
    %c0_31 = arith.constant 0 : index
    %c0_32 = arith.constant 0 : index
    %30 = vector.load %arg7[%c0_30, %c0_31, %c0_32] : memref<7x3x15xf32, #tpu.memory_space<vmem>>, vector<1x3x15xf32>
    %31 = vector.shape_cast %30 : vector<1x3x15xf32> to vector<3x15xf32>
    %cst_33 = arith.constant dense<0.000000e+00> : vector<3x60xf32>
    %32 = tpu.matmul %31, %29, %cst_33 {dimension_numbers = #tpu.dot_dimension_numbers<[1], [0], [0], [1], [0, 0, 1, 1], [], []>} : vector<3x15xf32>, vector<15x60xf32>, vector<3x60xf32> -> vector<3x60xf32>
    %c1_34 = arith.constant 1 : index
    %c0_35 = arith.constant 0 : index
    %c0_36 = arith.constant 0 : index
    %33 = vector.load %arg7[%c1_34, %c0_35, %c0_36] : memref<7x3x15xf32, #tpu.memory_space<vmem>>, vector<1x3x15xf32>
    %34 = vector.shape_cast %33 : vector<1x3x15xf32> to vector<3x15xf32>
    %cst_37 = arith.constant dense<0.000000e+00> : vector<3x60xf32>
    %35 = tpu.matmul %34, %29, %cst_37 {dimension_numbers = #tpu.dot_dimension_numbers<[1], [0], [0], [1], [0, 0, 1, 1], [], []>} : vector<3x15xf32>, vector<15x60xf32>, vector<3x60xf32> -> vector<3x60xf32>
    %36 = arith.maximumf %32, %35 : vector<3x60xf32>
    %c2_38 = arith.constant 2 : index
    %c0_39 = arith.constant 0 : index
    %c0_40 = arith.constant 0 : index
    %37 = vector.load %arg7[%c2_38, %c0_39, %c0_40] : memref<7x3x15xf32, #tpu.memory_space<vmem>>, vector<1x3x15xf32>
    %38 = vector.shape_cast %37 : vector<1x3x15xf32> to vector<3x15xf32>
    %cst_41 = arith.constant dense<0.000000e+00> : vector<3x60xf32>
    %39 = tpu.matmul %38, %29, %cst_41 {dimension_numbers = #tpu.dot_dimension_numbers<[1], [0], [0], [1], [0, 0, 1, 1], [], []>} : vector<3x15xf32>, vector<15x60xf32>, vector<3x60xf32> -> vector<3x60xf32>
    %40 = arith.maximumf %36, %39 : vector<3x60xf32>
    %c3 = arith.constant 3 : index
    %c0_42 = arith.constant 0 : index
    %c0_43 = arith.constant 0 : index
    %41 = vector.load %arg7[%c3, %c0_42, %c0_43] : memref<7x3x15xf32, #tpu.memory_space<vmem>>, vector<1x3x15xf32>
    %42 = vector.shape_cast %41 : vector<1x3x15xf32> to vector<3x15xf32>
    %cst_44 = arith.constant dense<0.000000e+00> : vector<3x60xf32>
    %43 = tpu.matmul %42, %29, %cst_44 {dimension_numbers = #tpu.dot_dimension_numbers<[1], [0], [0], [1], [0, 0, 1, 1], [], []>} : vector<3x15xf32>, vector<15x60xf32>, vector<3x60xf32> -> vector<3x60xf32>
    %44 = arith.maximumf %40, %43 : vector<3x60xf32>
    %c4 = arith.constant 4 : index
    %c0_45 = arith.constant 0 : index
    %c0_46 = arith.constant 0 : index
    %45 = vector.load %arg7[%c4, %c0_45, %c0_46] : memref<7x3x15xf32, #tpu.memory_space<vmem>>, vector<1x3x15xf32>
    %46 = vector.shape_cast %45 : vector<1x3x15xf32> to vector<3x15xf32>
    %cst_47 = arith.constant dense<0.000000e+00> : vector<3x60xf32>
    %47 = tpu.matmul %46, %29, %cst_47 {dimension_numbers = #tpu.dot_dimension_numbers<[1], [0], [0], [1], [0, 0, 1, 1], [], []>} : vector<3x15xf32>, vector<15x60xf32>, vector<3x60xf32> -> vector<3x60xf32>
    %48 = arith.maximumf %44, %47 : vector<3x60xf32>
    %c5 = arith.constant 5 : index
    %c0_48 = arith.constant 0 : index
    %c0_49 = arith.constant 0 : index
    %49 = vector.load %arg7[%c5, %c0_48, %c0_49] : memref<7x3x15xf32, #tpu.memory_space<vmem>>, vector<1x3x15xf32>
    %50 = vector.shape_cast %49 : vector<1x3x15xf32> to vector<3x15xf32>
    %cst_50 = arith.constant dense<0.000000e+00> : vector<3x60xf32>
    %51 = tpu.matmul %50, %29, %cst_50 {dimension_numbers = #tpu.dot_dimension_numbers<[1], [0], [0], [1], [0, 0, 1, 1], [], []>} : vector<3x15xf32>, vector<15x60xf32>, vector<3x60xf32> -> vector<3x60xf32>
    %52 = arith.maximumf %48, %51 : vector<3x60xf32>
    %c6 = arith.constant 6 : index
    %c0_51 = arith.constant 0 : index
    %c0_52 = arith.constant 0 : index
    %53 = vector.load %arg7[%c6, %c0_51, %c0_52] : memref<7x3x15xf32, #tpu.memory_space<vmem>>, vector<1x3x15xf32>
    %54 = vector.shape_cast %53 : vector<1x3x15xf32> to vector<3x15xf32>
    %cst_53 = arith.constant dense<0.000000e+00> : vector<3x60xf32>
    %55 = tpu.matmul %54, %29, %cst_53 {dimension_numbers = #tpu.dot_dimension_numbers<[1], [0], [0], [1], [0, 0, 1, 1], [], []>} : vector<3x15xf32>, vector<15x60xf32>, vector<3x60xf32> -> vector<3x60xf32>
    %56 = arith.maximumf %52, %55 : vector<3x60xf32>
    %c0_54 = arith.constant 0 : index
    %c0_55 = arith.constant 0 : index
    %c0_56 = arith.constant 0 : index
    %57 = vector.load %arg8[%c0_54, %c0_55, %c0_56] : memref<7x60x12xf32, #tpu.memory_space<vmem>>, vector<1x60x12xf32>
    %58 = vector.shape_cast %57 : vector<1x60x12xf32> to vector<60x12xf32>
    %cst_57 = arith.constant dense<0.000000e+00> : vector<3x12xf32>
    %59 = tpu.matmul %56, %58, %cst_57 {dimension_numbers = #tpu.dot_dimension_numbers<[1], [0], [0], [1], [0, 0, 1, 1], [], []>} : vector<3x60xf32>, vector<60x12xf32>, vector<3x12xf32> -> vector<3x12xf32>
    %c1_58 = arith.constant 1 : index
    %c0_59 = arith.constant 0 : index
    %c0_60 = arith.constant 0 : index
    %60 = vector.load %arg8[%c1_58, %c0_59, %c0_60] : memref<7x60x12xf32, #tpu.memory_space<vmem>>, vector<1x60x12xf32>
    %61 = vector.shape_cast %60 : vector<1x60x12xf32> to vector<60x12xf32>
    %cst_61 = arith.constant dense<0.000000e+00> : vector<3x12xf32>
    %62 = tpu.matmul %56, %61, %cst_61 {dimension_numbers = #tpu.dot_dimension_numbers<[1], [0], [0], [1], [0, 0, 1, 1], [], []>} : vector<3x60xf32>, vector<60x12xf32>, vector<3x12xf32> -> vector<3x12xf32>
    %63 = arith.maximumf %59, %62 : vector<3x12xf32>
    %c2_62 = arith.constant 2 : index
    %c0_63 = arith.constant 0 : index
    %c0_64 = arith.constant 0 : index
    %64 = vector.load %arg8[%c2_62, %c0_63, %c0_64] : memref<7x60x12xf32, #tpu.memory_space<vmem>>, vector<1x60x12xf32>
    %65 = vector.shape_cast %64 : vector<1x60x12xf32> to vector<60x12xf32>
    %cst_65 = arith.constant dense<0.000000e+00> : vector<3x12xf32>
    %66 = tpu.matmul %56, %65, %cst_65 {dimension_numbers = #tpu.dot_dimension_numbers<[1], [0], [0], [1], [0, 0, 1, 1], [], []>} : vector<3x60xf32>, vector<60x12xf32>, vector<3x12xf32> -> vector<3x12xf32>
    %67 = arith.maximumf %63, %66 : vector<3x12xf32>
    %c3_66 = arith.constant 3 : index
    %c0_67 = arith.constant 0 : index
    %c0_68 = arith.constant 0 : index
    %68 = vector.load %arg8[%c3_66, %c0_67, %c0_68] : memref<7x60x12xf32, #tpu.memory_space<vmem>>, vector<1x60x12xf32>
    %69 = vector.shape_cast %68 : vector<1x60x12xf32> to vector<60x12xf32>
    %cst_69 = arith.constant dense<0.000000e+00> : vector<3x12xf32>
    %70 = tpu.matmul %56, %69, %cst_69 {dimension_numbers = #tpu.dot_dimension_numbers<[1], [0], [0], [1], [0, 0, 1, 1], [], []>} : vector<3x60xf32>, vector<60x12xf32>, vector<3x12xf32> -> vector<3x12xf32>
    %71 = arith.maximumf %67, %70 : vector<3x12xf32>
    %c4_70 = arith.constant 4 : index
    %c0_71 = arith.constant 0 : index
    %c0_72 = arith.constant 0 : index
    %72 = vector.load %arg8[%c4_70, %c0_71, %c0_72] : memref<7x60x12xf32, #tpu.memory_space<vmem>>, vector<1x60x12xf32>
    %73 = vector.shape_cast %72 : vector<1x60x12xf32> to vector<60x12xf32>
    %cst_73 = arith.constant dense<0.000000e+00> : vector<3x12xf32>
    %74 = tpu.matmul %56, %73, %cst_73 {dimension_numbers = #tpu.dot_dimension_numbers<[1], [0], [0], [1], [0, 0, 1, 1], [], []>} : vector<3x60xf32>, vector<60x12xf32>, vector<3x12xf32> -> vector<3x12xf32>
    %75 = arith.maximumf %71, %74 : vector<3x12xf32>
    %c5_74 = arith.constant 5 : index
    %c0_75 = arith.constant 0 : index
    %c0_76 = arith.constant 0 : index
    %76 = vector.load %arg8[%c5_74, %c0_75, %c0_76] : memref<7x60x12xf32, #tpu.memory_space<vmem>>, vector<1x60x12xf32>
    %77 = vector.shape_cast %76 : vector<1x60x12xf32> to vector<60x12xf32>
    %cst_77 = arith.constant dense<0.000000e+00> : vector<3x12xf32>
    %78 = tpu.matmul %56, %77, %cst_77 {dimension_numbers = #tpu.dot_dimension_numbers<[1], [0], [0], [1], [0, 0, 1, 1], [], []>} : vector<3x60xf32>, vector<60x12xf32>, vector<3x12xf32> -> vector<3x12xf32>
    %79 = arith.maximumf %75, %78 : vector<3x12xf32>
    %c6_78 = arith.constant 6 : index
    %c0_79 = arith.constant 0 : index
    %c0_80 = arith.constant 0 : index
    %80 = vector.load %arg8[%c6_78, %c0_79, %c0_80] : memref<7x60x12xf32, #tpu.memory_space<vmem>>, vector<1x60x12xf32>
    %81 = vector.shape_cast %80 : vector<1x60x12xf32> to vector<60x12xf32>
    %cst_81 = arith.constant dense<0.000000e+00> : vector<3x12xf32>
    %82 = tpu.matmul %56, %81, %cst_81 {dimension_numbers = #tpu.dot_dimension_numbers<[1], [0], [0], [1], [0, 0, 1, 1], [], []>} : vector<3x60xf32>, vector<60x12xf32>, vector<3x12xf32> -> vector<3x12xf32>
    %83 = arith.maximumf %79, %82 : vector<3x12xf32>
    %c0_82 = arith.constant 0 : index
    %c0_83 = arith.constant 0 : index
    %c0_84 = arith.constant 0 : index
    %84 = vector.load %arg9[%c0_82, %c0_83, %c0_84] : memref<3x3x3xf32, #tpu.memory_space<vmem>>, vector<1x3x3xf32>
    %85 = vector.shape_cast %84 : vector<1x3x3xf32> to vector<3x3xf32>
    %cst_85 = arith.constant dense<0.000000e+00> : vector<3x12xf32>
    %86 = tpu.matmul %85, %83, %cst_85 {dimension_numbers = #tpu.dot_dimension_numbers<[1], [0], [0], [1], [0, 0, 1, 1], [], []>} : vector<3x3xf32>, vector<3x12xf32>, vector<3x12xf32> -> vector<3x12xf32>
    %c0_86 = arith.constant 0 : index
    %c0_87 = arith.constant 0 : index
    %c0_88 = arith.constant 0 : index
    %c0_89 = arith.constant 0 : index
    %87 = vector.load %arg10[%c0_86, %c0_87, %c0_88, %c0_89] : memref<3x3x12x12xf32, #tpu.memory_space<vmem>>, vector<1x1x12x12xf32>
    %88 = vector.shape_cast %87 : vector<1x1x12x12xf32> to vector<12x12xf32>
    %cst_90 = arith.constant dense<0.000000e+00> : vector<3x12xf32>
    %89 = tpu.matmul %86, %88, %cst_90 {dimension_numbers = #tpu.dot_dimension_numbers<[1], [0], [0], [1], [0, 0, 1, 1], [], []>} : vector<3x12xf32>, vector<12x12xf32>, vector<3x12xf32> -> vector<3x12xf32>
    %c1_91 = arith.constant 1 : index
    %c0_92 = arith.constant 0 : index
    %c0_93 = arith.constant 0 : index
    %90 = vector.load %arg9[%c1_91, %c0_92, %c0_93] : memref<3x3x3xf32, #tpu.memory_space<vmem>>, vector<1x3x3xf32>
    %91 = vector.shape_cast %90 : vector<1x3x3xf32> to vector<3x3xf32>
    %cst_94 = arith.constant dense<0.000000e+00> : vector<3x12xf32>
    %92 = tpu.matmul %91, %83, %cst_94 {dimension_numbers = #tpu.dot_dimension_numbers<[1], [0], [0], [1], [0, 0, 1, 1], [], []>} : vector<3x3xf32>, vector<3x12xf32>, vector<3x12xf32> -> vector<3x12xf32>
    %c0_95 = arith.constant 0 : index
    %c1_96 = arith.constant 1 : index
    %c0_97 = arith.constant 0 : index
    %c0_98 = arith.constant 0 : index
    %93 = vector.load %arg10[%c0_95, %c1_96, %c0_97, %c0_98] : memref<3x3x12x12xf32, #tpu.memory_space<vmem>>, vector<1x1x12x12xf32>
    %94 = vector.shape_cast %93 : vector<1x1x12x12xf32> to vector<12x12xf32>
    %cst_99 = arith.constant dense<0.000000e+00> : vector<3x12xf32>
    %95 = tpu.matmul %92, %94, %cst_99 {dimension_numbers = #tpu.dot_dimension_numbers<[1], [0], [0], [1], [0, 0, 1, 1], [], []>} : vector<3x12xf32>, vector<12x12xf32>, vector<3x12xf32> -> vector<3x12xf32>
    %96 = arith.addf %89, %95 : vector<3x12xf32>
    %c2_100 = arith.constant 2 : index
    %c0_101 = arith.constant 0 : index
    %c0_102 = arith.constant 0 : index
    %97 = vector.load %arg9[%c2_100, %c0_101, %c0_102] : memref<3x3x3xf32, #tpu.memory_space<vmem>>, vector<1x3x3xf32>
    %98 = vector.shape_cast %97 : vector<1x3x3xf32> to vector<3x3xf32>
    %cst_103 = arith.constant dense<0.000000e+00> : vector<3x12xf32>
    %99 = tpu.matmul %98, %83, %cst_103 {dimension_numbers = #tpu.dot_dimension_numbers<[1], [0], [0], [1], [0, 0, 1, 1], [], []>} : vector<3x3xf32>, vector<3x12xf32>, vector<3x12xf32> -> vector<3x12xf32>
    %c0_104 = arith.constant 0 : index
    %c2_105 = arith.constant 2 : index
    %c0_106 = arith.constant 0 : index
    %c0_107 = arith.constant 0 : index
    %100 = vector.load %arg10[%c0_104, %c2_105, %c0_106, %c0_107] : memref<3x3x12x12xf32, #tpu.memory_space<vmem>>, vector<1x1x12x12xf32>
    %101 = vector.shape_cast %100 : vector<1x1x12x12xf32> to vector<12x12xf32>
    %cst_108 = arith.constant dense<0.000000e+00> : vector<3x12xf32>
    %102 = tpu.matmul %99, %101, %cst_108 {dimension_numbers = #tpu.dot_dimension_numbers<[1], [0], [0], [1], [0, 0, 1, 1], [], []>} : vector<3x12xf32>, vector<12x12xf32>, vector<3x12xf32> -> vector<3x12xf32>
    %103 = arith.addf %96, %102 : vector<3x12xf32>
    %c0_109 = arith.constant 0 : index
    %c0_110 = arith.constant 0 : index
    %c0_111 = arith.constant 0 : index
    %104 = vector.load %arg11[%c0_109, %c0_110, %c0_111] : memref<3x1x12xf32, #tpu.memory_space<vmem>>, vector<1x1x12xf32>
    %105 = vector.shape_cast %104 : vector<1x1x12xf32> to vector<1x12xf32>
    %106 = vector.broadcast %105 : vector<1x12xf32> to vector<3x12xf32>
    %107 = arith.addf %103, %106 : vector<3x12xf32>
    %cst_112 = arith.constant 0.000000e+00 : f32
    %108 = vector.broadcast %cst_112 : f32 to vector<3x12xf32>
    %109 = arith.maximumf %107, %108 : vector<3x12xf32>
    %c0_113 = arith.constant 0 : index
    %c0_114 = arith.constant 0 : index
    %c0_115 = arith.constant 0 : index
    %110 = vector.load %arg9[%c0_113, %c0_114, %c0_115] : memref<3x3x3xf32, #tpu.memory_space<vmem>>, vector<1x3x3xf32>
    %111 = vector.shape_cast %110 : vector<1x3x3xf32> to vector<3x3xf32>
    %cst_116 = arith.constant dense<0.000000e+00> : vector<3x12xf32>
    %112 = tpu.matmul %111, %109, %cst_116 {dimension_numbers = #tpu.dot_dimension_numbers<[1], [0], [0], [1], [0, 0, 1, 1], [], []>} : vector<3x3xf32>, vector<3x12xf32>, vector<3x12xf32> -> vector<3x12xf32>
    %c1_117 = arith.constant 1 : index
    %c0_118 = arith.constant 0 : index
    %c0_119 = arith.constant 0 : index
    %c0_120 = arith.constant 0 : index
    %113 = vector.load %arg10[%c1_117, %c0_118, %c0_119, %c0_120] : memref<3x3x12x12xf32, #tpu.memory_space<vmem>>, vector<1x1x12x12xf32>
    %114 = vector.shape_cast %113 : vector<1x1x12x12xf32> to vector<12x12xf32>
    %cst_121 = arith.constant dense<0.000000e+00> : vector<3x12xf32>
    %115 = tpu.matmul %112, %114, %cst_121 {dimension_numbers = #tpu.dot_dimension_numbers<[1], [0], [0], [1], [0, 0, 1, 1], [], []>} : vector<3x12xf32>, vector<12x12xf32>, vector<3x12xf32> -> vector<3x12xf32>
    %c1_122 = arith.constant 1 : index
    %c0_123 = arith.constant 0 : index
    %c0_124 = arith.constant 0 : index
    %116 = vector.load %arg9[%c1_122, %c0_123, %c0_124] : memref<3x3x3xf32, #tpu.memory_space<vmem>>, vector<1x3x3xf32>
    %117 = vector.shape_cast %116 : vector<1x3x3xf32> to vector<3x3xf32>
    %cst_125 = arith.constant dense<0.000000e+00> : vector<3x12xf32>
    %118 = tpu.matmul %117, %109, %cst_125 {dimension_numbers = #tpu.dot_dimension_numbers<[1], [0], [0], [1], [0, 0, 1, 1], [], []>} : vector<3x3xf32>, vector<3x12xf32>, vector<3x12xf32> -> vector<3x12xf32>
    %c1_126 = arith.constant 1 : index
    %c1_127 = arith.constant 1 : index
    %c0_128 = arith.constant 0 : index
    %c0_129 = arith.constant 0 : index
    %119 = vector.load %arg10[%c1_126, %c1_127, %c0_128, %c0_129] : memref<3x3x12x12xf32, #tpu.memory_space<vmem>>, vector<1x1x12x12xf32>
    %120 = vector.shape_cast %119 : vector<1x1x12x12xf32> to vector<12x12xf32>
    %cst_130 = arith.constant dense<0.000000e+00> : vector<3x12xf32>
    %121 = tpu.matmul %118, %120, %cst_130 {dimension_numbers = #tpu.dot_dimension_numbers<[1], [0], [0], [1], [0, 0, 1, 1], [], []>} : vector<3x12xf32>, vector<12x12xf32>, vector<3x12xf32> -> vector<3x12xf32>
    %122 = arith.addf %115, %121 : vector<3x12xf32>
    %c2_131 = arith.constant 2 : index
    %c0_132 = arith.constant 0 : index
    %c0_133 = arith.constant 0 : index
    %123 = vector.load %arg9[%c2_131, %c0_132, %c0_133] : memref<3x3x3xf32, #tpu.memory_space<vmem>>, vector<1x3x3xf32>
    %124 = vector.shape_cast %123 : vector<1x3x3xf32> to vector<3x3xf32>
    %cst_134 = arith.constant dense<0.000000e+00> : vector<3x12xf32>
    %125 = tpu.matmul %124, %109, %cst_134 {dimension_numbers = #tpu.dot_dimension_numbers<[1], [0], [0], [1], [0, 0, 1, 1], [], []>} : vector<3x3xf32>, vector<3x12xf32>, vector<3x12xf32> -> vector<3x12xf32>
    %c1_135 = arith.constant 1 : index
    %c2_136 = arith.constant 2 : index
    %c0_137 = arith.constant 0 : index
    %c0_138 = arith.constant 0 : index
    %126 = vector.load %arg10[%c1_135, %c2_136, %c0_137, %c0_138] : memref<3x3x12x12xf32, #tpu.memory_space<vmem>>, vector<1x1x12x12xf32>
    %127 = vector.shape_cast %126 : vector<1x1x12x12xf32> to vector<12x12xf32>
    %cst_139 = arith.constant dense<0.000000e+00> : vector<3x12xf32>
    %128 = tpu.matmul %125, %127, %cst_139 {dimension_numbers = #tpu.dot_dimension_numbers<[1], [0], [0], [1], [0, 0, 1, 1], [], []>} : vector<3x12xf32>, vector<12x12xf32>, vector<3x12xf32> -> vector<3x12xf32>
    %129 = arith.addf %122, %128 : vector<3x12xf32>
    %c1_140 = arith.constant 1 : index
    %c0_141 = arith.constant 0 : index
    %c0_142 = arith.constant 0 : index
    %130 = vector.load %arg11[%c1_140, %c0_141, %c0_142] : memref<3x1x12xf32, #tpu.memory_space<vmem>>, vector<1x1x12xf32>
    %131 = vector.shape_cast %130 : vector<1x1x12xf32> to vector<1x12xf32>
    %132 = vector.broadcast %131 : vector<1x12xf32> to vector<3x12xf32>
    %133 = arith.addf %129, %132 : vector<3x12xf32>
    %cst_143 = arith.constant 0.000000e+00 : f32
    %134 = vector.broadcast %cst_143 : f32 to vector<3x12xf32>
    %135 = arith.maximumf %133, %134 : vector<3x12xf32>
    %c0_144 = arith.constant 0 : index
    %c0_145 = arith.constant 0 : index
    %c0_146 = arith.constant 0 : index
    %136 = vector.load %arg9[%c0_144, %c0_145, %c0_146] : memref<3x3x3xf32, #tpu.memory_space<vmem>>, vector<1x3x3xf32>
    %137 = vector.shape_cast %136 : vector<1x3x3xf32> to vector<3x3xf32>
    %cst_147 = arith.constant dense<0.000000e+00> : vector<3x12xf32>
    %138 = tpu.matmul %137, %135, %cst_147 {dimension_numbers = #tpu.dot_dimension_numbers<[1], [0], [0], [1], [0, 0, 1, 1], [], []>} : vector<3x3xf32>, vector<3x12xf32>, vector<3x12xf32> -> vector<3x12xf32>
    %c2_148 = arith.constant 2 : index
    %c0_149 = arith.constant 0 : index
    %c0_150 = arith.constant 0 : index
    %c0_151 = arith.constant 0 : index
    %139 = vector.load %arg10[%c2_148, %c0_149, %c0_150, %c0_151] : memref<3x3x12x12xf32, #tpu.memory_space<vmem>>, vector<1x1x12x12xf32>
    %140 = vector.shape_cast %139 : vector<1x1x12x12xf32> to vector<12x12xf32>
    %cst_152 = arith.constant dense<0.000000e+00> : vector<3x12xf32>
    %141 = tpu.matmul %138, %140, %cst_152 {dimension_numbers = #tpu.dot_dimension_numbers<[1], [0], [0], [1], [0, 0, 1, 1], [], []>} : vector<3x12xf32>, vector<12x12xf32>, vector<3x12xf32> -> vector<3x12xf32>
    %c1_153 = arith.constant 1 : index
    %c0_154 = arith.constant 0 : index
    %c0_155 = arith.constant 0 : index
    %142 = vector.load %arg9[%c1_153, %c0_154, %c0_155] : memref<3x3x3xf32, #tpu.memory_space<vmem>>, vector<1x3x3xf32>
    %143 = vector.shape_cast %142 : vector<1x3x3xf32> to vector<3x3xf32>
    %cst_156 = arith.constant dense<0.000000e+00> : vector<3x12xf32>
    %144 = tpu.matmul %143, %135, %cst_156 {dimension_numbers = #tpu.dot_dimension_numbers<[1], [0], [0], [1], [0, 0, 1, 1], [], []>} : vector<3x3xf32>, vector<3x12xf32>, vector<3x12xf32> -> vector<3x12xf32>
    %c2_157 = arith.constant 2 : index
    %c1_158 = arith.constant 1 : index
    %c0_159 = arith.constant 0 : index
    %c0_160 = arith.constant 0 : index
    %145 = vector.load %arg10[%c2_157, %c1_158, %c0_159, %c0_160] : memref<3x3x12x12xf32, #tpu.memory_space<vmem>>, vector<1x1x12x12xf32>
    %146 = vector.shape_cast %145 : vector<1x1x12x12xf32> to vector<12x12xf32>
    %cst_161 = arith.constant dense<0.000000e+00> : vector<3x12xf32>
    %147 = tpu.matmul %144, %146, %cst_161 {dimension_numbers = #tpu.dot_dimension_numbers<[1], [0], [0], [1], [0, 0, 1, 1], [], []>} : vector<3x12xf32>, vector<12x12xf32>, vector<3x12xf32> -> vector<3x12xf32>
    %148 = arith.addf %141, %147 : vector<3x12xf32>
    %c2_162 = arith.constant 2 : index
    %c0_163 = arith.constant 0 : index
    %c0_164 = arith.constant 0 : index
    %149 = vector.load %arg9[%c2_162, %c0_163, %c0_164] : memref<3x3x3xf32, #tpu.memory_space<vmem>>, vector<1x3x3xf32>
    %150 = vector.shape_cast %149 : vector<1x3x3xf32> to vector<3x3xf32>
    %cst_165 = arith.constant dense<0.000000e+00> : vector<3x12xf32>
    %151 = tpu.matmul %150, %135, %cst_165 {dimension_numbers = #tpu.dot_dimension_numbers<[1], [0], [0], [1], [0, 0, 1, 1], [], []>} : vector<3x3xf32>, vector<3x12xf32>, vector<3x12xf32> -> vector<3x12xf32>
    %c2_166 = arith.constant 2 : index
    %c2_167 = arith.constant 2 : index
    %c0_168 = arith.constant 0 : index
    %c0_169 = arith.constant 0 : index
    %152 = vector.load %arg10[%c2_166, %c2_167, %c0_168, %c0_169] : memref<3x3x12x12xf32, #tpu.memory_space<vmem>>, vector<1x1x12x12xf32>
    %153 = vector.shape_cast %152 : vector<1x1x12x12xf32> to vector<12x12xf32>
    %cst_170 = arith.constant dense<0.000000e+00> : vector<3x12xf32>
    %154 = tpu.matmul %151, %153, %cst_170 {dimension_numbers = #tpu.dot_dimension_numbers<[1], [0], [0], [1], [0, 0, 1, 1], [], []>} : vector<3x12xf32>, vector<12x12xf32>, vector<3x12xf32> -> vector<3x12xf32>
    %155 = arith.addf %148, %154 : vector<3x12xf32>
    %c2_171 = arith.constant 2 : index
    %c0_172 = arith.constant 0 : index
    %c0_173 = arith.constant 0 : index
    %156 = vector.load %arg11[%c2_171, %c0_172, %c0_173] : memref<3x1x12xf32, #tpu.memory_space<vmem>>, vector<1x1x12xf32>
    %157 = vector.shape_cast %156 : vector<1x1x12xf32> to vector<1x12xf32>
    %158 = vector.broadcast %157 : vector<1x12xf32> to vector<3x12xf32>
    %159 = arith.addf %155, %158 : vector<3x12xf32>
    %c0_174 = arith.constant 0 : index
    %c0_175 = arith.constant 0 : index
    %160 = vector.load %arg12[%c0_174, %c0_175] : memref<32x3xf32, #tpu.memory_space<vmem>>, vector<32x3xf32>
    %cst_176 = arith.constant dense<0.000000e+00> : vector<32x12xf32>
    %161 = tpu.matmul %160, %159, %cst_176 {dimension_numbers = #tpu.dot_dimension_numbers<[1], [0], [0], [1], [0, 0, 1, 1], [], []>} : vector<32x3xf32>, vector<3x12xf32>, vector<32x12xf32> -> vector<32x12xf32>
    %c0_177 = arith.constant 0 : index
    %c0_178 = arith.constant 0 : index
    %162 = vector.load %arg13[%c0_177, %c0_178] : memref<12x128xf32, #tpu.memory_space<vmem>>, vector<12x128xf32>
    %cst_179 = arith.constant dense<0.000000e+00> : vector<32x128xf32>
    %163 = tpu.matmul %161, %162, %cst_179 {dimension_numbers = #tpu.dot_dimension_numbers<[1], [0], [0], [1], [0, 0, 1, 1], [], []>} : vector<32x12xf32>, vector<12x128xf32>, vector<32x128xf32> -> vector<32x128xf32>
    %c0_180 = arith.constant 0 : index
    %c0_181 = arith.constant 0 : index
    %164 = vector.load %arg14[%c0_180, %c0_181] : memref<128x128xf32, #tpu.memory_space<vmem>>, vector<128x128xf32>
    %cst_182 = arith.constant dense<0.000000e+00> : vector<32x128xf32>
    %165 = tpu.matmul %6, %164, %cst_182 {dimension_numbers = #tpu.dot_dimension_numbers<[1], [0], [0], [1], [0, 0, 1, 1], [], []>} : vector<32x128xf32>, vector<128x128xf32>, vector<32x128xf32> -> vector<32x128xf32>
    %166 = arith.addf %163, %165 : vector<32x128xf32>
    %c0_183 = arith.constant 0 : index
    %c0_184 = arith.constant 0 : index
    %167 = vector.load %arg15[%c0_183, %c0_184] : memref<1x128xf32, #tpu.memory_space<vmem>>, vector<1x128xf32>
    %168 = vector.broadcast %167 : vector<1x128xf32> to vector<32x128xf32>
    %169 = arith.addf %166, %168 : vector<32x128xf32>
    %c0_185 = arith.constant 0 : index
    %c0_186 = arith.constant 0 : index
    %170 = vector.load %arg16[%c0_185, %c0_186] : memref<128x512xf32, #tpu.memory_space<vmem>>, vector<128x512xf32>
    %cst_187 = arith.constant dense<0.000000e+00> : vector<32x512xf32>
    %171 = tpu.matmul %169, %170, %cst_187 {dimension_numbers = #tpu.dot_dimension_numbers<[1], [0], [0], [1], [0, 0, 1, 1], [], []>} : vector<32x128xf32>, vector<128x512xf32>, vector<32x512xf32> -> vector<32x512xf32>
    %c0_188 = arith.constant 0 : index
    %c0_189 = arith.constant 0 : index
    %172 = vector.load %arg17[%c0_188, %c0_189] : memref<1x512xf32, #tpu.memory_space<vmem>>, vector<1x512xf32>
    %173 = vector.broadcast %172 : vector<1x512xf32> to vector<32x512xf32>
    %174 = arith.addf %171, %173 : vector<32x512xf32>
    %c0_190 = arith.constant 0 : index
    %c0_191 = arith.constant 0 : index
    %c0_192 = arith.constant 0 : index
    %175 = vector.load %arg1[%c0_190, %c0_191, %c0_192] : memref<1x32x512xf32, #tpu.memory_space<vmem>>, vector<1x32x512xf32>
    %176 = vector.shape_cast %175 : vector<1x32x512xf32> to vector<32x512xf32>
    %177 = arith.negf %174 : vector<32x512xf32>
    %178 = math.exp %177 : vector<32x512xf32>
    %cst_193 = arith.constant 1.000000e+00 : f32
    %179 = vector.broadcast %cst_193 : f32 to vector<32x512xf32>
    %180 = arith.addf %179, %178 : vector<32x512xf32>
    %181 = arith.divf %179, %180 : vector<32x512xf32>
    %182 = arith.mulf %176, %181 : vector<32x512xf32>
    %c0_194 = arith.constant 0 : index
    %c0_195 = arith.constant 0 : index
    %c0_196 = arith.constant 0 : index
    %183 = vector.load %arg18[%c0_194, %c0_195, %c0_196] : memref<1x32x512xf32, #tpu.memory_space<vmem>>, vector<1x32x512xf32>
    %184 = vector.shape_cast %183 : vector<1x32x512xf32> to vector<32x512xf32>
    %185 = vector.shape_cast %182 : vector<32x512xf32> to vector<1x32x512xf32>
    tpu.vector_store %arg18[%c0_194, %c0_195, %c0_196], %185 {strides = array<i32>} : memref<1x32x512xf32, #tpu.memory_space<vmem>>, vector<1x32x512xf32>,
    return
  }
  func.func @transform_0(%arg0: i32) -> (i32, i32, i32) {
    %c0_i32 = arith.constant 0 : i32
    %c0_i32_0 = arith.constant 0 : i32
    %c0_i32_1 = arith.constant 0 : i32
    return %arg0, %c0_i32, %c0_i32_0 : i32, i32, i32
  }
  func.func @transform_1(%arg0: i32) -> (i32, i32) {
    %c0_i32 = arith.constant 0 : i32
    %c0_i32_0 = arith.constant 0 : i32
    %c0_i32_1 = arith.constant 0 : i32
    return %c0_i32, %c0_i32_0 : i32, i32
  }
  func.func @transform_2(%arg0: i32) -> (i32, i32) {
    %c0_i32 = arith.constant 0 : i32
    %c0_i32_0 = arith.constant 0 : i32
    %c0_i32_1 = arith.constant 0 : i32
    return %c0_i32, %c0_i32_0 : i32, i32
  }
  func.func @transform_3(%arg0: i32) -> (i32, i32, i32) {
    %c0_i32 = arith.constant 0 : i32
    %c0_i32_0 = arith.constant 0 : i32
    %c0_i32_1 = arith.constant 0 : i32
    %c0_i32_2 = arith.constant 0 : i32
    return %c0_i32, %c0_i32_0, %c0_i32_1 : i32, i32, i32
  }
  func.func @transform_4(%arg0: i32) -> (i32, i32, i32) {
    %c0_i32 = arith.constant 0 : i32
    %c0_i32_0 = arith.constant 0 : i32
    %c0_i32_1 = arith.constant 0 : i32
    %c0_i32_2 = arith.constant 0 : i32
    return %c0_i32, %c0_i32_0, %c0_i32_1 : i32, i32, i32
  }
  func.func @transform_5(%arg0: i32) -> (i32, i32) {
    %c0_i32 = arith.constant 0 : i32
    %c0_i32_0 = arith.constant 0 : i32
    %c0_i32_1 = arith.constant 0 : i32
    return %c0_i32, %c0_i32_0 : i32, i32
  }
  func.func @transform_6(%arg0: i32) -> (i32, i32, i32) {
    %c0_i32 = arith.constant 0 : i32
    %c0_i32_0 = arith.constant 0 : i32
    %c0_i32_1 = arith.constant 0 : i32
    %c0_i32_2 = arith.constant 0 : i32
    return %c0_i32, %c0_i32_0, %c0_i32_1 : i32, i32, i32
  }
  func.func @transform_7(%arg0: i32) -> (i32, i32, i32) {
    %c0_i32 = arith.constant 0 : i32
    %c0_i32_0 = arith.constant 0 : i32
    %c0_i32_1 = arith.constant 0 : i32
    %c0_i32_2 = arith.constant 0 : i32
    return %c0_i32, %c0_i32_0, %c0_i32_1 : i32, i32, i32
  }
  func.func @transform_8(%arg0: i32) -> (i32, i32, i32) {
    %c0_i32 = arith.constant 0 : i32
    %c0_i32_0 = arith.constant 0 : i32
    %c0_i32_1 = arith.constant 0 : i32
    %c0_i32_2 = arith.constant 0 : i32
    return %c0_i32, %c0_i32_0, %c0_i32_1 : i32, i32, i32
  }
  func.func @transform_9(%arg0: i32) -> (i32, i32, i32, i32) {
    %c0_i32 = arith.constant 0 : i32
    %c0_i32_0 = arith.constant 0 : i32
    %c0_i32_1 = arith.constant 0 : i32
    %c0_i32_2 = arith.constant 0 : i32
    %c0_i32_3 = arith.constant 0 : i32
    return %c0_i32, %c0_i32_0, %c0_i32_1, %c0_i32_2 : i32, i32, i32, i32
  }
  func.func @transform_10(%arg0: i32) -> (i32, i32, i32) {
    %c0_i32 = arith.constant 0 : i32
    %c0_i32_0 = arith.constant 0 : i32
    %c0_i32_1 = arith.constant 0 : i32
    %c0_i32_2 = arith.constant 0 : i32
    return %c0_i32, %c0_i32_0, %c0_i32_1 : i32, i32, i32
  }
  func.func @transform_11(%arg0: i32) -> (i32, i32) {
    %c0_i32 = arith.constant 0 : i32
    %c0_i32_0 = arith.constant 0 : i32
    %c0_i32_1 = arith.constant 0 : i32
    return %c0_i32, %c0_i32_0 : i32, i32
  }
  func.func @transform_12(%arg0: i32) -> (i32, i32) {
    %c0_i32 = arith.constant 0 : i32
    %c0_i32_0 = arith.constant 0 : i32
    %c0_i32_1 = arith.constant 0 : i32
    return %c0_i32, %c0_i32_0 : i32, i32
  }
  func.func @transform_13(%arg0: i32) -> (i32, i32) {
    %c0_i32 = arith.constant 0 : i32
    %c0_i32_0 = arith.constant 0 : i32
    %c0_i32_1 = arith.constant 0 : i32
    return %c0_i32, %c0_i32_0 : i32, i32
  }
  func.func @transform_14(%arg0: i32) -> (i32, i32) {
    %c0_i32 = arith.constant 0 : i32
    %c0_i32_0 = arith.constant 0 : i32
    %c0_i32_1 = arith.constant 0 : i32
    return %c0_i32, %c0_i32_0 : i32, i32
  }
  func.func @transform_15(%arg0: i32) -> (i32, i32) {
    %c0_i32 = arith.constant 0 : i32
    %c0_i32_0 = arith.constant 0 : i32
    %c0_i32_1 = arith.constant 0 : i32
    return %c0_i32, %c0_i32_0 : i32, i32
  }
  func.func @transform_16(%arg0: i32) -> (i32, i32) {
    %c0_i32 = arith.constant 0 : i32
    %c0_i32_0 = arith.constant 0 : i32
    %c0_i32_1 = arith.constant 0 : i32
    return %c0_i32, %c0_i32_0 : i32, i32
  }
  func.func @transform_17(%arg0: i32) -> (i32, i32, i32) {
    %c0_i32 = arith.constant 0 : i32
    %c0_i32_0 = arith.constant 0 : i32
    %c0_i32_1 = arith.constant 0 : i32
    return %arg0, %c0_i32, %c0_i32_0 : i32, i32, i32
  }
}

</mosaic_0001>

<llo_original>
// kernel: tpu_custom_call.1
$region0: #{tpu_custom_call.1}
  #allocation0 [shape = 'u32[]', space=smem, size = 0x4, offset = 0x4, fixed_abs, tag = 'smem constant byte address 0x4 - core index']
  #allocation1 [shape = 'u32[144,128]{1,0:T(1,128)}', space=vmem, size = 0x12000, scoped, tag = 'internal scratch']
  %s0 = inlined_call_operand.hbm [shape: f32[2,32,512], index: 0, kind: input, shape index: {}]
  %s1 = inlined_call_operand.vmem [shape: f32[512,128], index: 1, kind: input, shape index: {}]
  %s2 = inlined_call_operand.vmem [shape: f32[1,128], index: 2, kind: input, shape index: {}]
  %s3 = inlined_call_operand.hbm [shape: f32[3,15,32], index: 3, kind: input, shape index: {}]
  %s4 = inlined_call_operand.vmem [shape: f32[3,128,60], index: 4, kind: input, shape index: {}]
  %s5 = inlined_call_operand.vmem [shape: f32[1,60], index: 5, kind: input, shape index: {}]
  %s6 = inlined_call_operand.vmem [shape: f32[7,3,15], index: 6, kind: input, shape index: {}]
  %s7 = inlined_call_operand.vmem [shape: f32[7,60,12], index: 7, kind: input, shape index: {}]
  %s8 = inlined_call_operand.vmem [shape: f32[3,3,3], index: 8, kind: input, shape index: {}]
  %s9 = inlined_call_operand.vmem [shape: f32[3,3,12,12], index: 9, kind: input, shape index: {}]
  %s10 = inlined_call_operand.vmem [shape: f32[3,1,12], index: 10, kind: input, shape index: {}]
  %s11 = inlined_call_operand.vmem [shape: f32[32,3], index: 11, kind: input, shape index: {}]
  %s12 = inlined_call_operand.vmem [shape: f32[12,128], index: 12, kind: input, shape index: {}]
  %s13 = inlined_call_operand.hbm [shape: f32[128,128], index: 13, kind: input, shape index: {}]
  %s14 = inlined_call_operand.vmem [shape: f32[1,128], index: 14, kind: input, shape index: {}]
  %s15 = inlined_call_operand.vmem [shape: f32[128,512], index: 15, kind: input, shape index: {}]
  %s16 = inlined_call_operand.vmem [shape: f32[1,512], index: 16, kind: input, shape index: {}]
  %s17 = inlined_call_operand.hbm [shape: f32[2,32,512], index: 17, kind: output, shape index: {}]
  %s18 = sld [smem:[#allocation0]]
  $region113: #{tpu_custom_call.1} parent=0
    _
  %s20 = ssub.s32 1, %s18
  %s21 = scalar_select 0, %s20, %s18
  $region1: #{tpu_custom_call.1} parent=0
    #allocation2 [shape = 'u8[131072]{0}', space=vmem, size = 0x20000, scoped, tag = 'input window, operand 0']
    #allocation3 [shape = 's32[2]{0}', space=sflag, size = 0x8, scoped, tag = 'scoped memory for tpu_custom_call.1']
    #allocation4 [shape = 's32[2]{0}', space=sflag, size = 0x8, scoped, tag = 'scoped memory for tpu_custom_call.1']
    #allocation5 [shape = 'u8[24576]{0}', space=vmem, size = 0x6000, scoped, tag = 'input window, operand 3, single buffered']
    #allocation6 [shape = 's32[1]{0}', space=sflag, size = 0x4, scoped, tag = 'scoped memory for tpu_custom_call.1']
    #allocation7 [shape = 'u8[65536]{0}', space=vmem, size = 0x10000, scoped, tag = 'input window, operand 13, single buffered']
    #allocation8 [shape = 'u8[131072]{0}', space=vmem, size = 0x20000, scoped, tag = 'output window, operand 0']
    %22 = vsyncpa [#allocation3], 0
    %s23 = scalar_lea.sflag [#allocation3], 1
    %24 = vsyncpa %s23, 0
    %25 = vsyncpa [#allocation6], 0
    %26 = vsyncpa [#allocation4], 0
    %s27 = scalar_lea.sflag [#allocation4], 1
    %28 = vsyncpa %s27, 0
    loop: start=0, step=1, limit=4
    $region2: #{tpu_custom_call.1} parent=1 // loop_pre_header
      _
    $region3: #{tpu_custom_call.1} parent=1 // loop_header
      %s30 = sphi 0, %s34
      %p31 = scmp.ge.s32.totalorder %s30, 4
      %s40 = sphi 0, %s42
      %s43 = sphi 0, %s40
      %s44 = sphi 0, %s43
      %s60 = sphi 0, %s44
      %s64 = sphi 0, %s64
      %s66 = sphi 0, %s64
      %s67 = sphi 0, %s66
      %s81 = sphi 0, %s67
      %s85 = sphi 0, %s85
      %s87 = sphi 0, %s85
      %s88 = sphi 0, %s87
      %s102 = sphi 0, %s88
      %s106 = sphi 0, %s106
      %s108 = sphi 0, %s106
      %s109 = sphi 0, %s108
      %s123 = sphi 0, %s109
      %s127 = sphi 0, %s127
      %s129 = sphi 0, %s127
      %s130 = sphi 0, %s129
      %s144 = sphi 0, %s130
      %s148 = sphi 0, %s148
      %s150 = sphi 0, %s148
      %s151 = sphi 0, %s150
      %s165 = sphi 0, %s151
      %s169 = sphi 0, %s169
      %s171 = sphi 0, %s169
      %s172 = sphi 0, %s171
      %s186 = sphi 0, %s172
      %s190 = sphi 0, %s190
      %s192 = sphi 0, %s190
      %s193 = sphi 0, %s192
      %s207 = sphi 0, %s193
      %s211 = sphi 0, %s211
      %s213 = sphi 0, %s211
      %s214 = sphi 0, %s213
      %s228 = sphi 0, %s214
      %s232 = sphi 0, %s232
      %s234 = sphi 0, %s232
      %s235 = sphi 0, %s234
      %s249 = sphi 0, %s235
      %s253 = sphi 0, %s253
      %s255 = sphi 0, %s253
      %s256 = sphi 0, %s255
      %s270 = sphi 0, %s256
      %s274 = sphi 0, %s274
      %s276 = sphi 0, %s274
      %s277 = sphi 0, %s276
      %s291 = sphi 0, %s277
      %s295 = sphi 0, %s295
      %s297 = sphi 0, %s295
      %s298 = sphi 0, %s297
      %s312 = sphi 0, %s298
      %s316 = sphi 0, %s316
      %s318 = sphi 0, %s316
      %s319 = sphi 0, %s318
      %s333 = sphi 0, %s319
      %s337 = sphi 0, %s337
      %s339 = sphi 0, %s337
      %s340 = sphi 0, %s339
      %s354 = sphi 0, %s340
      %s358 = sphi 0, %s358
      %s360 = sphi 0, %s358
      %s361 = sphi 0, %s360
      %s375 = sphi 0, %s361
      %s379 = sphi 0, %s379
      %s381 = sphi 0, %s379
      %s382 = sphi 0, %s381
      %s396 = sphi 0, %s382
      %s402 = sphi 0, %s404
      %s405 = sphi 0, %s402
      %s406 = sphi 0, %s405
      %s422 = sphi 0, %s406
    $region4: #{tpu_custom_call.1} parent=1 // loop_header_branch
      %33 = sbr.rel (%p31) target = $region8
    $region5: #{tpu_custom_call.1} parent=1 // loop_body
      %s35 = ssub.s32 %s30, 1
      %s36 = ssub.s32 %s30, 2
      %s37 = sadd.s32 %s30, 1
      %s38 = ssub.s32 %s30, %s37
      %p39 = scmp.eq.s32.totalorder %s38, 0
      %s41 = sadd.s32 %s40, 1
      %s42 = scalar_select %p39, %s40, %s41
      %p45 = pneg %p39
      %p46 = scmp.eq.s32.totalorder %s30, 1
      %p47 = por %p45, %p46
      %p48 = scmp.ne.s32.totalorder %s40, %s43
      %p49 = scmp.eq.s32.totalorder %s30, 0
      %p50 = por %p48, %p49
      %p51 = scmp.ne.s32.totalorder %s40, %s43
      %p52 = scmp.eq.s32.totalorder %s35, 1
      %p53 = por %p51, %p52
      %p54 = scmp.ne.s32.totalorder %s43, %s44
      %p55 = scmp.eq.s32.totalorder %s35, 0
      %p56 = por %p54, %p55
      %p57 = scmp.ne.s32.totalorder %s43, %s44
      %p58 = scmp.eq.s32.totalorder %s36, 1
      %p59 = por %p57, %p58
      %p61 = scmp.ne.s32.totalorder %s44, %s60
      %p62 = scmp.eq.s32.totalorder %s36, 0
      %p63 = por %p61, %p62
      %s65 = sadd.s32 %s64, 1
      %p68 = scmp.eq.s32.totalorder %s30, 1
      %p69 = scmp.ne.s32.totalorder %s64, %s66
      %p70 = scmp.eq.s32.totalorder %s30, 0
      %p71 = por %p69, %p70
      %p72 = scmp.ne.s32.totalorder %s64, %s66
      %p73 = scmp.eq.s32.totalorder %s35, 1
      %p74 = por %p72, %p73
      %p75 = scmp.ne.s32.totalorder %s66, %s67
      %p76 = scmp.eq.s32.totalorder %s35, 0
      %p77 = por %p75, %p76
      %p78 = scmp.ne.s32.totalorder %s66, %s67
      %p79 = scmp.eq.s32.totalorder %s36, 1
      %p80 = por %p78, %p79
      %p82 = scmp.ne.s32.totalorder %s67, %s81
      %p83 = scmp.eq.s32.totalorder %s36, 0
      %p84 = por %p82, %p83
      %s86 = sadd.s32 %s85, 1
      %p89 = scmp.eq.s32.totalorder %s30, 1
      %p90 = scmp.ne.s32.totalorder %s85, %s87
      %p91 = scmp.eq.s32.totalorder %s30, 0
      %p92 = por %p90, %p91
      %p93 = scmp.ne.s32.totalorder %s85, %s87
      %p94 = scmp.eq.s32.totalorder %s35, 1
      %p95 = por %p93, %p94
      %p96 = scmp.ne.s32.totalorder %s87, %s88
      %p97 = scmp.eq.s32.totalorder %s35, 0
      %p98 = por %p96, %p97
      %p99 = scmp.ne.s32.totalorder %s87, %s88
      %p100 = scmp.eq.s32.totalorder %s36, 1
      %p101 = por %p99, %p100
      %p103 = scmp.ne.s32.totalorder %s88, %s102
      %p104 = scmp.eq.s32.totalorder %s36, 0
      %p105 = por %p103, %p104
      %s107 = sadd.s32 %s106, 1
      %p110 = scmp.eq.s32.totalorder %s30, 1
      %p111 = scmp.ne.s32.totalorder %s106, %s108
      %p112 = scmp.eq.s32.totalorder %s30, 0
      %p113 = por %p111, %p112
      %p114 = scmp.ne.s32.totalorder %s106, %s108
      %p115 = scmp.eq.s32.totalorder %s35, 1
      %p116 = por %p114, %p115
      %p117 = scmp.ne.s32.totalorder %s108, %s109
      %p118 = scmp.eq.s32.totalorder %s35, 0
      %p119 = por %p117, %p118
      %p120 = scmp.ne.s32.totalorder %s108, %s109
      %p121 = scmp.eq.s32.totalorder %s36, 1
      %p122 = por %p120, %p121
      %p124 = scmp.ne.s32.totalorder %s109, %s123
      %p125 = scmp.eq.s32.totalorder %s36, 0
      %p126 = por %p124, %p125
      %s128 = sadd.s32 %s127, 1
      %p131 = scmp.eq.s32.totalorder %s30, 1
      %p132 = scmp.ne.s32.totalorder %s127, %s129
      %p133 = scmp.eq.s32.totalorder %s30, 0
      %p134 = por %p132, %p133
      %p135 = scmp.ne.s32.totalorder %s127, %s129
      %p136 = scmp.eq.s32.totalorder %s35, 1
      %p137 = por %p135, %p136
      %p138 = scmp.ne.s32.totalorder %s129, %s130
      %p139 = scmp.eq.s32.totalorder %s35, 0
      %p140 = por %p138, %p139
      %p141 = scmp.ne.s32.totalorder %s129, %s130
      %p142 = scmp.eq.s32.totalorder %s36, 1
      %p143 = por %p141, %p142
      %p145 = scmp.ne.s32.totalorder %s130, %s144
      %p146 = scmp.eq.s32.totalorder %s36, 0
      %p147 = por %p145, %p146
      %s149 = sadd.s32 %s148, 1
      %p152 = scmp.eq.s32.totalorder %s30, 1
      %p153 = scmp.ne.s32.totalorder %s148, %s150
      %p154 = scmp.eq.s32.totalorder %s30, 0
      %p155 = por %p153, %p154
      %p156 = scmp.ne.s32.totalorder %s148, %s150
      %p157 = scmp.eq.s32.totalorder %s35, 1
      %p158 = por %p156, %p157
      %p159 = scmp.ne.s32.totalorder %s150, %s151
      %p160 = scmp.eq.s32.totalorder %s35, 0
      %p161 = por %p159, %p160
      %p162 = scmp.ne.s32.totalorder %s150, %s151
      %p163 = scmp.eq.s32.totalorder %s36, 1
      %p164 = por %p162, %p163
      %p166 = scmp.ne.s32.totalorder %s151, %s165
      %p167 = scmp.eq.s32.totalorder %s36, 0
      %p168 = por %p166, %p167
      %s170 = sadd.s32 %s169, 1
      %p173 = scmp.eq.s32.totalorder %s30, 1
      %p174 = scmp.ne.s32.totalorder %s169, %s171
      %p175 = scmp.eq.s32.totalorder %s30, 0
      %p176 = por %p174, %p175
      %p177 = scmp.ne.s32.totalorder %s169, %s171
      %p178 = scmp.eq.s32.totalorder %s35, 1
      %p179 = por %p177, %p178
      %p180 = scmp.ne.s32.totalorder %s171, %s172
      %p181 = scmp.eq.s32.totalorder %s35, 0
      %p182 = por %p180, %p181
      %p183 = scmp.ne.s32.totalorder %s171, %s172
      %p184 = scmp.eq.s32.totalorder %s36, 1
      %p185 = por %p183, %p184
      %p187 = scmp.ne.s32.totalorder %s172, %s186
      %p188 = scmp.eq.s32.totalorder %s36, 0
      %p189 = por %p187, %p188
      %s191 = sadd.s32 %s190, 1
      %p194 = scmp.eq.s32.totalorder %s30, 1
      %p195 = scmp.ne.s32.totalorder %s190, %s192
      %p196 = scmp.eq.s32.totalorder %s30, 0
      %p197 = por %p195, %p196
      %p198 = scmp.ne.s32.totalorder %s190, %s192
      %p199 = scmp.eq.s32.totalorder %s35, 1
      %p200 = por %p198, %p199
      %p201 = scmp.ne.s32.totalorder %s192, %s193
      %p202 = scmp.eq.s32.totalorder %s35, 0
      %p203 = por %p201, %p202
      %p204 = scmp.ne.s32.totalorder %s192, %s193
      %p205 = scmp.eq.s32.totalorder %s36, 1
      %p206 = por %p204, %p205
      %p208 = scmp.ne.s32.totalorder %s193, %s207
      %p209 = scmp.eq.s32.totalorder %s36, 0
      %p210 = por %p208, %p209
      %s212 = sadd.s32 %s211, 1
      %p215 = scmp.eq.s32.totalorder %s30, 1
      %p216 = scmp.ne.s32.totalorder %s211, %s213
      %p217 = scmp.eq.s32.totalorder %s30, 0
      %p218 = por %p216, %p217
      %p219 = scmp.ne.s32.totalorder %s211, %s213
      %p220 = scmp.eq.s32.totalorder %s35, 1
      %p221 = por %p219, %p220
      %p222 = scmp.ne.s32.totalorder %s213, %s214
      %p223 = scmp.eq.s32.totalorder %s35, 0
      %p224 = por %p222, %p223
      %p225 = scmp.ne.s32.totalorder %s213, %s214
      %p226 = scmp.eq.s32.totalorder %s36, 1
      %p227 = por %p225, %p226
      %p229 = scmp.ne.s32.totalorder %s214, %s228
      %p230 = scmp.eq.s32.totalorder %s36, 0
      %p231 = por %p229, %p230
      %s233 = sadd.s32 %s232, 1
      %p236 = scmp.eq.s32.totalorder %s30, 1
      %p237 = scmp.ne.s32.totalorder %s232, %s234
      %p238 = scmp.eq.s32.totalorder %s30, 0
      %p239 = por %p237, %p238
      %p240 = scmp.ne.s32.totalorder %s232, %s234
      %p241 = scmp.eq.s32.totalorder %s35, 1
      %p242 = por %p240, %p241
      %p243 = scmp.ne.s32.totalorder %s234, %s235
      %p244 = scmp.eq.s32.totalorder %s35, 0
      %p245 = por %p243, %p244
      %p246 = scmp.ne.s32.totalorder %s234, %s235
      %p247 = scmp.eq.s32.totalorder %s36, 1
      %p248 = por %p246, %p247
      %p250 = scmp.ne.s32.totalorder %s235, %s249
      %p251 = scmp.eq.s32.totalorder %s36, 0
      %p252 = por %p250, %p251
      %s254 = sadd.s32 %s253, 1
      %p257 = scmp.eq.s32.totalorder %s30, 1
      %p258 = scmp.ne.s32.totalorder %s253, %s255
      %p259 = scmp.eq.s32.totalorder %s30, 0
      %p260 = por %p258, %p259
      %p261 = scmp.ne.s32.totalorder %s253, %s255
      %p262 = scmp.eq.s32.totalorder %s35, 1
      %p263 = por %p261, %p262
      %p264 = scmp.ne.s32.totalorder %s255, %s256
      %p265 = scmp.eq.s32.totalorder %s35, 0
      %p266 = por %p264, %p265
      %p267 = scmp.ne.s32.totalorder %s255, %s256
      %p268 = scmp.eq.s32.totalorder %s36, 1
      %p269 = por %p267, %p268
      %p271 = scmp.ne.s32.totalorder %s256, %s270
      %p272 = scmp.eq.s32.totalorder %s36, 0
      %p273 = por %p271, %p272
      %s275 = sadd.s32 %s274, 1
      %p278 = scmp.eq.s32.totalorder %s30, 1
      %p279 = scmp.ne.s32.totalorder %s274, %s276
      %p280 = scmp.eq.s32.totalorder %s30, 0
      %p281 = por %p279, %p280
      %p282 = scmp.ne.s32.totalorder %s274, %s276
      %p283 = scmp.eq.s32.totalorder %s35, 1
      %p284 = por %p282, %p283
      %p285 = scmp.ne.s32.totalorder %s276, %s277
      %p286 = scmp.eq.s32.totalorder %s35, 0
      %p287 = por %p285, %p286
      %p288 = scmp.ne.s32.totalorder %s276, %s277
      %p289 = scmp.eq.s32.totalorder %s36, 1
      %p290 = por %p288, %p289
      %p292 = scmp.ne.s32.totalorder %s277, %s291
      %p293 = scmp.eq.s32.totalorder %s36, 0
      %p294 = por %p292, %p293
      %s296 = sadd.s32 %s295, 1
      %p299 = scmp.eq.s32.totalorder %s30, 1
      %p300 = scmp.ne.s32.totalorder %s295, %s297
      %p301 = scmp.eq.s32.totalorder %s30, 0
      %p302 = por %p300, %p301
      %p303 = scmp.ne.s32.totalorder %s295, %s297
      %p304 = scmp.eq.s32.totalorder %s35, 1
      %p305 = por %p303, %p304
      %p306 = scmp.ne.s32.totalorder %s297, %s298
      %p307 = scmp.eq.s32.totalorder %s35, 0
      %p308 = por %p306, %p307
      %p309 = scmp.ne.s32.totalorder %s297, %s298
      %p310 = scmp.eq.s32.totalorder %s36, 1
      %p311 = por %p309, %p310
      %p313 = scmp.ne.s32.totalorder %s298, %s312
      %p314 = scmp.eq.s32.totalorder %s36, 0
      %p315 = por %p313, %p314
      %s317 = sadd.s32 %s316, 1
      %p320 = scmp.eq.s32.totalorder %s30, 1
      %p321 = scmp.ne.s32.totalorder %s316, %s318
      %p322 = scmp.eq.s32.totalorder %s30, 0
      %p323 = por %p321, %p322
      %p324 = scmp.ne.s32.totalorder %s316, %s318
      %p325 = scmp.eq.s32.totalorder %s35, 1
      %p326 = por %p324, %p325
      %p327 = scmp.ne.s32.totalorder %s318, %s319
      %p328 = scmp.eq.s32.totalorder %s35, 0
      %p329 = por %p327, %p328
      %p330 = scmp.ne.s32.totalorder %s318, %s319
      %p331 = scmp.eq.s32.totalorder %s36, 1
      %p332 = por %p330, %p331
      %p334 = scmp.ne.s32.totalorder %s319, %s333
      %p335 = scmp.eq.s32.totalorder %s36, 0
      %p336 = por %p334, %p335
      %s338 = sadd.s32 %s337, 1
      %p341 = scmp.eq.s32.totalorder %s30, 1
      %p342 = scmp.ne.s32.totalorder %s337, %s339
      %p343 = scmp.eq.s32.totalorder %s30, 0
      %p344 = por %p342, %p343
      %p345 = scmp.ne.s32.totalorder %s337, %s339
      %p346 = scmp.eq.s32.totalorder %s35, 1
      %p347 = por %p345, %p346
      %p348 = scmp.ne.s32.totalorder %s339, %s340
      %p349 = scmp.eq.s32.totalorder %s35, 0
      %p350 = por %p348, %p349
      %p351 = scmp.ne.s32.totalorder %s339, %s340
      %p352 = scmp.eq.s32.totalorder %s36, 1
      %p353 = por %p351, %p352
      %p355 = scmp.ne.s32.totalorder %s340, %s354
      %p356 = scmp.eq.s32.totalorder %s36, 0
      %p357 = por %p355, %p356
      %s359 = sadd.s32 %s358, 1
      %p362 = scmp.eq.s32.totalorder %s30, 1
      %p363 = scmp.ne.s32.totalorder %s358, %s360
      %p364 = scmp.eq.s32.totalorder %s30, 0
      %p365 = por %p363, %p364
      %p366 = scmp.ne.s32.totalorder %s358, %s360
      %p367 = scmp.eq.s32.totalorder %s35, 1
      %p368 = por %p366, %p367
      %p369 = scmp.ne.s32.totalorder %s360, %s361
      %p370 = scmp.eq.s32.totalorder %s35, 0
      %p371 = por %p369, %p370
      %p372 = scmp.ne.s32.totalorder %s360, %s361
      %p373 = scmp.eq.s32.totalorder %s36, 1
      %p374 = por %p372, %p373
      %p376 = scmp.ne.s32.totalorder %s361, %s375
      %p377 = scmp.eq.s32.totalorder %s36, 0
      %p378 = por %p376, %p377
      %s380 = sadd.s32 %s379, 1
      %p383 = scmp.eq.s32.totalorder %s30, 1
      %p384 = scmp.ne.s32.totalorder %s379, %s381
      %p385 = scmp.eq.s32.totalorder %s30, 0
      %p386 = por %p384, %p385
      %p387 = scmp.ne.s32.totalorder %s379, %s381
      %p388 = scmp.eq.s32.totalorder %s35, 1
      %p389 = por %p387, %p388
      %p390 = scmp.ne.s32.totalorder %s381, %s382
      %p391 = scmp.eq.s32.totalorder %s35, 0
      %p392 = por %p390, %p391
      %p393 = scmp.ne.s32.totalorder %s381, %s382
      %p394 = scmp.eq.s32.totalorder %s36, 1
      %p395 = por %p393, %p394
      %p397 = scmp.ne.s32.totalorder %s382, %s396
      %p398 = scmp.eq.s32.totalorder %s36, 0
      %p399 = por %p397, %p398
      %s400 = ssub.s32 %s30, %s37
      %p401 = scmp.eq.s32.totalorder %s400, 0
      %s403 = sadd.s32 %s402, 1
      %s404 = scalar_select %p401, %s402, %s403
      %p407 = pneg %p401
      %p408 = scmp.eq.s32.totalorder %s30, 1
      %p409 = por %p407, %p408
      %p410 = scmp.ne.s32.totalorder %s402, %s405
      %p411 = scmp.eq.s32.totalorder %s30, 0
      %p412 = por %p410, %p411
      %p413 = scmp.ne.s32.totalorder %s402, %s405
      %p414 = scmp.eq.s32.totalorder %s35, 1
      %p415 = por %p413, %p414
      %p416 = scmp.ne.s32.totalorder %s405, %s406
      %p417 = scmp.eq.s32.totalorder %s35, 0
      %p418 = por %p416, %p417
      %p419 = scmp.ne.s32.totalorder %s405, %s406
      %p420 = scmp.eq.s32.totalorder %s36, 1
      %p421 = por %p419, %p420
      %p423 = scmp.ne.s32.totalorder %s406, %s422
      %p424 = scmp.eq.s32.totalorder %s36, 0
      %p425 = por %p423, %p424
      %p426 = scmp.le.s32.totalorder 1, %s30
      %p427 = scmp.lt.s32.totalorder %s30, 3
      %p428 = pnand %p426, %p427
      %p429 = pneg %p428
      // Predicated region
      $region9: #{tpu_custom_call.1} parent=5 // pred_check
        _
      $region10: #{tpu_custom_call.1} parent=5 // pred_check_branch
        %431 = sbr.rel (%p428) target = $region12
      $region11: #{tpu_custom_call.1} parent=5 // pred_region
        %s432 = ssub.s32 %s30, 1
        // Predicated region
        $region13: #{tpu_custom_call.1} parent=11 // pred_check
          %p433 = pneg %p77
        $region14: #{tpu_custom_call.1} parent=11 // pred_check_branch
          %435 = sbr.rel (%p433) target = $region16
        $region15: #{tpu_custom_call.1} parent=11 // pred_region
          _
        $region16: #{tpu_custom_call.1} parent=11 // pred_fallthru
          _
        // Predicated region
        $region17: #{tpu_custom_call.1} parent=11 // pred_check
          %p436 = pneg %p98
        $region18: #{tpu_custom_call.1} parent=11 // pred_check_branch
          %438 = sbr.rel (%p436) target = $region20
        $region19: #{tpu_custom_call.1} parent=11 // pred_region
          _
        $region20: #{tpu_custom_call.1} parent=11 // pred_fallthru
          _
        // Predicated region
        $region21: #{tpu_custom_call.1} parent=11 // pred_check
          %p439 = pneg %p119
        $region22: #{tpu_custom_call.1} parent=11 // pred_check_branch
          %441 = sbr.rel (%p439) target = $region24
        $region23: #{tpu_custom_call.1} parent=11 // pred_region
          %s443 = ssub.s32 768, 768
          %444 = vsyncadd [#allocation6], %s443
          %s445 = sshll.u32 [#allocation5], 4
          %s446 = int_to_ptr.vmem [resolvable:$true] %s445
          %451 = dma.hbm_to_vmem [thread:$0]  %s3, 768, %s446, [#allocation6], 128, 128, 8
        $region24: #{tpu_custom_call.1} parent=11 // pred_fallthru
          _
        // Predicated region
        $region25: #{tpu_custom_call.1} parent=11 // pred_check
          %p452 = pneg %p140
        $region26: #{tpu_custom_call.1} parent=11 // pred_check_branch
          %454 = sbr.rel (%p452) target = $region28
        $region27: #{tpu_custom_call.1} parent=11 // pred_region
          _
        $region28: #{tpu_custom_call.1} parent=11 // pred_fallthru
          _
        // Predicated region
        $region29: #{tpu_custom_call.1} parent=11 // pred_check
          %p455 = pneg %p161
        $region30: #{tpu_custom_call.1} parent=11 // pred_check_branch
          %457 = sbr.rel (%p455) target = $region32
        $region31: #{tpu_custom_call.1} parent=11 // pred_region
          _
        $region32: #{tpu_custom_call.1} parent=11 // pred_fallthru
          _
        // Predicated region
        $region33: #{tpu_custom_call.1} parent=11 // pred_check
          %p458 = pneg %p182
        $region34: #{tpu_custom_call.1} parent=11 // pred_check_branch
          %460 = sbr.rel (%p458) target = $region36
        $region35: #{tpu_custom_call.1} parent=11 // pred_region
          _
        $region36: #{tpu_custom_call.1} parent=11 // pred_fallthru
          _
        // Predicated region
        $region37: #{tpu_custom_call.1} parent=11 // pred_check
          %p461 = pneg %p203
        $region38: #{tpu_custom_call.1} parent=11 // pred_check_branch
          %463 = sbr.rel (%p461) target = $region40
        $region39: #{tpu_custom_call.1} parent=11 // pred_region
          _
        $region40: #{tpu_custom_call.1} parent=11 // pred_fallthru
          _
        // Predicated region
        $region41: #{tpu_custom_call.1} parent=11 // pred_check
          %p464 = pneg %p224
        $region42: #{tpu_custom_call.1} parent=11 // pred_check_branch
          %466 = sbr.rel (%p464) target = $region44
        $region43: #{tpu_custom_call.1} parent=11 // pred_region
          _
        $region44: #{tpu_custom_call.1} parent=11 // pred_fallthru
          _
        // Predicated region
        $region45: #{tpu_custom_call.1} parent=11 // pred_check
          %p467 = pneg %p245
        $region46: #{tpu_custom_call.1} parent=11 // pred_check_branch
          %469 = sbr.rel (%p467) target = $region48
        $region47: #{tpu_custom_call.1} parent=11 // pred_region
          _
        $region48: #{tpu_custom_call.1} parent=11 // pred_fallthru
          _
        // Predicated region
        $region49: #{tpu_custom_call.1} parent=11 // pred_check
          %p470 = pneg %p266
        $region50: #{tpu_custom_call.1} parent=11 // pred_check_branch
          %472 = sbr.rel (%p470) target = $region52
        $region51: #{tpu_custom_call.1} parent=11 // pred_region
          _
        $region52: #{tpu_custom_call.1} parent=11 // pred_fallthru
          _
        // Predicated region
        $region53: #{tpu_custom_call.1} parent=11 // pred_check
          %p473 = pneg %p287
        $region54: #{tpu_custom_call.1} parent=11 // pred_check_branch
          %475 = sbr.rel (%p473) target = $region56
        $region55: #{tpu_custom_call.1} parent=11 // pred_region
          _
        $region56: #{tpu_custom_call.1} parent=11 // pred_fallthru
          _
        // Predicated region
        $region57: #{tpu_custom_call.1} parent=11 // pred_check
          %p476 = pneg %p308
        $region58: #{tpu_custom_call.1} parent=11 // pred_check_branch
          %478 = sbr.rel (%p476) target = $region60
        $region59: #{tpu_custom_call.1} parent=11 // pred_region
          _
        $region60: #{tpu_custom_call.1} parent=11 // pred_fallthru
          _
        // Predicated region
        $region61: #{tpu_custom_call.1} parent=11 // pred_check
          %p479 = pneg %p329
        $region62: #{tpu_custom_call.1} parent=11 // pred_check_branch
          %481 = sbr.rel (%p479) target = $region64
        $region63: #{tpu_custom_call.1} parent=11 // pred_region
          %s483 = ssub.s32 2048, 2048
          %484 = vsyncadd [#allocation6], %s483
          %s485 = sshll.u32 [#allocation7], 4
          %s486 = int_to_ptr.vmem [resolvable:$true] %s485
          %491 = dma.hbm_to_vmem [thread:$0]  %s13, 2048, %s486, [#allocation6], 128, 128, 8
        $region64: #{tpu_custom_call.1} parent=11 // pred_fallthru
          _
        // Predicated region
        $region65: #{tpu_custom_call.1} parent=11 // pred_check
          %p492 = pneg %p350
        $region66: #{tpu_custom_call.1} parent=11 // pred_check_branch
          %494 = sbr.rel (%p492) target = $region68
        $region67: #{tpu_custom_call.1} parent=11 // pred_region
          _
        $region68: #{tpu_custom_call.1} parent=11 // pred_fallthru
          _
        // Predicated region
        $region69: #{tpu_custom_call.1} parent=11 // pred_check
          %p495 = pneg %p371
        $region70: #{tpu_custom_call.1} parent=11 // pred_check_branch
          %497 = sbr.rel (%p495) target = $region72
        $region71: #{tpu_custom_call.1} parent=11 // pred_region
          _
        $region72: #{tpu_custom_call.1} parent=11 // pred_fallthru
          _
        // Predicated region
        $region73: #{tpu_custom_call.1} parent=11 // pred_check
          %p498 = pneg %p392
        $region74: #{tpu_custom_call.1} parent=11 // pred_check_branch
          %500 = sbr.rel (%p498) target = $region76
        $region75: #{tpu_custom_call.1} parent=11 // pred_region
          _
        $region76: #{tpu_custom_call.1} parent=11 // pred_fallthru
          _
      $region12: #{tpu_custom_call.1} parent=5 // pred_fallthru
        _
      %p501 = scmp.lt.s32.totalorder %s30, 2
      // Predicated region
      $region77: #{tpu_custom_call.1} parent=5 // pred_check
        %p502 = pneg %p501
      $region78: #{tpu_custom_call.1} parent=5 // pred_check_branch
        %504 = sbr.rel (%p502) target = $region80
      $region79: #{tpu_custom_call.1} parent=5 // pred_region
        // Predicated region
        $region81: #{tpu_custom_call.1} parent=79 // pred_check
          %p505 = pneg %p50
        $region82: #{tpu_custom_call.1} parent=79 // pred_check_branch
          %507 = sbr.rel (%p505) target = $region84
        $region83: #{tpu_custom_call.1} parent=79 // pred_region
          %s508 = sand.u32 %s40, 1
          %s509 = scalar_lea.sflag [#allocation3], %s508
          %s510 = sand.u32 %s40, 1
          %s511 = smul.addr %s510, 128
          %s512 = scalar_lea.vmem [#allocation2], %s511
          %s514 = ssub.s32 2048, 2048
          %515 = vsyncadd %s509, %s514
          %s516 = smul.addr %s30, 16
          %s517 = smul.addr %s516, 128
          %s518 = scalar_lea.hbm %s0, %s517
          %s519 = sshll.u32 %s512, 4
          %s520 = int_to_ptr.vmem [resolvable:$true] %s519
          %525 = dma.hbm_to_vmem [thread:$0]  %s518, 2048, %s520, %s509, 512, 512, 32
        $region84: #{tpu_custom_call.1} parent=79 // pred_fallthru
          _
      $region80: #{tpu_custom_call.1} parent=5 // pred_fallthru
        _
      %p526 = scmp.le.s32.totalorder 1, %s30
      %p527 = scmp.lt.s32.totalorder %s30, 3
      %p528 = pnand %p526, %p527
      %p529 = pneg %p528
      // Predicated region
      $region85: #{tpu_custom_call.1} parent=5 // pred_check
        _
      $region86: #{tpu_custom_call.1} parent=5 // pred_check_branch
        %531 = sbr.rel (%p528) target = $region88
      $region87: #{tpu_custom_call.1} parent=5 // pred_region
        %s532 = ssub.s32 %s30, 1
        %s533 = sand.u32 %s43, 1
        %s534 = scalar_lea.sflag [#allocation3], %s533
        %s535 = sand.u32 %s43, 1
        %s536 = smul.addr %s535, 128
        %s537 = scalar_lea.vmem [#allocation2], %s536
        // Predicated region
        $region89: #{tpu_custom_call.1} parent=87 // pred_check
          %p538 = pneg %p56
        $region90: #{tpu_custom_call.1} parent=87 // pred_check_branch
          %540 = sbr.rel (%p538) target = $region92
        $region91: #{tpu_custom_call.1} parent=87 // pred_region
          %541 = dma.done %s534, 2048
        $region92: #{tpu_custom_call.1} parent=87 // pred_fallthru
          _
        // Predicated region
        $region93: #{tpu_custom_call.1} parent=87 // pred_check
          %p542 = pneg %p119
        $region94: #{tpu_custom_call.1} parent=87 // pred_check_branch
          %544 = sbr.rel (%p542) target = $region96
        $region95: #{tpu_custom_call.1} parent=87 // pred_region
          %545 = dma.done [#allocation6], 768
        $region96: #{tpu_custom_call.1} parent=87 // pred_fallthru
          _
        // Predicated region
        $region97: #{tpu_custom_call.1} parent=87 // pred_check
          %p546 = pneg %p329
        $region98: #{tpu_custom_call.1} parent=87 // pred_check_branch
          %548 = sbr.rel (%p546) target = $region100
        $region99: #{tpu_custom_call.1} parent=87 // pred_region
          %549 = dma.done [#allocation6], 2048
        $region100: #{tpu_custom_call.1} parent=87 // pred_fallthru
          _
        %s550 = sand.u32 %s43, 1
        %s551 = scalar_lea.sflag [#allocation3], %s550
        %s552 = sand.u32 %s43, 1
        %s553 = smul.addr %s552, 128
        %s554 = scalar_lea.vmem [#allocation2], %s553
        %p555 = pneg %p56
        %p556 = pneg %p53
        %p557 = pneg %p77
        %p558 = pneg %p74
        %p559 = pneg %p98
        %p560 = pneg %p95
        %p561 = pneg %p119
        %p562 = pneg %p116
        %p563 = pneg %p140
        %p564 = pneg %p137
        %p565 = pneg %p161
        %p566 = pneg %p158
        %p567 = pneg %p182
        %p568 = pneg %p179
        %p569 = pneg %p203
        %p570 = pneg %p200
        %p571 = pneg %p224
        %p572 = pneg %p221
        %p573 = pneg %p245
        %p574 = pneg %p242
        %p575 = pneg %p266
        %p576 = pneg %p263
        %p577 = pneg %p287
        %p578 = pneg %p284
        %p579 = pneg %p308
        %p580 = pneg %p305
        %p581 = pneg %p329
        %p582 = pneg %p326
        %p583 = pneg %p350
        %p584 = pneg %p347
        %p585 = pneg %p371
        %p586 = pneg %p368
        %p587 = pneg %p392
        %p588 = pneg %p389
        %p589 = pneg %p418
        %p590 = pneg %p415
        %s591 = sand.u32 %s405, 1
        %s592 = scalar_lea.sflag [#allocation4], %s591
        %s593 = sand.u32 %s405, 1
        %s594 = smul.addr %s593, 128
        %s595 = scalar_lea.vmem [#allocation8], %s594
        %v596 = vld [vmem:[%s537] sm:$0xff]
        %v597 = vld [vmem:[%s537 + $0x8] sm:$0xff]
        %v598 = vld [vmem:[%s537 + $0x10] sm:$0xff]
        %v599 = vld [vmem:[%s537 + $0x18] sm:$0xff]
        %v600 = vld [vmem:[%s537 + $0x20] sm:$0xff]
        %v601 = vld [vmem:[%s537 + $0x28] sm:$0xff]
        %v602 = vld [vmem:[%s537 + $0x30] sm:$0xff]
        %v603 = vld [vmem:[%s537 + $0x38] sm:$0xff]
        %v604 = vld [vmem:[%s537 + $0x40] sm:$0xff]
        %v605 = vld [vmem:[%s537 + $0x48] sm:$0xff]
        %v606 = vld [vmem:[%s537 + $0x50] sm:$0xff]
        %v607 = vld [vmem:[%s537 + $0x58] sm:$0xff]
        %v608 = vld [vmem:[%s537 + $0x60] sm:$0xff]
        %v609 = vld [vmem:[%s537 + $0x68] sm:$0xff]
        %v610 = vld [vmem:[%s537 + $0x70] sm:$0xff]
        %v611 = vld [vmem:[%s537 + $0x78] sm:$0xff]
        %v612 = vld [vmem:[%s1] sm:$0xff]
        %v613 = vld [vmem:[%s1 + $0x8] sm:$0xff]
        %v614 = vld [vmem:[%s1 + $0x10] sm:$0xff]
        %v615 = vld [vmem:[%s1 + $0x18] sm:$0xff]
        %v616 = vld [vmem:[%s1 + $0x20] sm:$0xff]
        %v617 = vld [vmem:[%s1 + $0x28] sm:$0xff]
        %v618 = vld [vmem:[%s1 + $0x30] sm:$0xff]
        %v619 = vld [vmem:[%s1 + $0x38] sm:$0xff]
        %v620 = vld [vmem:[%s1 + $0x40] sm:$0xff]
        %v621 = vld [vmem:[%s1 + $0x48] sm:$0xff]
        %v622 = vld [vmem:[%s1 + $0x50] sm:$0xff]
        %v623 = vld [vmem:[%s1 + $0x58] sm:$0xff]
        %v624 = vld [vmem:[%s1 + $0x60] sm:$0xff]
        %v625 = vld [vmem:[%s1 + $0x68] sm:$0xff]
        %v626 = vld [vmem:[%s1 + $0x70] sm:$0xff]
        %v627 = vld [vmem:[%s1 + $0x78] sm:$0xff]
        %v628 = vld [vmem:[%s1 + $0x80] sm:$0xff]
        %v629 = vld [vmem:[%s1 + $0x88] sm:$0xff]
        %v630 = vld [vmem:[%s1 + $0x90] sm:$0xff]
        %v631 = vld [vmem:[%s1 + $0x98] sm:$0xff]
        %v632 = vld [vmem:[%s1 + $0xa0] sm:$0xff]
        %v633 = vld [vmem:[%s1 + $0xa8] sm:$0xff]
        %v634 = vld [vmem:[%s1 + $0xb0] sm:$0xff]
        %v635 = vld [vmem:[%s1 + $0xb8] sm:$0xff]
        %v636 = vld [vmem:[%s1 + $0xc0] sm:$0xff]
        %v637 = vld [vmem:[%s1 + $0xc8] sm:$0xff]
        %v638 = vld [vmem:[%s1 + $0xd0] sm:$0xff]
        %v639 = vld [vmem:[%s1 + $0xd8] sm:$0xff]
        %v640 = vld [vmem:[%s1 + $0xe0] sm:$0xff]
        %v641 = vld [vmem:[%s1 + $0xe8] sm:$0xff]
        %v642 = vld [vmem:[%s1 + $0xf0] sm:$0xff]
        %v643 = vld [vmem:[%s1 + $0xf8] sm:$0xff]
        %v644 = vld [vmem:[%s1 + $0x100] sm:$0xff]
        %v645 = vld [vmem:[%s1 + $0x108] sm:$0xff]
        %v646 = vld [vmem:[%s1 + $0x110] sm:$0xff]
        %v647 = vld [vmem:[%s1 + $0x118] sm:$0xff]
        %v648 = vld [vmem:[%s1 + $0x120] sm:$0xff]
        %v649 = vld [vmem:[%s1 + $0x128] sm:$0xff]
        %v650 = vld [vmem:[%s1 + $0x130] sm:$0xff]
        %v651 = vld [vmem:[%s1 + $0x138] sm:$0xff]
        %v652 = vld [vmem:[%s1 + $0x140] sm:$0xff]
        %v653 = vld [vmem:[%s1 + $0x148] sm:$0xff]
        %v654 = vld [vmem:[%s1 + $0x150] sm:$0xff]
        %v655 = vld [vmem:[%s1 + $0x158] sm:$0xff]
        %v656 = vld [vmem:[%s1 + $0x160] sm:$0xff]
        %v657 = vld [vmem:[%s1 + $0x168] sm:$0xff]
        %v658 = vld [vmem:[%s1 + $0x170] sm:$0xff]
        %v659 = vld [vmem:[%s1 + $0x178] sm:$0xff]
        %v660 = vld [vmem:[%s1 + $0x180] sm:$0xff]
        %v661 = vld [vmem:[%s1 + $0x188] sm:$0xff]
        %v662 = vld [vmem:[%s1 + $0x190] sm:$0xff]
        %v663 = vld [vmem:[%s1 + $0x198] sm:$0xff]
        %v664 = vld [vmem:[%s1 + $0x1a0] sm:$0xff]
        %v665 = vld [vmem:[%s1 + $0x1a8] sm:$0xff]
        %v666 = vld [vmem:[%s1 + $0x1b0] sm:$0xff]
        %v667 = vld [vmem:[%s1 + $0x1b8] sm:$0xff]
        %v668 = vld [vmem:[%s1 + $0x1c0] sm:$0xff]
        %v669 = vld [vmem:[%s1 + $0x1c8] sm:$0xff]
        %v670 = vld [vmem:[%s1 + $0x1d0] sm:$0xff]
        %v671 = vld [vmem:[%s1 + $0x1d8] sm:$0xff]
        %v672 = vld [vmem:[%s1 + $0x1e0] sm:$0xff]
        %v673 = vld [vmem:[%s1 + $0x1e8] sm:$0xff]
        %v674 = vld [vmem:[%s1 + $0x1f0] sm:$0xff]
        %v675 = vld [vmem:[%s1 + $0x1f8] sm:$0xff]
        %v676 = vld [vmem:[%s2] sm:$0x1]
        %v678 = vlaneseq
        %v679 = vshrl.u32 %v678, 7
        %v680 = vsub.s32 0, %v679
        %v681 = vrot.slane %v676, %v680
        %683 = vmatprep.subr.mxu0 0.0
        %684 = vmatpush1.msra.mxu0 %v612
        %685 = vmatprep.subr.mxu0 0.0
        %686 = vmatpush1.msra.mxu0 %v613
        %687 = vmatprep.subr.mxu0 0.0
        %688 = vmatpush1.msra.mxu0 %v614
        %689 = vmatprep.subr.mxu0 0.0
        %690 = vmatpush1.msra.mxu0 %v615
        %691 = vmatprep.subr.mxu0 0.0
        %692 = vmatpush1.msra.mxu0 %v616
        %693 = vmatprep.subr.mxu0 0.0
        %694 = vmatpush1.msra.mxu0 %v617
        %695 = vmatprep.subr.mxu0 0.0
        %696 = vmatpush1.msra.mxu0 %v618
        %697 = vmatprep.subr.mxu0 0.0
        %698 = vmatpush1.msra.mxu0 %v619
        %699 = vmatprep.subr.mxu0 0.0
        %700 = vmatpush1.msra.mxu0 %v620
        %701 = vmatprep.subr.mxu0 0.0
        %702 = vmatpush1.msra.mxu0 %v621
        %703 = vmatprep.subr.mxu0 0.0
        %704 = vmatpush1.msra.mxu0 %v622
        %705 = vmatprep.subr.mxu0 0.0
        %706 = vmatpush1.msra.mxu0 %v623
        %707 = vmatprep.subr.mxu0 0.0
        %708 = vmatpush1.msra.mxu0 %v624
        %709 = vmatprep.subr.mxu0 0.0
        %710 = vmatpush1.msra.mxu0 %v625
        %711 = vmatprep.subr.mxu0 0.0
        %712 = vmatpush1.msra.mxu0 %v626
        %713 = vmatprep.subr.mxu0 0.0
        %714 = vmatpush1.msra.mxu0 %v627
        %715 = vmatprep.subr.mxu0 0.0
        %716 = vmatpush1.msra.mxu0 %v628
        %717 = vmatprep.subr.mxu0 0.0
        %718 = vmatpush1.msra.mxu0 %v629
        %719 = vmatprep.subr.mxu0 0.0
        %720 = vmatpush1.msra.mxu0 %v630
        %721 = vmatprep.subr.mxu0 0.0
        %722 = vmatpush1.msra.mxu0 %v631
        %723 = vmatprep.subr.mxu0 0.0
        %724 = vmatpush1.msra.mxu0 %v632
        %725 = vmatprep.subr.mxu0 0.0
        %726 = vmatpush1.msra.mxu0 %v633
        %727 = vmatprep.subr.mxu0 0.0
        %728 = vmatpush1.msra.mxu0 %v634
        %729 = vmatprep.subr.mxu0 0.0
        %730 = vmatpush1.msra.mxu0 %v635
        %731 = vmatprep.subr.mxu0 0.0
        %732 = vmatpush1.msra.mxu0 %v636
        %733 = vmatprep.subr.mxu0 0.0
        %734 = vmatpush1.msra.mxu0 %v637
        %735 = vmatprep.subr.mxu0 0.0
        %736 = vmatpush1.msra.mxu0 %v638
        %737 = vmatprep.subr.mxu0 0.0
        %738 = vmatpush1.msra.mxu0 %v639
        %739 = vmatprep.subr.mxu0 0.0
        %740 = vmatpush1.msra.mxu0 %v640
        %741 = vmatprep.subr.mxu0 0.0
        %742 = vmatpush1.msra.mxu0 %v641
        %743 = vmatprep.subr.mxu0 0.0
        %744 = vmatpush1.msra.mxu0 %v642
        %745 = vmatprep.subr.mxu0 0.0
        %746 = vmatpush1.msra.mxu0 %v643
        %747 = vmatprep.mubr.f32.mxu0 %v597
        %748 = vmatmul.mubr.f32.gmra.mrb[0].mxu0 %v596
        %v749 = vpop.f32.mrb[0].mxu0
        %v750 = vadd.f32 %v681, %v749
        %v751 = vpop.f32.mrb[0].mxu0
        %752 = vmatprep.mubr.f32.mxu0 %v601
        %753 = vmatmul.mubr.f32.gmra.mrb[0].mxu0 %v600
        %v754 = vpop.f32.mrb[0].mxu0
        %v755 = vadd.f32 %v681, %v754
        %v756 = vpop.f32.mrb[0].mxu0
        %757 = vmatprep.mubr.f32.mxu0 %v605
        %758 = vmatmul.mubr.f32.gmra.mrb[0].mxu0 %v604
        %v759 = vpop.f32.mrb[0].mxu0
        %v760 = vadd.f32 %v681, %v759
        %v761 = vpop.f32.mrb[0].mxu0
        %762 = vmatprep.mubr.f32.mxu0 %v609
        %763 = vmatmul.mubr.f32.gmra.mrb[0].mxu0 %v608
        %v764 = vpop.f32.mrb[0].mxu0
        %v765 = vadd.f32 %v681, %v764
        %v766 = vpop.f32.mrb[0].mxu0
        %767 = vdwg.mxu0
        %768 = vmatprep.subr.mxu0 0.0
        %769 = vmatpush1.msra.mxu0 %v644
        %770 = vmatprep.subr.mxu0 0.0
        %771 = vmatpush1.msra.mxu0 %v645
        %772 = vmatprep.subr.mxu0 0.0
        %773 = vmatpush1.msra.mxu0 %v646
        %774 = vmatprep.subr.mxu0 0.0
        %775 = vmatpush1.msra.mxu0 %v647
        %776 = vmatprep.subr.mxu0 0.0
        %777 = vmatpush1.msra.mxu0 %v648
        %778 = vmatprep.subr.mxu0 0.0
        %779 = vmatpush1.msra.mxu0 %v649
        %780 = vmatprep.subr.mxu0 0.0
        %781 = vmatpush1.msra.mxu0 %v650
        %782 = vmatprep.subr.mxu0 0.0
        %783 = vmatpush1.msra.mxu0 %v651
        %784 = vmatprep.subr.mxu0 0.0
        %785 = vmatpush1.msra.mxu0 %v652
        %786 = vmatprep.subr.mxu0 0.0
        %787 = vmatpush1.msra.mxu0 %v653
        %788 = vmatprep.subr.mxu0 0.0
        %789 = vmatpush1.msra.mxu0 %v654
        %790 = vmatprep.subr.mxu0 0.0
        %791 = vmatpush1.msra.mxu0 %v655
        %792 = vmatprep.subr.mxu0 0.0
        %793 = vmatpush1.msra.mxu0 %v656
        %794 = vmatprep.subr.mxu0 0.0
        %795 = vmatpush1.msra.mxu0 %v657
        %796 = vmatprep.subr.mxu0 0.0
        %797 = vmatpush1.msra.mxu0 %v658
        %798 = vmatprep.subr.mxu0 0.0
        %799 = vmatpush1.msra.mxu0 %v659
        %800 = vmatprep.subr.mxu0 0.0
        %801 = vmatpush1.msra.mxu0 %v660
        %802 = vmatprep.subr.mxu0 0.0
        %803 = vmatpush1.msra.mxu0 %v661
        %804 = vmatprep.subr.mxu0 0.0
        %805 = vmatpush1.msra.mxu0 %v662
        %806 = vmatprep.subr.mxu0 0.0
        %807 = vmatpush1.msra.mxu0 %v663
        %808 = vmatprep.subr.mxu0 0.0
        %809 = vmatpush1.msra.mxu0 %v664
        %810 = vmatprep.subr.mxu0 0.0
        %811 = vmatpush1.msra.mxu0 %v665
        %812 = vmatprep.subr.mxu0 0.0
        %813 = vmatpush1.msra.mxu0 %v666
        %814 = vmatprep.subr.mxu0 0.0
        %815 = vmatpush1.msra.mxu0 %v667
        %816 = vmatprep.subr.mxu0 0.0
        %817 = vmatpush1.msra.mxu0 %v668
        %818 = vmatprep.subr.mxu0 0.0
        %819 = vmatpush1.msra.mxu0 %v669
        %820 = vmatprep.subr.mxu0 0.0
        %821 = vmatpush1.msra.mxu0 %v670
        %822 = vmatprep.subr.mxu0 0.0
        %823 = vmatpush1.msra.mxu0 %v671
        %824 = vmatprep.subr.mxu0 0.0
        %825 = vmatpush1.msra.mxu0 %v672
        %826 = vmatprep.subr.mxu0 0.0
        %827 = vmatpush1.msra.mxu0 %v673
        %828 = vmatprep.subr.mxu0 0.0
        %829 = vmatpush1.msra.mxu0 %v674
        %830 = vmatprep.subr.mxu0 0.0
        %831 = vmatpush1.msra.mxu0 %v675
        %832 = vmatprep.mubr.f32.mxu0 %v599
        %833 = vmatmul.mubr.f32.gmra.mrb[0].mxu0 %v598
        %v834 = vpop.f32.mrb[0].mxu0
        %v835 = vadd.f32 %v750, %v834
        %v836 = vpop.f32.mrb[0].mxu0
        %837 = vmatprep.mubr.f32.mxu0 %v603
        %838 = vmatmul.mubr.f32.gmra.mrb[0].mxu0 %v602
        %v839 = vpop.f32.mrb[0].mxu0
        %v840 = vadd.f32 %v755, %v839
        %v841 = vpop.f32.mrb[0].mxu0
        %842 = vmatprep.mubr.f32.mxu0 %v607
        %843 = vmatmul.mubr.f32.gmra.mrb[0].mxu0 %v606
        %v844 = vpop.f32.mrb[0].mxu0
        %v845 = vadd.f32 %v760, %v844
        %v846 = vpop.f32.mrb[0].mxu0
        %847 = vmatprep.mubr.f32.mxu0 %v611
        %848 = vmatmul.mubr.f32.gmra.mrb[0].mxu0 %v610
        %v849 = vpop.f32.mrb[0].mxu0
        %v850 = vadd.f32 %v765, %v849
        %v851 = vpop.f32.mrb[0].mxu0
        %852 = vdwg.mxu0
        %v853 = vld [vmem:[#allocation5] sm:$0xff]
        %v854 = vld [vmem:[#allocation5 + $0x8] sm:$0x7f]
        %vm855 = vcmask 261120
        %v857 = vsel %vm855, %v853, 0
        %v860 = vsel %vm855, %v854, 0
        %862 = vmatprep.subr.mxu0 0.0
        %863 = vmatpush1.msra.mxu0 %v835
        %864 = vmatprep.subr.mxu0 0.0
        %865 = vmatpush1.msra.mxu0 %v840
        %866 = vmatprep.subr.mxu0 0.0
        %867 = vmatpush1.msra.mxu0 %v845
        %868 = vmatprep.subr.mxu0 0.0
        %869 = vmatpush1.msra.mxu0 %v850
        %870 = vmatprep.subr.mxu0 0.0
        %871 = vmatpush1.msra.mxu0 0.0
        %872 = vmatprep.subr.mxu0 0.0
        %873 = vmatpush1.msra.mxu0 0.0
        %874 = vmatprep.subr.mxu0 0.0
        %875 = vmatpush1.msra.mxu0 0.0
        %876 = vmatprep.subr.mxu0 0.0
        %877 = vmatpush1.msra.mxu0 0.0
        %878 = vmatprep.subr.mxu0 0.0
        %879 = vmatpush1.msra.mxu0 0.0
        %880 = vmatprep.subr.mxu0 0.0
        %881 = vmatpush1.msra.mxu0 0.0
        %882 = vmatprep.subr.mxu0 0.0
        %883 = vmatpush1.msra.mxu0 0.0
        %884 = vmatprep.subr.mxu0 0.0
        %885 = vmatpush1.msra.mxu0 0.0
        %886 = vmatprep.subr.mxu0 0.0
        %887 = vmatpush1.msra.mxu0 0.0
        %888 = vmatprep.subr.mxu0 0.0
        %889 = vmatpush1.msra.mxu0 0.0
        %890 = vmatprep.subr.mxu0 0.0
        %891 = vmatpush1.msra.mxu0 0.0
        %892 = vmatprep.subr.mxu0 0.0
        %893 = vmatpush1.msra.mxu0 0.0
        %894 = vmatprep.subr.mxu0 0.0
        %895 = vmatpush1.msra.mxu0 0.0
        %896 = vmatprep.subr.mxu0 0.0
        %897 = vmatpush1.msra.mxu0 0.0
        %898 = vmatprep.subr.mxu0 0.0
        %899 = vmatpush1.msra.mxu0 0.0
        %900 = vmatprep.subr.mxu0 0.0
        %901 = vmatpush1.msra.mxu0 0.0
        %902 = vmatprep.subr.mxu0 0.0
        %903 = vmatpush1.msra.mxu0 0.0
        %904 = vmatprep.subr.mxu0 0.0
        %905 = vmatpush1.msra.mxu0 0.0
        %906 = vmatprep.subr.mxu0 0.0
        %907 = vmatpush1.msra.mxu0 0.0
        %908 = vmatprep.subr.mxu0 0.0
        %909 = vmatpush1.msra.mxu0 0.0
        %910 = vmatprep.subr.mxu0 0.0
        %911 = vmatpush1.msra.mxu0 0.0
        %912 = vmatprep.subr.mxu0 0.0
        %913 = vmatpush1.msra.mxu0 0.0
        %914 = vmatprep.subr.mxu0 0.0
        %915 = vmatpush1.msra.mxu0 0.0
        %916 = vmatprep.subr.mxu0 0.0
        %917 = vmatpush1.msra.mxu0 0.0
        %918 = vmatprep.subr.mxu0 0.0
        %919 = vmatpush1.msra.mxu0 0.0
        %920 = vmatprep.subr.mxu0 0.0
        %921 = vmatpush1.msra.mxu0 0.0
        %922 = vmatprep.subr.mxu0 0.0
        %923 = vmatpush1.msra.mxu0 0.0
        %924 = vmatprep.subr.mxu0 0.0
        %925 = vmatpush1.msra.mxu0 0.0
        %926 = vmatprep.mubr.f32.mxu0 0.0
        %927 = vmatmul.mubr.f32.gmra.mrb[0].mxu0 %v857
        %v928 = vpop.f32.mrb[0].mxu0
        %v929 = vadd.f32 0.0, %v928
        %v930 = vpop.f32.mrb[0].mxu0
        %931 = vmatprep.mubr.f32.mxu0 0.0
        %932 = vmatmul.mubr.f32.gmra.mrb[0].mxu0 %v860
        %v933 = vpop.f32.mrb[0].mxu0
        %v934 = vadd.f32 0.0, %v933
        %v935 = vpop.f32.mrb[0].mxu0
        %936 = vdwg.mxu0
        %v937 = vld [vmem:[%s4] sm:$0xff]
        %v938 = vld [vmem:[%s4 + $0x8] sm:$0xff]
        %v939 = vld [vmem:[%s4 + $0x10] sm:$0xff]
        %v940 = vld [vmem:[%s4 + $0x18] sm:$0xff]
        %v941 = vld [vmem:[%s4 + $0x20] sm:$0xff]
        %v942 = vld [vmem:[%s4 + $0x28] sm:$0xff]
        %v943 = vld [vmem:[%s4 + $0x30] sm:$0xff]
        %v944 = vld [vmem:[%s4 + $0x38] sm:$0xff]
        %v945 = vld [vmem:[%s4 + $0x40] sm:$0xff]
        %v946 = vld [vmem:[%s4 + $0x48] sm:$0xff]
        %v947 = vld [vmem:[%s4 + $0x50] sm:$0xff]
        %v948 = vld [vmem:[%s4 + $0x58] sm:$0xff]
        %v949 = vld [vmem:[%s4 + $0x60] sm:$0xff]
        %v950 = vld [vmem:[%s4 + $0x68] sm:$0xff]
        %v951 = vld [vmem:[%s4 + $0x70] sm:$0xff]
        %v952 = vld [vmem:[%s4 + $0x78] sm:$0xff]
        %s953 = scalar_lea.vmem [#allocation5], 16
        %v954 = vld [vmem:[%s953] sm:$0xff]
        %v955 = vld [vmem:[%s953 + $0x8] sm:$0x7f]
        %v957 = vsel %vm855, %v954, 0
        %v960 = vsel %vm855, %v955, 0
        %962 = vmatprep.subr.mxu0 0.0
        %963 = vmatpush1.msra.mxu0 %v835
        %964 = vmatprep.subr.mxu0 0.0
        %965 = vmatpush1.msra.mxu0 %v840
        %966 = vmatprep.subr.mxu0 0.0
        %967 = vmatpush1.msra.mxu0 %v845
        %968 = vmatprep.subr.mxu0 0.0
        %969 = vmatpush1.msra.mxu0 %v850
        %970 = vmatprep.subr.mxu0 0.0
        %971 = vmatpush1.msra.mxu0 0.0
        %972 = vmatprep.subr.mxu0 0.0
        %973 = vmatpush1.msra.mxu0 0.0
        %974 = vmatprep.subr.mxu0 0.0
        %975 = vmatpush1.msra.mxu0 0.0
        %976 = vmatprep.subr.mxu0 0.0
        %977 = vmatpush1.msra.mxu0 0.0
        %978 = vmatprep.subr.mxu0 0.0
        %979 = vmatpush1.msra.mxu0 0.0
        %980 = vmatprep.subr.mxu0 0.0
        %981 = vmatpush1.msra.mxu0 0.0
        %982 = vmatprep.subr.mxu0 0.0
        %983 = vmatpush1.msra.mxu0 0.0
        %984 = vmatprep.subr.mxu0 0.0
        %985 = vmatpush1.msra.mxu0 0.0
        %986 = vmatprep.subr.mxu0 0.0
        %987 = vmatpush1.msra.mxu0 0.0
        %988 = vmatprep.subr.mxu0 0.0
        %989 = vmatpush1.msra.mxu0 0.0
        %990 = vmatprep.subr.mxu0 0.0
        %991 = vmatpush1.msra.mxu0 0.0
        %992 = vmatprep.subr.mxu0 0.0
        %993 = vmatpush1.msra.mxu0 0.0
        %994 = vmatprep.subr.mxu0 0.0
        %995 = vmatpush1.msra.mxu0 0.0
        %996 = vmatprep.subr.mxu0 0.0
        %997 = vmatpush1.msra.mxu0 0.0
        %998 = vmatprep.subr.mxu0 0.0
        %999 = vmatpush1.msra.mxu0 0.0
        %1000 = vmatprep.subr.mxu0 0.0
        %1001 = vmatpush1.msra.mxu0 0.0
        %1002 = vmatprep.subr.mxu0 0.0
        %1003 = vmatpush1.msra.mxu0 0.0
        %1004 = vmatprep.subr.mxu0 0.0
        %1005 = vmatpush1.msra.mxu0 0.0
        %1006 = vmatprep.subr.mxu0 0.0
        %1007 = vmatpush1.msra.mxu0 0.0
        %1008 = vmatprep.subr.mxu0 0.0
        %1009 = vmatpush1.msra.mxu0 0.0
        %1010 = vmatprep.subr.mxu0 0.0
        %1011 = vmatpush1.msra.mxu0 0.0
        %1012 = vmatprep.subr.mxu0 0.0
        %1013 = vmatpush1.msra.mxu0 0.0
        %1014 = vmatprep.subr.mxu0 0.0
        %1015 = vmatpush1.msra.mxu0 0.0
        %1016 = vmatprep.subr.mxu0 0.0
        %1017 = vmatpush1.msra.mxu0 0.0
        %1018 = vmatprep.subr.mxu0 0.0
        %1019 = vmatpush1.msra.mxu0 0.0
        %1020 = vmatprep.subr.mxu0 0.0
        %1021 = vmatpush1.msra.mxu0 0.0
        %1022 = vmatprep.subr.mxu0 0.0
        %1023 = vmatpush1.msra.mxu0 0.0
        %1024 = vmatprep.subr.mxu0 0.0
        %1025 = vmatpush1.msra.mxu0 0.0
        %1026 = vmatprep.mubr.f32.mxu0 0.0
        %1027 = vmatmul.mubr.f32.gmra.mrb[0].mxu0 %v957
        %v1028 = vpop.f32.mrb[0].mxu0
        %v1029 = vadd.f32 0.0, %v1028
        %v1030 = vpop.f32.mrb[0].mxu0
        %1031 = vmatprep.mubr.f32.mxu0 0.0
        %1032 = vmatmul.mubr.f32.gmra.mrb[0].mxu0 %v960
        %v1033 = vpop.f32.mrb[0].mxu0
        %v1034 = vadd.f32 0.0, %v1033
        %v1035 = vpop.f32.mrb[0].mxu0
        %1036 = vdwg.mxu0
        %s1037 = scalar_lea.vmem %s4, 128
        %v1038 = vld [vmem:[%s1037] sm:$0xff]
        %v1039 = vld [vmem:[%s1037 + $0x8] sm:$0xff]
        %v1040 = vld [vmem:[%s1037 + $0x10] sm:$0xff]
        %v1041 = vld [vmem:[%s1037 + $0x18] sm:$0xff]
        %v1042 = vld [vmem:[%s1037 + $0x20] sm:$0xff]
        %v1043 = vld [vmem:[%s1037 + $0x28] sm:$0xff]
        %v1044 = vld [vmem:[%s1037 + $0x30] sm:$0xff]
        %v1045 = vld [vmem:[%s1037 + $0x38] sm:$0xff]
        %v1046 = vld [vmem:[%s1037 + $0x40] sm:$0xff]
        %v1047 = vld [vmem:[%s1037 + $0x48] sm:$0xff]
        %v1048 = vld [vmem:[%s1037 + $0x50] sm:$0xff]
        %v1049 = vld [vmem:[%s1037 + $0x58] sm:$0xff]
        %v1050 = vld [vmem:[%s1037 + $0x60] sm:$0xff]
        %v1051 = vld [vmem:[%s1037 + $0x68] sm:$0xff]
        %v1052 = vld [vmem:[%s1037 + $0x70] sm:$0xff]
        %v1053 = vld [vmem:[%s1037 + $0x78] sm:$0xff]
        %1054 = vmatprep.subr.mxu0 0.0
        %1055 = vmatpush1.msra.mxu0 %v1038
        %1056 = vmatprep.subr.mxu0 0.0
        %1057 = vmatpush1.msra.mxu0 %v1039
        %1058 = vmatprep.subr.mxu0 0.0
        %1059 = vmatpush1.msra.mxu0 %v1040
        %1060 = vmatprep.subr.mxu0 0.0
        %1061 = vmatpush1.msra.mxu0 %v1041
        %1062 = vmatprep.subr.mxu0 0.0
        %1063 = vmatpush1.msra.mxu0 %v1042
        %1064 = vmatprep.subr.mxu0 0.0
        %1065 = vmatpush1.msra.mxu0 %v1043
        %1066 = vmatprep.subr.mxu0 0.0
        %1067 = vmatpush1.msra.mxu0 %v1044
        %1068 = vmatprep.subr.mxu0 0.0
        %1069 = vmatpush1.msra.mxu0 %v1045
        %1070 = vmatprep.subr.mxu0 0.0
        %1071 = vmatpush1.msra.mxu0 %v1046
        %1072 = vmatprep.subr.mxu0 0.0
        %1073 = vmatpush1.msra.mxu0 %v1047
        %1074 = vmatprep.subr.mxu0 0.0
        %1075 = vmatpush1.msra.mxu0 %v1048
        %1076 = vmatprep.subr.mxu0 0.0
        %1077 = vmatpush1.msra.mxu0 %v1049
        %1078 = vmatprep.subr.mxu0 0.0
        %1079 = vmatpush1.msra.mxu0 %v1050
        %1080 = vmatprep.subr.mxu0 0.0
        %1081 = vmatpush1.msra.mxu0 %v1051
        %1082 = vmatprep.subr.mxu0 0.0
        %1083 = vmatpush1.msra.mxu0 %v1052
        %1084 = vmatprep.subr.mxu0 0.0
        %1085 = vmatpush1.msra.mxu0 %v1053
        %1086 = vmatprep.subr.mxu0 0.0
        %1087 = vmatpush1.msra.mxu0 0.0
        %1088 = vmatprep.subr.mxu0 0.0
        %1089 = vmatpush1.msra.mxu0 0.0
        %1090 = vmatprep.subr.mxu0 0.0
        %1091 = vmatpush1.msra.mxu0 0.0
        %1092 = vmatprep.subr.mxu0 0.0
        %1093 = vmatpush1.msra.mxu0 0.0
        %1094 = vmatprep.subr.mxu0 0.0
        %1095 = vmatpush1.msra.mxu0 0.0
        %1096 = vmatprep.subr.mxu0 0.0
        %1097 = vmatpush1.msra.mxu0 0.0
        %1098 = vmatprep.subr.mxu0 0.0
        %1099 = vmatpush1.msra.mxu0 0.0
        %1100 = vmatprep.subr.mxu0 0.0
        %1101 = vmatpush1.msra.mxu0 0.0
        %1102 = vmatprep.subr.mxu0 0.0
        %1103 = vmatpush1.msra.mxu0 0.0
        %1104 = vmatprep.subr.mxu0 0.0
        %1105 = vmatpush1.msra.mxu0 0.0
        %1106 = vmatprep.subr.mxu0 0.0
        %1107 = vmatpush1.msra.mxu0 0.0
        %1108 = vmatprep.subr.mxu0 0.0
        %1109 = vmatpush1.msra.mxu0 0.0
        %1110 = vmatprep.subr.mxu0 0.0
        %1111 = vmatpush1.msra.mxu0 0.0
        %1112 = vmatprep.subr.mxu0 0.0
        %1113 = vmatpush1.msra.mxu0 0.0
        %1114 = vmatprep.subr.mxu0 0.0
        %1115 = vmatpush1.msra.mxu0 0.0
        %1116 = vmatprep.subr.mxu0 0.0
        %1117 = vmatpush1.msra.mxu0 0.0
        %1118 = vmatprep.mubr.f32.mxu0 0.0
        %1119 = vmatmul.mubr.f32.gmra.mrb[0].mxu0 %v1029
        %v1120 = vpop.f32.mrb[0].mxu0
        %v1121 = vadd.f32 0.0, %v1120
        %v1122 = vpop.f32.mrb[0].mxu0
        %1123 = vmatprep.mubr.f32.mxu0 0.0
        %1124 = vmatmul.mubr.f32.gmra.mrb[0].mxu0 %v1034
        %v1125 = vpop.f32.mrb[0].mxu0
        %v1126 = vadd.f32 0.0, %v1125
        %v1127 = vpop.f32.mrb[0].mxu0
        %1128 = vdwg.mxu0
        %1129 = vmatprep.subr.mxu0 0.0
        %1130 = vmatpush1.msra.mxu0 %v937
        %1131 = vmatprep.subr.mxu0 0.0
        %1132 = vmatpush1.msra.mxu0 %v938
        %1133 = vmatprep.subr.mxu0 0.0
        %1134 = vmatpush1.msra.mxu0 %v939
        %1135 = vmatprep.subr.mxu0 0.0
        %1136 = vmatpush1.msra.mxu0 %v940
        %1137 = vmatprep.subr.mxu0 0.0
        %1138 = vmatpush1.msra.mxu0 %v941
        %1139 = vmatprep.subr.mxu0 0.0
        %1140 = vmatpush1.msra.mxu0 %v942
        %1141 = vmatprep.subr.mxu0 0.0
        %1142 = vmatpush1.msra.mxu0 %v943
        %1143 = vmatprep.subr.mxu0 0.0
        %1144 = vmatpush1.msra.mxu0 %v944
        %1145 = vmatprep.subr.mxu0 0.0
        %1146 = vmatpush1.msra.mxu0 %v945
        %1147 = vmatprep.subr.mxu0 0.0
        %1148 = vmatpush1.msra.mxu0 %v946
        %1149 = vmatprep.subr.mxu0 0.0
        %1150 = vmatpush1.msra.mxu0 %v947
        %1151 = vmatprep.subr.mxu0 0.0
        %1152 = vmatpush1.msra.mxu0 %v948
        %1153 = vmatprep.subr.mxu0 0.0
        %1154 = vmatpush1.msra.mxu0 %v949
        %1155 = vmatprep.subr.mxu0 0.0
        %1156 = vmatpush1.msra.mxu0 %v950
        %1157 = vmatprep.subr.mxu0 0.0
        %1158 = vmatpush1.msra.mxu0 %v951
        %1159 = vmatprep.subr.mxu0 0.0
        %1160 = vmatpush1.msra.mxu0 %v952
        %1161 = vmatprep.subr.mxu0 0.0
        %1162 = vmatpush1.msra.mxu0 0.0
        %1163 = vmatprep.subr.mxu0 0.0
        %1164 = vmatpush1.msra.mxu0 0.0
        %1165 = vmatprep.subr.mxu0 0.0
        %1166 = vmatpush1.msra.mxu0 0.0
        %1167 = vmatprep.subr.mxu0 0.0
        %1168 = vmatpush1.msra.mxu0 0.0
        %1169 = vmatprep.subr.mxu0 0.0
        %1170 = vmatpush1.msra.mxu0 0.0
        %1171 = vmatprep.subr.mxu0 0.0
        %1172 = vmatpush1.msra.mxu0 0.0
        %1173 = vmatprep.subr.mxu0 0.0
        %1174 = vmatpush1.msra.mxu0 0.0
        %1175 = vmatprep.subr.mxu0 0.0
        %1176 = vmatpush1.msra.mxu0 0.0
        %1177 = vmatprep.subr.mxu0 0.0
        %1178 = vmatpush1.msra.mxu0 0.0
        %1179 = vmatprep.subr.mxu0 0.0
        %1180 = vmatpush1.msra.mxu0 0.0
        %1181 = vmatprep.subr.mxu0 0.0
        %1182 = vmatpush1.msra.mxu0 0.0
        %1183 = vmatprep.subr.mxu0 0.0
        %1184 = vmatpush1.msra.mxu0 0.0
        %1185 = vmatprep.subr.mxu0 0.0
        %1186 = vmatpush1.msra.mxu0 0.0
        %1187 = vmatprep.subr.mxu0 0.0
        %1188 = vmatpush1.msra.mxu0 0.0
        %1189 = vmatprep.subr.mxu0 0.0
        %1190 = vmatpush1.msra.mxu0 0.0
        %1191 = vmatprep.subr.mxu0 0.0
        %1192 = vmatpush1.msra.mxu0 0.0
        %1193 = vmatprep.mubr.f32.mxu0 0.0
        %1194 = vmatmul.mubr.f32.gmra.mrb[0].mxu0 %v929
        %v1195 = vpop.f32.mrb[0].mxu0
        %v1196 = vadd.f32 %v1121, %v1195
        %v1197 = vpop.f32.mrb[0].mxu0
        %1198 = vmatprep.mubr.f32.mxu0 0.0
        %1199 = vmatmul.mubr.f32.gmra.mrb[0].mxu0 %v934
        %v1200 = vpop.f32.mrb[0].mxu0
        %v1201 = vadd.f32 %v1126, %v1200
        %v1202 = vpop.f32.mrb[0].mxu0
        %1203 = vdwg.mxu0
        %s1204 = scalar_lea.vmem [#allocation5], 32
        %v1205 = vld [vmem:[%s1204] sm:$0xff]
        %v1206 = vld [vmem:[%s1204 + $0x8] sm:$0x7f]
        %v1208 = vsel %vm855, %v1205, 0
        %v1211 = vsel %vm855, %v1206, 0
        %1213 = vmatprep.subr.mxu0 0.0
        %1214 = vmatpush1.msra.mxu0 %v835
        %1215 = vmatprep.subr.mxu0 0.0
        %1216 = vmatpush1.msra.mxu0 %v840
        %1217 = vmatprep.subr.mxu0 0.0
        %1218 = vmatpush1.msra.mxu0 %v845
        %1219 = vmatprep.subr.mxu0 0.0
        %1220 = vmatpush1.msra.mxu0 %v850
        %1221 = vmatprep.subr.mxu0 0.0
        %1222 = vmatpush1.msra.mxu0 0.0
        %1223 = vmatprep.subr.mxu0 0.0
        %1224 = vmatpush1.msra.mxu0 0.0
        %1225 = vmatprep.subr.mxu0 0.0
        %1226 = vmatpush1.msra.mxu0 0.0
        %1227 = vmatprep.subr.mxu0 0.0
        %1228 = vmatpush1.msra.mxu0 0.0
        %1229 = vmatprep.subr.mxu0 0.0
        %1230 = vmatpush1.msra.mxu0 0.0
        %1231 = vmatprep.subr.mxu0 0.0
        %1232 = vmatpush1.msra.mxu0 0.0
        %1233 = vmatprep.subr.mxu0 0.0
        %1234 = vmatpush1.msra.mxu0 0.0
        %1235 = vmatprep.subr.mxu0 0.0
        %1236 = vmatpush1.msra.mxu0 0.0
        %1237 = vmatprep.subr.mxu0 0.0
        %1238 = vmatpush1.msra.mxu0 0.0
        %1239 = vmatprep.subr.mxu0 0.0
        %1240 = vmatpush1.msra.mxu0 0.0
        %1241 = vmatprep.subr.mxu0 0.0
        %1242 = vmatpush1.msra.mxu0 0.0
        %1243 = vmatprep.subr.mxu0 0.0
        %1244 = vmatpush1.msra.mxu0 0.0
        %1245 = vmatprep.subr.mxu0 0.0
        %1246 = vmatpush1.msra.mxu0 0.0
        %1247 = vmatprep.subr.mxu0 0.0
        %1248 = vmatpush1.msra.mxu0 0.0
        %1249 = vmatprep.subr.mxu0 0.0
        %1250 = vmatpush1.msra.mxu0 0.0
        %1251 = vmatprep.subr.mxu0 0.0
        %1252 = vmatpush1.msra.mxu0 0.0
        %1253 = vmatprep.subr.mxu0 0.0
        %1254 = vmatpush1.msra.mxu0 0.0
        %1255 = vmatprep.subr.mxu0 0.0
        %1256 = vmatpush1.msra.mxu0 0.0
        %1257 = vmatprep.subr.mxu0 0.0
        %1258 = vmatpush1.msra.mxu0 0.0
        %1259 = vmatprep.subr.mxu0 0.0
        %1260 = vmatpush1.msra.mxu0 0.0
        %1261 = vmatprep.subr.mxu0 0.0
        %1262 = vmatpush1.msra.mxu0 0.0
        %1263 = vmatprep.subr.mxu0 0.0
        %1264 = vmatpush1.msra.mxu0 0.0
        %1265 = vmatprep.subr.mxu0 0.0
        %1266 = vmatpush1.msra.mxu0 0.0
        %1267 = vmatprep.subr.mxu0 0.0
        %1268 = vmatpush1.msra.mxu0 0.0
        %1269 = vmatprep.subr.mxu0 0.0
        %1270 = vmatpush1.msra.mxu0 0.0
        %1271 = vmatprep.subr.mxu0 0.0
        %1272 = vmatpush1.msra.mxu0 0.0
        %1273 = vmatprep.subr.mxu0 0.0
        %1274 = vmatpush1.msra.mxu0 0.0
        %1275 = vmatprep.subr.mxu0 0.0
        %1276 = vmatpush1.msra.mxu0 0.0
        %1277 = vmatprep.mubr.f32.mxu0 0.0
        %1278 = vmatmul.mubr.f32.gmra.mrb[0].mxu0 %v1208
        %v1279 = vpop.f32.mrb[0].mxu0
        %v1280 = vadd.f32 0.0, %v1279
        %v1281 = vpop.f32.mrb[0].mxu0
        %1282 = vmatprep.mubr.f32.mxu0 0.0
        %1283 = vmatmul.mubr.f32.gmra.mrb[0].mxu0 %v1211
        %v1284 = vpop.f32.mrb[0].mxu0
        %v1285 = vadd.f32 0.0, %v1284
        %v1286 = vpop.f32.mrb[0].mxu0
        %1287 = vdwg.mxu0
        %s1288 = scalar_lea.vmem %s4, 256
        %v1289 = vld [vmem:[%s1288] sm:$0xff]
        %v1290 = vld [vmem:[%s1288 + $0x8] sm:$0xff]
        %v1291 = vld [vmem:[%s1288 + $0x10] sm:$0xff]
        %v1292 = vld [vmem:[%s1288 + $0x18] sm:$0xff]
        %v1293 = vld [vmem:[%s1288 + $0x20] sm:$0xff]
        %v1294 = vld [vmem:[%s1288 + $0x28] sm:$0xff]
        %v1295 = vld [vmem:[%s1288 + $0x30] sm:$0xff]
        %v1296 = vld [vmem:[%s1288 + $0x38] sm:$0xff]
        %v1297 = vld [vmem:[%s1288 + $0x40] sm:$0xff]
        %v1298 = vld [vmem:[%s1288 + $0x48] sm:$0xff]
        %v1299 = vld [vmem:[%s1288 + $0x50] sm:$0xff]
        %v1300 = vld [vmem:[%s1288 + $0x58] sm:$0xff]
        %v1301 = vld [vmem:[%s1288 + $0x60] sm:$0xff]
        %v1302 = vld [vmem:[%s1288 + $0x68] sm:$0xff]
        %v1303 = vld [vmem:[%s1288 + $0x70] sm:$0xff]
        %v1304 = vld [vmem:[%s1288 + $0x78] sm:$0xff]
        %1305 = vmatprep.subr.mxu0 0.0
        %1306 = vmatpush1.msra.mxu0 %v1289
        %1307 = vmatprep.subr.mxu0 0.0
        %1308 = vmatpush1.msra.mxu0 %v1290
        %1309 = vmatprep.subr.mxu0 0.0
        %1310 = vmatpush1.msra.mxu0 %v1291
        %1311 = vmatprep.subr.mxu0 0.0
        %1312 = vmatpush1.msra.mxu0 %v1292
        %1313 = vmatprep.subr.mxu0 0.0
        %1314 = vmatpush1.msra.mxu0 %v1293
        %1315 = vmatprep.subr.mxu0 0.0
        %1316 = vmatpush1.msra.mxu0 %v1294
        %1317 = vmatprep.subr.mxu0 0.0
        %1318 = vmatpush1.msra.mxu0 %v1295
        %1319 = vmatprep.subr.mxu0 0.0
        %1320 = vmatpush1.msra.mxu0 %v1296
        %1321 = vmatprep.subr.mxu0 0.0
        %1322 = vmatpush1.msra.mxu0 %v1297
        %1323 = vmatprep.subr.mxu0 0.0
        %1324 = vmatpush1.msra.mxu0 %v1298
        %1325 = vmatprep.subr.mxu0 0.0
        %1326 = vmatpush1.msra.mxu0 %v1299
        %1327 = vmatprep.subr.mxu0 0.0
        %1328 = vmatpush1.msra.mxu0 %v1300
        %1329 = vmatprep.subr.mxu0 0.0
        %1330 = vmatpush1.msra.mxu0 %v1301
        %1331 = vmatprep.subr.mxu0 0.0
        %1332 = vmatpush1.msra.mxu0 %v1302
        %1333 = vmatprep.subr.mxu0 0.0
        %1334 = vmatpush1.msra.mxu0 %v1303
        %1335 = vmatprep.subr.mxu0 0.0
        %1336 = vmatpush1.msra.mxu0 %v1304
        %1337 = vmatprep.subr.mxu0 0.0
        %1338 = vmatpush1.msra.mxu0 0.0
        %1339 = vmatprep.subr.mxu0 0.0
        %1340 = vmatpush1.msra.mxu0 0.0
        %1341 = vmatprep.subr.mxu0 0.0
        %1342 = vmatpush1.msra.mxu0 0.0
        %1343 = vmatprep.subr.mxu0 0.0
        %1344 = vmatpush1.msra.mxu0 0.0
        %1345 = vmatprep.subr.mxu0 0.0
        %1346 = vmatpush1.msra.mxu0 0.0
        %1347 = vmatprep.subr.mxu0 0.0
        %1348 = vmatpush1.msra.mxu0 0.0
        %1349 = vmatprep.subr.mxu0 0.0
        %1350 = vmatpush1.msra.mxu0 0.0
        %1351 = vmatprep.subr.mxu0 0.0
        %1352 = vmatpush1.msra.mxu0 0.0
        %1353 = vmatprep.subr.mxu0 0.0
        %1354 = vmatpush1.msra.mxu0 0.0
        %1355 = vmatprep.subr.mxu0 0.0
        %1356 = vmatpush1.msra.mxu0 0.0
        %1357 = vmatprep.subr.mxu0 0.0
        %1358 = vmatpush1.msra.mxu0 0.0
        %1359 = vmatprep.subr.mxu0 0.0
        %1360 = vmatpush1.msra.mxu0 0.0
        %1361 = vmatprep.subr.mxu0 0.0
        %1362 = vmatpush1.msra.mxu0 0.0
        %1363 = vmatprep.subr.mxu0 0.0
        %1364 = vmatpush1.msra.mxu0 0.0
        %1365 = vmatprep.subr.mxu0 0.0
        %1366 = vmatpush1.msra.mxu0 0.0
        %1367 = vmatprep.subr.mxu0 0.0
        %1368 = vmatpush1.msra.mxu0 0.0
        %1369 = vmatprep.mubr.f32.mxu0 0.0
        %1370 = vmatmul.mubr.f32.gmra.mrb[0].mxu0 %v1280
        %v1371 = vpop.f32.mrb[0].mxu0
        %v1372 = vadd.f32 0.0, %v1371
        %v1373 = vpop.f32.mrb[0].mxu0
        %1374 = vmatprep.mubr.f32.mxu0 0.0
        %1375 = vmatmul.mubr.f32.gmra.mrb[0].mxu0 %v1285
        %v1376 = vpop.f32.mrb[0].mxu0
        %v1377 = vadd.f32 0.0, %v1376
        %v1378 = vpop.f32.mrb[0].mxu0
        %1379 = vdwg.mxu0
        %v1380 = vadd.f32 %v1196, %v1372
        %v1381 = vadd.f32 %v1201, %v1377
        %v1382 = vld [vmem:[%s5] sm:$0x1]
        %v1384 = vlaneseq
        %v1385 = vshrl.u32 %v1384, 7
        %v1386 = vsub.s32 0, %v1385
        %v1387 = vrot.slane %v1382, %v1386
        %v1389 = vadd.f32 %v1380, %v1387
        %v1390 = vadd.f32 %v1381, %v1387
        %v1391 = vld [vmem:[%s6] sm:$0x7]
        %vm1392 = vcmask 121856
        %v1394 = vsel %vm1392, %v1391, 0
        %vm1396 = vcmask 1046528
        %v1398 = vsel %vm1396, %v1390, 0
        %1400 = vmatprep.subr.mxu0 0.0
        %1401 = vmatpush1.msra.mxu0 %v1389
        %1402 = vmatprep.subr.mxu0 0.0
        %1403 = vmatpush1.msra.mxu0 %v1398
        %1404 = vmatprep.subr.mxu0 0.0
        %1405 = vmatpush1.msra.mxu0 0.0
        %1406 = vmatprep.subr.mxu0 0.0
        %1407 = vmatpush1.msra.mxu0 0.0
        %1408 = vmatprep.subr.mxu0 0.0
        %1409 = vmatpush1.msra.mxu0 0.0
        %1410 = vmatprep.subr.mxu0 0.0
        %1411 = vmatpush1.msra.mxu0 0.0
        %1412 = vmatprep.subr.mxu0 0.0
        %1413 = vmatpush1.msra.mxu0 0.0
        %1414 = vmatprep.subr.mxu0 0.0
        %1415 = vmatpush1.msra.mxu0 0.0
        %1416 = vmatprep.subr.mxu0 0.0
        %1417 = vmatpush1.msra.mxu0 0.0
        %1418 = vmatprep.subr.mxu0 0.0
        %1419 = vmatpush1.msra.mxu0 0.0
        %1420 = vmatprep.subr.mxu0 0.0
        %1421 = vmatpush1.msra.mxu0 0.0
        %1422 = vmatprep.subr.mxu0 0.0
        %1423 = vmatpush1.msra.mxu0 0.0
        %1424 = vmatprep.subr.mxu0 0.0
        %1425 = vmatpush1.msra.mxu0 0.0
        %1426 = vmatprep.subr.mxu0 0.0
        %1427 = vmatpush1.msra.mxu0 0.0
        %1428 = vmatprep.subr.mxu0 0.0
        %1429 = vmatpush1.msra.mxu0 0.0
        %1430 = vmatprep.subr.mxu0 0.0
        %1431 = vmatpush1.msra.mxu0 0.0
        %1432 = vmatprep.subr.mxu0 0.0
        %1433 = vmatpush1.msra.mxu0 0.0
        %1434 = vmatprep.subr.mxu0 0.0
        %1435 = vmatpush1.msra.mxu0 0.0
        %1436 = vmatprep.subr.mxu0 0.0
        %1437 = vmatpush1.msra.mxu0 0.0
        %1438 = vmatprep.subr.mxu0 0.0
        %1439 = vmatpush1.msra.mxu0 0.0
        %1440 = vmatprep.subr.mxu0 0.0
        %1441 = vmatpush1.msra.mxu0 0.0
        %1442 = vmatprep.subr.mxu0 0.0
        %1443 = vmatpush1.msra.mxu0 0.0
        %1444 = vmatprep.subr.mxu0 0.0
        %1445 = vmatpush1.msra.mxu0 0.0
        %1446 = vmatprep.subr.mxu0 0.0
        %1447 = vmatpush1.msra.mxu0 0.0
        %1448 = vmatprep.subr.mxu0 0.0
        %1449 = vmatpush1.msra.mxu0 0.0
        %1450 = vmatprep.subr.mxu0 0.0
        %1451 = vmatpush1.msra.mxu0 0.0
        %1452 = vmatprep.subr.mxu0 0.0
        %1453 = vmatpush1.msra.mxu0 0.0
        %1454 = vmatprep.subr.mxu0 0.0
        %1455 = vmatpush1.msra.mxu0 0.0
        %1456 = vmatprep.subr.mxu0 0.0
        %1457 = vmatpush1.msra.mxu0 0.0
        %1458 = vmatprep.subr.mxu0 0.0
        %1459 = vmatpush1.msra.mxu0 0.0
        %1460 = vmatprep.subr.mxu0 0.0
        %1461 = vmatpush1.msra.mxu0 0.0
        %1462 = vmatprep.subr.mxu0 0.0
        %1463 = vmatpush1.msra.mxu0 0.0
        %1464 = vmatprep.mubr.f32.mxu0 0.0
        %1465 = vmatmul.mubr.f32.gmra.mrb[0].mxu0 %v1394
        %v1466 = vpop.f32.mrb[0].mxu0
        %v1467 = vadd.f32 0.0, %v1466
        %v1468 = vpop.f32.mrb[0].mxu0
        %1469 = vdwg.mxu0
        %s1470 = scalar_lea.vmem %s6, 4
        %v1471 = vld [vmem:[%s1470] sm:$0x7]
        %v1473 = vsel %vm1392, %v1471, 0
        %1475 = vmatprep.subr.mxu0 0.0
        %1476 = vmatpush1.msra.mxu0 %v1389
        %1477 = vmatprep.subr.mxu0 0.0
        %1478 = vmatpush1.msra.mxu0 %v1398
        %1479 = vmatprep.subr.mxu0 0.0
        %1480 = vmatpush1.msra.mxu0 0.0
        %1481 = vmatprep.subr.mxu0 0.0
        %1482 = vmatpush1.msra.mxu0 0.0
        %1483 = vmatprep.subr.mxu0 0.0
        %1484 = vmatpush1.msra.mxu0 0.0
        %1485 = vmatprep.subr.mxu0 0.0
        %1486 = vmatpush1.msra.mxu0 0.0
        %1487 = vmatprep.subr.mxu0 0.0
        %1488 = vmatpush1.msra.mxu0 0.0
        %1489 = vmatprep.subr.mxu0 0.0
        %1490 = vmatpush1.msra.mxu0 0.0
        %1491 = vmatprep.subr.mxu0 0.0
        %1492 = vmatpush1.msra.mxu0 0.0
        %1493 = vmatprep.subr.mxu0 0.0
        %1494 = vmatpush1.msra.mxu0 0.0
        %1495 = vmatprep.subr.mxu0 0.0
        %1496 = vmatpush1.msra.mxu0 0.0
        %1497 = vmatprep.subr.mxu0 0.0
        %1498 = vmatpush1.msra.mxu0 0.0
        %1499 = vmatprep.subr.mxu0 0.0
        %1500 = vmatpush1.msra.mxu0 0.0
        %1501 = vmatprep.subr.mxu0 0.0
        %1502 = vmatpush1.msra.mxu0 0.0
        %1503 = vmatprep.subr.mxu0 0.0
        %1504 = vmatpush1.msra.mxu0 0.0
        %1505 = vmatprep.subr.mxu0 0.0
        %1506 = vmatpush1.msra.mxu0 0.0
        %1507 = vmatprep.subr.mxu0 0.0
        %1508 = vmatpush1.msra.mxu0 0.0
        %1509 = vmatprep.subr.mxu0 0.0
        %1510 = vmatpush1.msra.mxu0 0.0
        %1511 = vmatprep.subr.mxu0 0.0
        %1512 = vmatpush1.msra.mxu0 0.0
        %1513 = vmatprep.subr.mxu0 0.0
        %1514 = vmatpush1.msra.mxu0 0.0
        %1515 = vmatprep.subr.mxu0 0.0
        %1516 = vmatpush1.msra.mxu0 0.0
        %1517 = vmatprep.subr.mxu0 0.0
        %1518 = vmatpush1.msra.mxu0 0.0
        %1519 = vmatprep.subr.mxu0 0.0
        %1520 = vmatpush1.msra.mxu0 0.0
        %1521 = vmatprep.subr.mxu0 0.0
        %1522 = vmatpush1.msra.mxu0 0.0
        %1523 = vmatprep.subr.mxu0 0.0
        %1524 = vmatpush1.msra.mxu0 0.0
        %1525 = vmatprep.subr.mxu0 0.0
        %1526 = vmatpush1.msra.mxu0 0.0
        %1527 = vmatprep.subr.mxu0 0.0
        %1528 = vmatpush1.msra.mxu0 0.0
        %1529 = vmatprep.subr.mxu0 0.0
        %1530 = vmatpush1.msra.mxu0 0.0
        %1531 = vmatprep.subr.mxu0 0.0
        %1532 = vmatpush1.msra.mxu0 0.0
        %1533 = vmatprep.subr.mxu0 0.0
        %1534 = vmatpush1.msra.mxu0 0.0
        %1535 = vmatprep.subr.mxu0 0.0
        %1536 = vmatpush1.msra.mxu0 0.0
        %1537 = vmatprep.subr.mxu0 0.0
        %1538 = vmatpush1.msra.mxu0 0.0
        %1539 = vmatprep.mubr.f32.mxu0 0.0
        %1540 = vmatmul.mubr.f32.gmra.mrb[0].mxu0 %v1473
        %v1541 = vpop.f32.mrb[0].mxu0
        %v1542 = vadd.f32 0.0, %v1541
        %v1543 = vpop.f32.mrb[0].mxu0
        %1544 = vdwg.mxu0
        %v1545 = vmax.f32 %v1467, %v1542
        %s1546 = scalar_lea.vmem %s6, 8
        %v1547 = vld [vmem:[%s1546] sm:$0x7]
        %v1549 = vsel %vm1392, %v1547, 0
        %1551 = vmatprep.subr.mxu0 0.0
        %1552 = vmatpush1.msra.mxu0 %v1389
        %1553 = vmatprep.subr.mxu0 0.0
        %1554 = vmatpush1.msra.mxu0 %v1398
        %1555 = vmatprep.subr.mxu0 0.0
        %1556 = vmatpush1.msra.mxu0 0.0
        %1557 = vmatprep.subr.mxu0 0.0
        %1558 = vmatpush1.msra.mxu0 0.0
        %1559 = vmatprep.subr.mxu0 0.0
        %1560 = vmatpush1.msra.mxu0 0.0
        %1561 = vmatprep.subr.mxu0 0.0
        %1562 = vmatpush1.msra.mxu0 0.0
        %1563 = vmatprep.subr.mxu0 0.0
        %1564 = vmatpush1.msra.mxu0 0.0
        %1565 = vmatprep.subr.mxu0 0.0
        %1566 = vmatpush1.msra.mxu0 0.0
        %1567 = vmatprep.subr.mxu0 0.0
        %1568 = vmatpush1.msra.mxu0 0.0
        %1569 = vmatprep.subr.mxu0 0.0
        %1570 = vmatpush1.msra.mxu0 0.0
        %1571 = vmatprep.subr.mxu0 0.0
        %1572 = vmatpush1.msra.mxu0 0.0
        %1573 = vmatprep.subr.mxu0 0.0
        %1574 = vmatpush1.msra.mxu0 0.0
        %1575 = vmatprep.subr.mxu0 0.0
        %1576 = vmatpush1.msra.mxu0 0.0
        %1577 = vmatprep.subr.mxu0 0.0
        %1578 = vmatpush1.msra.mxu0 0.0
        %1579 = vmatprep.subr.mxu0 0.0
        %1580 = vmatpush1.msra.mxu0 0.0
        %1581 = vmatprep.subr.mxu0 0.0
        %1582 = vmatpush1.msra.mxu0 0.0
        %1583 = vmatprep.subr.mxu0 0.0
        %1584 = vmatpush1.msra.mxu0 0.0
        %1585 = vmatprep.subr.mxu0 0.0
        %1586 = vmatpush1.msra.mxu0 0.0
        %1587 = vmatprep.subr.mxu0 0.0
        %1588 = vmatpush1.msra.mxu0 0.0
        %1589 = vmatprep.subr.mxu0 0.0
        %1590 = vmatpush1.msra.mxu0 0.0
        %1591 = vmatprep.subr.mxu0 0.0
        %1592 = vmatpush1.msra.mxu0 0.0
        %1593 = vmatprep.subr.mxu0 0.0
        %1594 = vmatpush1.msra.mxu0 0.0
        %1595 = vmatprep.subr.mxu0 0.0
        %1596 = vmatpush1.msra.mxu0 0.0
        %1597 = vmatprep.subr.mxu0 0.0
        %1598 = vmatpush1.msra.mxu0 0.0
        %1599 = vmatprep.subr.mxu0 0.0
        %1600 = vmatpush1.msra.mxu0 0.0
        %1601 = vmatprep.subr.mxu0 0.0
        %1602 = vmatpush1.msra.mxu0 0.0
        %1603 = vmatprep.subr.mxu0 0.0
        %1604 = vmatpush1.msra.mxu0 0.0
        %1605 = vmatprep.subr.mxu0 0.0
        %1606 = vmatpush1.msra.mxu0 0.0
        %1607 = vmatprep.subr.mxu0 0.0
        %1608 = vmatpush1.msra.mxu0 0.0
        %1609 = vmatprep.subr.mxu0 0.0
        %1610 = vmatpush1.msra.mxu0 0.0
        %1611 = vmatprep.subr.mxu0 0.0
        %1612 = vmatpush1.msra.mxu0 0.0
        %1613 = vmatprep.subr.mxu0 0.0
        %1614 = vmatpush1.msra.mxu0 0.0
        %1615 = vmatprep.mubr.f32.mxu0 0.0
        %1616 = vmatmul.mubr.f32.gmra.mrb[0].mxu0 %v1549
        %v1617 = vpop.f32.mrb[0].mxu0
        %v1618 = vadd.f32 0.0, %v1617
        %v1619 = vpop.f32.mrb[0].mxu0
        %1620 = vdwg.mxu0
        %v1621 = vmax.f32 %v1545, %v1618
        %s1622 = scalar_lea.vmem %s6, 12
        %v1623 = vld [vmem:[%s1622] sm:$0x7]
        %v1625 = vsel %vm1392, %v1623, 0
        %1627 = vmatprep.subr.mxu0 0.0
        %1628 = vmatpush1.msra.mxu0 %v1389
        %1629 = vmatprep.subr.mxu0 0.0
        %1630 = vmatpush1.msra.mxu0 %v1398
        %1631 = vmatprep.subr.mxu0 0.0
        %1632 = vmatpush1.msra.mxu0 0.0
        %1633 = vmatprep.subr.mxu0 0.0
        %1634 = vmatpush1.msra.mxu0 0.0
        %1635 = vmatprep.subr.mxu0 0.0
        %1636 = vmatpush1.msra.mxu0 0.0
        %1637 = vmatprep.subr.mxu0 0.0
        %1638 = vmatpush1.msra.mxu0 0.0
        %1639 = vmatprep.subr.mxu0 0.0
        %1640 = vmatpush1.msra.mxu0 0.0
        %1641 = vmatprep.subr.mxu0 0.0
        %1642 = vmatpush1.msra.mxu0 0.0
        %1643 = vmatprep.subr.mxu0 0.0
        %1644 = vmatpush1.msra.mxu0 0.0
        %1645 = vmatprep.subr.mxu0 0.0
        %1646 = vmatpush1.msra.mxu0 0.0
        %1647 = vmatprep.subr.mxu0 0.0
        %1648 = vmatpush1.msra.mxu0 0.0
        %1649 = vmatprep.subr.mxu0 0.0
        %1650 = vmatpush1.msra.mxu0 0.0
        %1651 = vmatprep.subr.mxu0 0.0
        %1652 = vmatpush1.msra.mxu0 0.0
        %1653 = vmatprep.subr.mxu0 0.0
        %1654 = vmatpush1.msra.mxu0 0.0
        %1655 = vmatprep.subr.mxu0 0.0
        %1656 = vmatpush1.msra.mxu0 0.0
        %1657 = vmatprep.subr.mxu0 0.0
        %1658 = vmatpush1.msra.mxu0 0.0
        %1659 = vmatprep.subr.mxu0 0.0
        %1660 = vmatpush1.msra.mxu0 0.0
        %1661 = vmatprep.subr.mxu0 0.0
        %1662 = vmatpush1.msra.mxu0 0.0
        %1663 = vmatprep.subr.mxu0 0.0
        %1664 = vmatpush1.msra.mxu0 0.0
        %1665 = vmatprep.subr.mxu0 0.0
        %1666 = vmatpush1.msra.mxu0 0.0
        %1667 = vmatprep.subr.mxu0 0.0
        %1668 = vmatpush1.msra.mxu0 0.0
        %1669 = vmatprep.subr.mxu0 0.0
        %1670 = vmatpush1.msra.mxu0 0.0
        %1671 = vmatprep.subr.mxu0 0.0
        %1672 = vmatpush1.msra.mxu0 0.0
        %1673 = vmatprep.subr.mxu0 0.0
        %1674 = vmatpush1.msra.mxu0 0.0
        %1675 = vmatprep.subr.mxu0 0.0
        %1676 = vmatpush1.msra.mxu0 0.0
        %1677 = vmatprep.subr.mxu0 0.0
        %1678 = vmatpush1.msra.mxu0 0.0
        %1679 = vmatprep.subr.mxu0 0.0
        %1680 = vmatpush1.msra.mxu0 0.0
        %1681 = vmatprep.subr.mxu0 0.0
        %1682 = vmatpush1.msra.mxu0 0.0
        %1683 = vmatprep.subr.mxu0 0.0
        %1684 = vmatpush1.msra.mxu0 0.0
        %1685 = vmatprep.subr.mxu0 0.0
        %1686 = vmatpush1.msra.mxu0 0.0
        %1687 = vmatprep.subr.mxu0 0.0
        %1688 = vmatpush1.msra.mxu0 0.0
        %1689 = vmatprep.subr.mxu0 0.0
        %1690 = vmatpush1.msra.mxu0 0.0
        %1691 = vmatprep.mubr.f32.mxu0 0.0
        %1692 = vmatmul.mubr.f32.gmra.mrb[0].mxu0 %v1625
        %v1693 = vpop.f32.mrb[0].mxu0
        %v1694 = vadd.f32 0.0, %v1693
        %v1695 = vpop.f32.mrb[0].mxu0
        %1696 = vdwg.mxu0
        %v1697 = vmax.f32 %v1621, %v1694
        %s1698 = scalar_lea.vmem %s6, 16
        %v1699 = vld [vmem:[%s1698] sm:$0x7]
        %v1701 = vsel %vm1392, %v1699, 0
        %1703 = vmatprep.subr.mxu0 0.0
        %1704 = vmatpush1.msra.mxu0 %v1389
        %1705 = vmatprep.subr.mxu0 0.0
        %1706 = vmatpush1.msra.mxu0 %v1398
        %1707 = vmatprep.subr.mxu0 0.0
        %1708 = vmatpush1.msra.mxu0 0.0
        %1709 = vmatprep.subr.mxu0 0.0
        %1710 = vmatpush1.msra.mxu0 0.0
        %1711 = vmatprep.subr.mxu0 0.0
        %1712 = vmatpush1.msra.mxu0 0.0
        %1713 = vmatprep.subr.mxu0 0.0
        %1714 = vmatpush1.msra.mxu0 0.0
        %1715 = vmatprep.subr.mxu0 0.0
        %1716 = vmatpush1.msra.mxu0 0.0
        %1717 = vmatprep.subr.mxu0 0.0
        %1718 = vmatpush1.msra.mxu0 0.0
        %1719 = vmatprep.subr.mxu0 0.0
        %1720 = vmatpush1.msra.mxu0 0.0
        %1721 = vmatprep.subr.mxu0 0.0
        %1722 = vmatpush1.msra.mxu0 0.0
        %1723 = vmatprep.subr.mxu0 0.0
        %1724 = vmatpush1.msra.mxu0 0.0
        %1725 = vmatprep.subr.mxu0 0.0
        %1726 = vmatpush1.msra.mxu0 0.0
        %1727 = vmatprep.subr.mxu0 0.0
        %1728 = vmatpush1.msra.mxu0 0.0
        %1729 = vmatprep.subr.mxu0 0.0
        %1730 = vmatpush1.msra.mxu0 0.0
        %1731 = vmatprep.subr.mxu0 0.0
        %1732 = vmatpush1.msra.mxu0 0.0
        %1733 = vmatprep.subr.mxu0 0.0
        %1734 = vmatpush1.msra.mxu0 0.0
        %1735 = vmatprep.subr.mxu0 0.0
        %1736 = vmatpush1.msra.mxu0 0.0
        %1737 = vmatprep.subr.mxu0 0.0
        %1738 = vmatpush1.msra.mxu0 0.0
        %1739 = vmatprep.subr.mxu0 0.0
        %1740 = vmatpush1.msra.mxu0 0.0
        %1741 = vmatprep.subr.mxu0 0.0
        %1742 = vmatpush1.msra.mxu0 0.0
        %1743 = vmatprep.subr.mxu0 0.0
        %1744 = vmatpush1.msra.mxu0 0.0
        %1745 = vmatprep.subr.mxu0 0.0
        %1746 = vmatpush1.msra.mxu0 0.0
        %1747 = vmatprep.subr.mxu0 0.0
        %1748 = vmatpush1.msra.mxu0 0.0
        %1749 = vmatprep.subr.mxu0 0.0
        %1750 = vmatpush1.msra.mxu0 0.0
        %1751 = vmatprep.subr.mxu0 0.0
        %1752 = vmatpush1.msra.mxu0 0.0
        %1753 = vmatprep.subr.mxu0 0.0
        %1754 = vmatpush1.msra.mxu0 0.0
        %1755 = vmatprep.subr.mxu0 0.0
        %1756 = vmatpush1.msra.mxu0 0.0
        %1757 = vmatprep.subr.mxu0 0.0
        %1758 = vmatpush1.msra.mxu0 0.0
        %1759 = vmatprep.subr.mxu0 0.0
        %1760 = vmatpush1.msra.mxu0 0.0
        %1761 = vmatprep.subr.mxu0 0.0
        %1762 = vmatpush1.msra.mxu0 0.0
        %1763 = vmatprep.subr.mxu0 0.0
        %1764 = vmatpush1.msra.mxu0 0.0
        %1765 = vmatprep.subr.mxu0 0.0
        %1766 = vmatpush1.msra.mxu0 0.0
        %1767 = vmatprep.mubr.f32.mxu0 0.0
        %1768 = vmatmul.mubr.f32.gmra.mrb[0].mxu0 %v1701
        %v1769 = vpop.f32.mrb[0].mxu0
        %v1770 = vadd.f32 0.0, %v1769
        %v1771 = vpop.f32.mrb[0].mxu0
        %1772 = vdwg.mxu0
        %v1773 = vmax.f32 %v1697, %v1770
        %s1774 = scalar_lea.vmem %s6, 20
        %v1775 = vld [vmem:[%s1774] sm:$0x7]
        %v1777 = vsel %vm1392, %v1775, 0
        %1779 = vmatprep.subr.mxu0 0.0
        %1780 = vmatpush1.msra.mxu0 %v1389
        %1781 = vmatprep.subr.mxu0 0.0
        %1782 = vmatpush1.msra.mxu0 %v1398
        %1783 = vmatprep.subr.mxu0 0.0
        %1784 = vmatpush1.msra.mxu0 0.0
        %1785 = vmatprep.subr.mxu0 0.0
        %1786 = vmatpush1.msra.mxu0 0.0
        %1787 = vmatprep.subr.mxu0 0.0
        %1788 = vmatpush1.msra.mxu0 0.0
        %1789 = vmatprep.subr.mxu0 0.0
        %1790 = vmatpush1.msra.mxu0 0.0
        %1791 = vmatprep.subr.mxu0 0.0
        %1792 = vmatpush1.msra.mxu0 0.0
        %1793 = vmatprep.subr.mxu0 0.0
        %1794 = vmatpush1.msra.mxu0 0.0
        %1795 = vmatprep.subr.mxu0 0.0
        %1796 = vmatpush1.msra.mxu0 0.0
        %1797 = vmatprep.subr.mxu0 0.0
        %1798 = vmatpush1.msra.mxu0 0.0
        %1799 = vmatprep.subr.mxu0 0.0
        %1800 = vmatpush1.msra.mxu0 0.0
        %1801 = vmatprep.subr.mxu0 0.0
        %1802 = vmatpush1.msra.mxu0 0.0
        %1803 = vmatprep.subr.mxu0 0.0
        %1804 = vmatpush1.msra.mxu0 0.0
        %1805 = vmatprep.subr.mxu0 0.0
        %1806 = vmatpush1.msra.mxu0 0.0
        %1807 = vmatprep.subr.mxu0 0.0
        %1808 = vmatpush1.msra.mxu0 0.0
        %1809 = vmatprep.subr.mxu0 0.0
        %1810 = vmatpush1.msra.mxu0 0.0
        %1811 = vmatprep.subr.mxu0 0.0
        %1812 = vmatpush1.msra.mxu0 0.0
        %1813 = vmatprep.subr.mxu0 0.0
        %1814 = vmatpush1.msra.mxu0 0.0
        %1815 = vmatprep.subr.mxu0 0.0
        %1816 = vmatpush1.msra.mxu0 0.0
        %1817 = vmatprep.subr.mxu0 0.0
        %1818 = vmatpush1.msra.mxu0 0.0
        %1819 = vmatprep.subr.mxu0 0.0
        %1820 = vmatpush1.msra.mxu0 0.0
        %1821 = vmatprep.subr.mxu0 0.0
        %1822 = vmatpush1.msra.mxu0 0.0
        %1823 = vmatprep.subr.mxu0 0.0
        %1824 = vmatpush1.msra.mxu0 0.0
        %1825 = vmatprep.subr.mxu0 0.0
        %1826 = vmatpush1.msra.mxu0 0.0
        %1827 = vmatprep.subr.mxu0 0.0
        %1828 = vmatpush1.msra.mxu0 0.0
        %1829 = vmatprep.subr.mxu0 0.0
        %1830 = vmatpush1.msra.mxu0 0.0
        %1831 = vmatprep.subr.mxu0 0.0
        %1832 = vmatpush1.msra.mxu0 0.0
        %1833 = vmatprep.subr.mxu0 0.0
        %1834 = vmatpush1.msra.mxu0 0.0
        %1835 = vmatprep.subr.mxu0 0.0
        %1836 = vmatpush1.msra.mxu0 0.0
        %1837 = vmatprep.subr.mxu0 0.0
        %1838 = vmatpush1.msra.mxu0 0.0
        %1839 = vmatprep.subr.mxu0 0.0
        %1840 = vmatpush1.msra.mxu0 0.0
        %1841 = vmatprep.subr.mxu0 0.0
        %1842 = vmatpush1.msra.mxu0 0.0
        %1843 = vmatprep.mubr.f32.mxu0 0.0
        %1844 = vmatmul.mubr.f32.gmra.mrb[0].mxu0 %v1777
        %v1845 = vpop.f32.mrb[0].mxu0
        %v1846 = vadd.f32 0.0, %v1845
        %v1847 = vpop.f32.mrb[0].mxu0
        %1848 = vdwg.mxu0
        %v1849 = vmax.f32 %v1773, %v1846
        %s1850 = scalar_lea.vmem %s6, 24
        %v1851 = vld [vmem:[%s1850] sm:$0x7]
        %v1853 = vsel %vm1392, %v1851, 0
        %1855 = vmatprep.subr.mxu0 0.0
        %1856 = vmatpush1.msra.mxu0 %v1389
        %1857 = vmatprep.subr.mxu0 0.0
        %1858 = vmatpush1.msra.mxu0 %v1398
        %1859 = vmatprep.subr.mxu0 0.0
        %1860 = vmatpush1.msra.mxu0 0.0
        %1861 = vmatprep.subr.mxu0 0.0
        %1862 = vmatpush1.msra.mxu0 0.0
        %1863 = vmatprep.subr.mxu0 0.0
        %1864 = vmatpush1.msra.mxu0 0.0
        %1865 = vmatprep.subr.mxu0 0.0
        %1866 = vmatpush1.msra.mxu0 0.0
        %1867 = vmatprep.subr.mxu0 0.0
        %1868 = vmatpush1.msra.mxu0 0.0
        %1869 = vmatprep.subr.mxu0 0.0
        %1870 = vmatpush1.msra.mxu0 0.0
        %1871 = vmatprep.subr.mxu0 0.0
        %1872 = vmatpush1.msra.mxu0 0.0
        %1873 = vmatprep.subr.mxu0 0.0
        %1874 = vmatpush1.msra.mxu0 0.0
        %1875 = vmatprep.subr.mxu0 0.0
        %1876 = vmatpush1.msra.mxu0 0.0
        %1877 = vmatprep.subr.mxu0 0.0
        %1878 = vmatpush1.msra.mxu0 0.0
        %1879 = vmatprep.subr.mxu0 0.0
        %1880 = vmatpush1.msra.mxu0 0.0
        %1881 = vmatprep.subr.mxu0 0.0
        %1882 = vmatpush1.msra.mxu0 0.0
        %1883 = vmatprep.subr.mxu0 0.0
        %1884 = vmatpush1.msra.mxu0 0.0
        %1885 = vmatprep.subr.mxu0 0.0
        %1886 = vmatpush1.msra.mxu0 0.0
        %1887 = vmatprep.subr.mxu0 0.0
        %1888 = vmatpush1.msra.mxu0 0.0
        %1889 = vmatprep.subr.mxu0 0.0
        %1890 = vmatpush1.msra.mxu0 0.0
        %1891 = vmatprep.subr.mxu0 0.0
        %1892 = vmatpush1.msra.mxu0 0.0
        %1893 = vmatprep.subr.mxu0 0.0
        %1894 = vmatpush1.msra.mxu0 0.0
        %1895 = vmatprep.subr.mxu0 0.0
        %1896 = vmatpush1.msra.mxu0 0.0
        %1897 = vmatprep.subr.mxu0 0.0
        %1898 = vmatpush1.msra.mxu0 0.0
        %1899 = vmatprep.subr.mxu0 0.0
        %1900 = vmatpush1.msra.mxu0 0.0
        %1901 = vmatprep.subr.mxu0 0.0
        %1902 = vmatpush1.msra.mxu0 0.0
        %1903 = vmatprep.subr.mxu0 0.0
        %1904 = vmatpush1.msra.mxu0 0.0
        %1905 = vmatprep.subr.mxu0 0.0
        %1906 = vmatpush1.msra.mxu0 0.0
        %1907 = vmatprep.subr.mxu0 0.0
        %1908 = vmatpush1.msra.mxu0 0.0
        %1909 = vmatprep.subr.mxu0 0.0
        %1910 = vmatpush1.msra.mxu0 0.0
        %1911 = vmatprep.subr.mxu0 0.0
        %1912 = vmatpush1.msra.mxu0 0.0
        %1913 = vmatprep.subr.mxu0 0.0
        %1914 = vmatpush1.msra.mxu0 0.0
        %1915 = vmatprep.subr.mxu0 0.0
        %1916 = vmatpush1.msra.mxu0 0.0
        %1917 = vmatprep.subr.mxu0 0.0
        %1918 = vmatpush1.msra.mxu0 0.0
        %1919 = vmatprep.mubr.f32.mxu0 0.0
        %1920 = vmatmul.mubr.f32.gmra.mrb[0].mxu0 %v1853
        %v1921 = vpop.f32.mrb[0].mxu0
        %v1922 = vadd.f32 0.0, %v1921
        %v1923 = vpop.f32.mrb[0].mxu0
        %1924 = vdwg.mxu0
        %v1925 = vmax.f32 %v1849, %v1922
        %v1926 = vld [vmem:[%s7] sm:$0xff]
        %v1927 = vld [vmem:[%s7 + $0x8] sm:$0xff]
        %v1928 = vld [vmem:[%s7 + $0x10] sm:$0xff]
        %v1929 = vld [vmem:[%s7 + $0x18] sm:$0xff]
        %v1930 = vld [vmem:[%s7 + $0x20] sm:$0xff]
        %v1931 = vld [vmem:[%s7 + $0x28] sm:$0xff]
        %v1932 = vld [vmem:[%s7 + $0x30] sm:$0xff]
        %v1933 = vld [vmem:[%s7 + $0x38] sm:$0xf]
        %vm1934 = vcmask 490496
        %v1936 = vsel %vm1934, %v1925, 0
        %vm1938 = vcmask 1043456
        %v1940 = vsel %vm1938, %v1933, 0
        %1942 = vmatprep.subr.mxu0 0.0
        %1943 = vmatpush1.msra.mxu0 %v1926
        %1944 = vmatprep.subr.mxu0 0.0
        %1945 = vmatpush1.msra.mxu0 %v1927
        %1946 = vmatprep.subr.mxu0 0.0
        %1947 = vmatpush1.msra.mxu0 %v1928
        %1948 = vmatprep.subr.mxu0 0.0
        %1949 = vmatpush1.msra.mxu0 %v1929
        %1950 = vmatprep.subr.mxu0 0.0
        %1951 = vmatpush1.msra.mxu0 %v1930
        %1952 = vmatprep.subr.mxu0 0.0
        %1953 = vmatpush1.msra.mxu0 %v1931
        %1954 = vmatprep.subr.mxu0 0.0
        %1955 = vmatpush1.msra.mxu0 %v1932
        %1956 = vmatprep.subr.mxu0 0.0
        %1957 = vmatpush1.msra.mxu0 %v1940
        %1958 = vmatprep.subr.mxu0 0.0
        %1959 = vmatpush1.msra.mxu0 0.0
        %1960 = vmatprep.subr.mxu0 0.0
        %1961 = vmatpush1.msra.mxu0 0.0
        %1962 = vmatprep.subr.mxu0 0.0
        %1963 = vmatpush1.msra.mxu0 0.0
        %1964 = vmatprep.subr.mxu0 0.0
        %1965 = vmatpush1.msra.mxu0 0.0
        %1966 = vmatprep.subr.mxu0 0.0
        %1967 = vmatpush1.msra.mxu0 0.0
        %1968 = vmatprep.subr.mxu0 0.0
        %1969 = vmatpush1.msra.mxu0 0.0
        %1970 = vmatprep.subr.mxu0 0.0
        %1971 = vmatpush1.msra.mxu0 0.0
        %1972 = vmatprep.subr.mxu0 0.0
        %1973 = vmatpush1.msra.mxu0 0.0
        %1974 = vmatprep.subr.mxu0 0.0
        %1975 = vmatpush1.msra.mxu0 0.0
        %1976 = vmatprep.subr.mxu0 0.0
        %1977 = vmatpush1.msra.mxu0 0.0
        %1978 = vmatprep.subr.mxu0 0.0
        %1979 = vmatpush1.msra.mxu0 0.0
        %1980 = vmatprep.subr.mxu0 0.0
        %1981 = vmatpush1.msra.mxu0 0.0
        %1982 = vmatprep.subr.mxu0 0.0
        %1983 = vmatpush1.msra.mxu0 0.0
        %1984 = vmatprep.subr.mxu0 0.0
        %1985 = vmatpush1.msra.mxu0 0.0
        %1986 = vmatprep.subr.mxu0 0.0
        %1987 = vmatpush1.msra.mxu0 0.0
        %1988 = vmatprep.subr.mxu0 0.0
        %1989 = vmatpush1.msra.mxu0 0.0
        %1990 = vmatprep.subr.mxu0 0.0
        %1991 = vmatpush1.msra.mxu0 0.0
        %1992 = vmatprep.subr.mxu0 0.0
        %1993 = vmatpush1.msra.mxu0 0.0
        %1994 = vmatprep.subr.mxu0 0.0
        %1995 = vmatpush1.msra.mxu0 0.0
        %1996 = vmatprep.subr.mxu0 0.0
        %1997 = vmatpush1.msra.mxu0 0.0
        %1998 = vmatprep.subr.mxu0 0.0
        %1999 = vmatpush1.msra.mxu0 0.0
        %2000 = vmatprep.subr.mxu0 0.0
        %2001 = vmatpush1.msra.mxu0 0.0
        %2002 = vmatprep.subr.mxu0 0.0
        %2003 = vmatpush1.msra.mxu0 0.0
        %2004 = vmatprep.subr.mxu0 0.0
        %2005 = vmatpush1.msra.mxu0 0.0
        %2006 = vmatprep.mubr.f32.mxu0 0.0
        %2007 = vmatmul.mubr.f32.gmra.mrb[0].mxu0 %v1936
        %v2008 = vpop.f32.mrb[0].mxu0
        %v2009 = vadd.f32 0.0, %v2008
        %v2010 = vpop.f32.mrb[0].mxu0
        %2011 = vdwg.mxu0
        %s2012 = scalar_lea.vmem %s7, 64
        %v2013 = vld [vmem:[%s2012] sm:$0xff]
        %v2014 = vld [vmem:[%s2012 + $0x8] sm:$0xff]
        %v2015 = vld [vmem:[%s2012 + $0x10] sm:$0xff]
        %v2016 = vld [vmem:[%s2012 + $0x18] sm:$0xff]
        %v2017 = vld [vmem:[%s2012 + $0x20] sm:$0xff]
        %v2018 = vld [vmem:[%s2012 + $0x28] sm:$0xff]
        %v2019 = vld [vmem:[%s2012 + $0x30] sm:$0xff]
        %v2020 = vld [vmem:[%s2012 + $0x38] sm:$0xf]
        %v2022 = vsel %vm1938, %v2020, 0
        %2024 = vmatprep.subr.mxu0 0.0
        %2025 = vmatpush1.msra.mxu0 %v2013
        %2026 = vmatprep.subr.mxu0 0.0
        %2027 = vmatpush1.msra.mxu0 %v2014
        %2028 = vmatprep.subr.mxu0 0.0
        %2029 = vmatpush1.msra.mxu0 %v2015
        %2030 = vmatprep.subr.mxu0 0.0
        %2031 = vmatpush1.msra.mxu0 %v2016
        %2032 = vmatprep.subr.mxu0 0.0
        %2033 = vmatpush1.msra.mxu0 %v2017
        %2034 = vmatprep.subr.mxu0 0.0
        %2035 = vmatpush1.msra.mxu0 %v2018
        %2036 = vmatprep.subr.mxu0 0.0
        %2037 = vmatpush1.msra.mxu0 %v2019
        %2038 = vmatprep.subr.mxu0 0.0
        %2039 = vmatpush1.msra.mxu0 %v2022
        %2040 = vmatprep.subr.mxu0 0.0
        %2041 = vmatpush1.msra.mxu0 0.0
        %2042 = vmatprep.subr.mxu0 0.0
        %2043 = vmatpush1.msra.mxu0 0.0
        %2044 = vmatprep.subr.mxu0 0.0
        %2045 = vmatpush1.msra.mxu0 0.0
        %2046 = vmatprep.subr.mxu0 0.0
        %2047 = vmatpush1.msra.mxu0 0.0
        %2048 = vmatprep.subr.mxu0 0.0
        %2049 = vmatpush1.msra.mxu0 0.0
        %2050 = vmatprep.subr.mxu0 0.0
        %2051 = vmatpush1.msra.mxu0 0.0
        %2052 = vmatprep.subr.mxu0 0.0
        %2053 = vmatpush1.msra.mxu0 0.0
        %2054 = vmatprep.subr.mxu0 0.0
        %2055 = vmatpush1.msra.mxu0 0.0
        %2056 = vmatprep.subr.mxu0 0.0
        %2057 = vmatpush1.msra.mxu0 0.0
        %2058 = vmatprep.subr.mxu0 0.0
        %2059 = vmatpush1.msra.mxu0 0.0
        %2060 = vmatprep.subr.mxu0 0.0
        %2061 = vmatpush1.msra.mxu0 0.0
        %2062 = vmatprep.subr.mxu0 0.0
        %2063 = vmatpush1.msra.mxu0 0.0
        %2064 = vmatprep.subr.mxu0 0.0
        %2065 = vmatpush1.msra.mxu0 0.0
        %2066 = vmatprep.subr.mxu0 0.0
        %2067 = vmatpush1.msra.mxu0 0.0
        %2068 = vmatprep.subr.mxu0 0.0
        %2069 = vmatpush1.msra.mxu0 0.0
        %2070 = vmatprep.subr.mxu0 0.0
        %2071 = vmatpush1.msra.mxu0 0.0
        %2072 = vmatprep.subr.mxu0 0.0
        %2073 = vmatpush1.msra.mxu0 0.0
        %2074 = vmatprep.subr.mxu0 0.0
        %2075 = vmatpush1.msra.mxu0 0.0
        %2076 = vmatprep.subr.mxu0 0.0
        %2077 = vmatpush1.msra.mxu0 0.0
        %2078 = vmatprep.subr.mxu0 0.0
        %2079 = vmatpush1.msra.mxu0 0.0
        %2080 = vmatprep.subr.mxu0 0.0
        %2081 = vmatpush1.msra.mxu0 0.0
        %2082 = vmatprep.subr.mxu0 0.0
        %2083 = vmatpush1.msra.mxu0 0.0
        %2084 = vmatprep.subr.mxu0 0.0
        %2085 = vmatpush1.msra.mxu0 0.0
        %2086 = vmatprep.subr.mxu0 0.0
        %2087 = vmatpush1.msra.mxu0 0.0
        %2088 = vmatprep.mubr.f32.mxu0 0.0
        %2089 = vmatmul.mubr.f32.gmra.mrb[0].mxu0 %v1936
        %v2090 = vpop.f32.mrb[0].mxu0
        %v2091 = vadd.f32 0.0, %v2090
        %v2092 = vpop.f32.mrb[0].mxu0
        %2093 = vdwg.mxu0
        %v2094 = vmax.f32 %v2009, %v2091
        %s2095 = scalar_lea.vmem %s7, 128
        %v2096 = vld [vmem:[%s2095] sm:$0xff]
        %v2097 = vld [vmem:[%s2095 + $0x8] sm:$0xff]
        %v2098 = vld [vmem:[%s2095 + $0x10] sm:$0xff]
        %v2099 = vld [vmem:[%s2095 + $0x18] sm:$0xff]
        %v2100 = vld [vmem:[%s2095 + $0x20] sm:$0xff]
        %v2101 = vld [vmem:[%s2095 + $0x28] sm:$0xff]
        %v2102 = vld [vmem:[%s2095 + $0x30] sm:$0xff]
        %v2103 = vld [vmem:[%s2095 + $0x38] sm:$0xf]
        %v2105 = vsel %vm1938, %v2103, 0
        %2107 = vmatprep.subr.mxu0 0.0
        %2108 = vmatpush1.msra.mxu0 %v2096
        %2109 = vmatprep.subr.mxu0 0.0
        %2110 = vmatpush1.msra.mxu0 %v2097
        %2111 = vmatprep.subr.mxu0 0.0
        %2112 = vmatpush1.msra.mxu0 %v2098
        %2113 = vmatprep.subr.mxu0 0.0
        %2114 = vmatpush1.msra.mxu0 %v2099
        %2115 = vmatprep.subr.mxu0 0.0
        %2116 = vmatpush1.msra.mxu0 %v2100
        %2117 = vmatprep.subr.mxu0 0.0
        %2118 = vmatpush1.msra.mxu0 %v2101
        %2119 = vmatprep.subr.mxu0 0.0
        %2120 = vmatpush1.msra.mxu0 %v2102
        %2121 = vmatprep.subr.mxu0 0.0
        %2122 = vmatpush1.msra.mxu0 %v2105
        %2123 = vmatprep.subr.mxu0 0.0
        %2124 = vmatpush1.msra.mxu0 0.0
        %2125 = vmatprep.subr.mxu0 0.0
        %2126 = vmatpush1.msra.mxu0 0.0
        %2127 = vmatprep.subr.mxu0 0.0
        %2128 = vmatpush1.msra.mxu0 0.0
        %2129 = vmatprep.subr.mxu0 0.0
        %2130 = vmatpush1.msra.mxu0 0.0
        %2131 = vmatprep.subr.mxu0 0.0
        %2132 = vmatpush1.msra.mxu0 0.0
        %2133 = vmatprep.subr.mxu0 0.0
        %2134 = vmatpush1.msra.mxu0 0.0
        %2135 = vmatprep.subr.mxu0 0.0
        %2136 = vmatpush1.msra.mxu0 0.0
        %2137 = vmatprep.subr.mxu0 0.0
        %2138 = vmatpush1.msra.mxu0 0.0
        %2139 = vmatprep.subr.mxu0 0.0
        %2140 = vmatpush1.msra.mxu0 0.0
        %2141 = vmatprep.subr.mxu0 0.0
        %2142 = vmatpush1.msra.mxu0 0.0
        %2143 = vmatprep.subr.mxu0 0.0
        %2144 = vmatpush1.msra.mxu0 0.0
        %2145 = vmatprep.subr.mxu0 0.0
        %2146 = vmatpush1.msra.mxu0 0.0
        %2147 = vmatprep.subr.mxu0 0.0
        %2148 = vmatpush1.msra.mxu0 0.0
        %2149 = vmatprep.subr.mxu0 0.0
        %2150 = vmatpush1.msra.mxu0 0.0
        %2151 = vmatprep.subr.mxu0 0.0
        %2152 = vmatpush1.msra.mxu0 0.0
        %2153 = vmatprep.subr.mxu0 0.0
        %2154 = vmatpush1.msra.mxu0 0.0
        %2155 = vmatprep.subr.mxu0 0.0
        %2156 = vmatpush1.msra.mxu0 0.0
        %2157 = vmatprep.subr.mxu0 0.0
        %2158 = vmatpush1.msra.mxu0 0.0
        %2159 = vmatprep.subr.mxu0 0.0
        %2160 = vmatpush1.msra.mxu0 0.0
        %2161 = vmatprep.subr.mxu0 0.0
        %2162 = vmatpush1.msra.mxu0 0.0
        %2163 = vmatprep.subr.mxu0 0.0
        %2164 = vmatpush1.msra.mxu0 0.0
        %2165 = vmatprep.subr.mxu0 0.0
        %2166 = vmatpush1.msra.mxu0 0.0
        %2167 = vmatprep.subr.mxu0 0.0
        %2168 = vmatpush1.msra.mxu0 0.0
        %2169 = vmatprep.subr.mxu0 0.0
        %2170 = vmatpush1.msra.mxu0 0.0
        %2171 = vmatprep.mubr.f32.mxu0 0.0
        %2172 = vmatmul.mubr.f32.gmra.mrb[0].mxu0 %v1936
        %v2173 = vpop.f32.mrb[0].mxu0
        %v2174 = vadd.f32 0.0, %v2173
        %v2175 = vpop.f32.mrb[0].mxu0
        %2176 = vdwg.mxu0
        %v2177 = vmax.f32 %v2094, %v2174
        %s2178 = scalar_lea.vmem %s7, 192
        %v2179 = vld [vmem:[%s2178] sm:$0xff]
        %v2180 = vld [vmem:[%s2178 + $0x8] sm:$0xff]
        %v2181 = vld [vmem:[%s2178 + $0x10] sm:$0xff]
        %v2182 = vld [vmem:[%s2178 + $0x18] sm:$0xff]
        %v2183 = vld [vmem:[%s2178 + $0x20] sm:$0xff]
        %v2184 = vld [vmem:[%s2178 + $0x28] sm:$0xff]
        %v2185 = vld [vmem:[%s2178 + $0x30] sm:$0xff]
        %v2186 = vld [vmem:[%s2178 + $0x38] sm:$0xf]
        %v2188 = vsel %vm1938, %v2186, 0
        %2190 = vmatprep.subr.mxu0 0.0
        %2191 = vmatpush1.msra.mxu0 %v2179
        %2192 = vmatprep.subr.mxu0 0.0
        %2193 = vmatpush1.msra.mxu0 %v2180
        %2194 = vmatprep.subr.mxu0 0.0
        %2195 = vmatpush1.msra.mxu0 %v2181
        %2196 = vmatprep.subr.mxu0 0.0
        %2197 = vmatpush1.msra.mxu0 %v2182
        %2198 = vmatprep.subr.mxu0 0.0
        %2199 = vmatpush1.msra.mxu0 %v2183
        %2200 = vmatprep.subr.mxu0 0.0
        %2201 = vmatpush1.msra.mxu0 %v2184
        %2202 = vmatprep.subr.mxu0 0.0
        %2203 = vmatpush1.msra.mxu0 %v2185
        %2204 = vmatprep.subr.mxu0 0.0
        %2205 = vmatpush1.msra.mxu0 %v2188
        %2206 = vmatprep.subr.mxu0 0.0
        %2207 = vmatpush1.msra.mxu0 0.0
        %2208 = vmatprep.subr.mxu0 0.0
        %2209 = vmatpush1.msra.mxu0 0.0
        %2210 = vmatprep.subr.mxu0 0.0
        %2211 = vmatpush1.msra.mxu0 0.0
        %2212 = vmatprep.subr.mxu0 0.0
        %2213 = vmatpush1.msra.mxu0 0.0
        %2214 = vmatprep.subr.mxu0 0.0
        %2215 = vmatpush1.msra.mxu0 0.0
        %2216 = vmatprep.subr.mxu0 0.0
        %2217 = vmatpush1.msra.mxu0 0.0
        %2218 = vmatprep.subr.mxu0 0.0
        %2219 = vmatpush1.msra.mxu0 0.0
        %2220 = vmatprep.subr.mxu0 0.0
        %2221 = vmatpush1.msra.mxu0 0.0
        %2222 = vmatprep.subr.mxu0 0.0
        %2223 = vmatpush1.msra.mxu0 0.0
        %2224 = vmatprep.subr.mxu0 0.0
        %2225 = vmatpush1.msra.mxu0 0.0
        %2226 = vmatprep.subr.mxu0 0.0
        %2227 = vmatpush1.msra.mxu0 0.0
        %2228 = vmatprep.subr.mxu0 0.0
        %2229 = vmatpush1.msra.mxu0 0.0
        %2230 = vmatprep.subr.mxu0 0.0
        %2231 = vmatpush1.msra.mxu0 0.0
        %2232 = vmatprep.subr.mxu0 0.0
        %2233 = vmatpush1.msra.mxu0 0.0
        %2234 = vmatprep.subr.mxu0 0.0
        %2235 = vmatpush1.msra.mxu0 0.0
        %2236 = vmatprep.subr.mxu0 0.0
        %2237 = vmatpush1.msra.mxu0 0.0
        %2238 = vmatprep.subr.mxu0 0.0
        %2239 = vmatpush1.msra.mxu0 0.0
        %2240 = vmatprep.subr.mxu0 0.0
        %2241 = vmatpush1.msra.mxu0 0.0
        %2242 = vmatprep.subr.mxu0 0.0
        %2243 = vmatpush1.msra.mxu0 0.0
        %2244 = vmatprep.subr.mxu0 0.0
        %2245 = vmatpush1.msra.mxu0 0.0
        %2246 = vmatprep.subr.mxu0 0.0
        %2247 = vmatpush1.msra.mxu0 0.0
        %2248 = vmatprep.subr.mxu0 0.0
        %2249 = vmatpush1.msra.mxu0 0.0
        %2250 = vmatprep.subr.mxu0 0.0
        %2251 = vmatpush1.msra.mxu0 0.0
        %2252 = vmatprep.subr.mxu0 0.0
        %2253 = vmatpush1.msra.mxu0 0.0
        %2254 = vmatprep.mubr.f32.mxu0 0.0
        %2255 = vmatmul.mubr.f32.gmra.mrb[0].mxu0 %v1936
        %v2256 = vpop.f32.mrb[0].mxu0
        %v2257 = vadd.f32 0.0, %v2256
        %v2258 = vpop.f32.mrb[0].mxu0
        %2259 = vdwg.mxu0
        %v2260 = vmax.f32 %v2177, %v2257
        %s2261 = scalar_lea.vmem %s7, 256
        %v2262 = vld [vmem:[%s2261] sm:$0xff]
        %v2263 = vld [vmem:[%s2261 + $0x8] sm:$0xff]
        %v2264 = vld [vmem:[%s2261 + $0x10] sm:$0xff]
        %v2265 = vld [vmem:[%s2261 + $0x18] sm:$0xff]
        %v2266 = vld [vmem:[%s2261 + $0x20] sm:$0xff]
        %v2267 = vld [vmem:[%s2261 + $0x28] sm:$0xff]
        %v2268 = vld [vmem:[%s2261 + $0x30] sm:$0xff]
        %v2269 = vld [vmem:[%s2261 + $0x38] sm:$0xf]
        %v2271 = vsel %vm1938, %v2269, 0
        %2273 = vmatprep.subr.mxu0 0.0
        %2274 = vmatpush1.msra.mxu0 %v2262
        %2275 = vmatprep.subr.mxu0 0.0
        %2276 = vmatpush1.msra.mxu0 %v2263
        %2277 = vmatprep.subr.mxu0 0.0
        %2278 = vmatpush1.msra.mxu0 %v2264
        %2279 = vmatprep.subr.mxu0 0.0
        %2280 = vmatpush1.msra.mxu0 %v2265
        %2281 = vmatprep.subr.mxu0 0.0
        %2282 = vmatpush1.msra.mxu0 %v2266
        %2283 = vmatprep.subr.mxu0 0.0
        %2284 = vmatpush1.msra.mxu0 %v2267
        %2285 = vmatprep.subr.mxu0 0.0
        %2286 = vmatpush1.msra.mxu0 %v2268
        %2287 = vmatprep.subr.mxu0 0.0
        %2288 = vmatpush1.msra.mxu0 %v2271
        %2289 = vmatprep.subr.mxu0 0.0
        %2290 = vmatpush1.msra.mxu0 0.0
        %2291 = vmatprep.subr.mxu0 0.0
        %2292 = vmatpush1.msra.mxu0 0.0
        %2293 = vmatprep.subr.mxu0 0.0
        %2294 = vmatpush1.msra.mxu0 0.0
        %2295 = vmatprep.subr.mxu0 0.0
        %2296 = vmatpush1.msra.mxu0 0.0
        %2297 = vmatprep.subr.mxu0 0.0
        %2298 = vmatpush1.msra.mxu0 0.0
        %2299 = vmatprep.subr.mxu0 0.0
        %2300 = vmatpush1.msra.mxu0 0.0
        %2301 = vmatprep.subr.mxu0 0.0
        %2302 = vmatpush1.msra.mxu0 0.0
        %2303 = vmatprep.subr.mxu0 0.0
        %2304 = vmatpush1.msra.mxu0 0.0
        %2305 = vmatprep.subr.mxu0 0.0
        %2306 = vmatpush1.msra.mxu0 0.0
        %2307 = vmatprep.subr.mxu0 0.0
        %2308 = vmatpush1.msra.mxu0 0.0
        %2309 = vmatprep.subr.mxu0 0.0
        %2310 = vmatpush1.msra.mxu0 0.0
        %2311 = vmatprep.subr.mxu0 0.0
        %2312 = vmatpush1.msra.mxu0 0.0
        %2313 = vmatprep.subr.mxu0 0.0
        %2314 = vmatpush1.msra.mxu0 0.0
        %2315 = vmatprep.subr.mxu0 0.0
        %2316 = vmatpush1.msra.mxu0 0.0
        %2317 = vmatprep.subr.mxu0 0.0
        %2318 = vmatpush1.msra.mxu0 0.0
        %2319 = vmatprep.subr.mxu0 0.0
        %2320 = vmatpush1.msra.mxu0 0.0
        %2321 = vmatprep.subr.mxu0 0.0
        %2322 = vmatpush1.msra.mxu0 0.0
        %2323 = vmatprep.subr.mxu0 0.0
        %2324 = vmatpush1.msra.mxu0 0.0
        %2325 = vmatprep.subr.mxu0 0.0
        %2326 = vmatpush1.msra.mxu0 0.0
        %2327 = vmatprep.subr.mxu0 0.0
        %2328 = vmatpush1.msra.mxu0 0.0
        %2329 = vmatprep.subr.mxu0 0.0
        %2330 = vmatpush1.msra.mxu0 0.0
        %2331 = vmatprep.subr.mxu0 0.0
        %2332 = vmatpush1.msra.mxu0 0.0
        %2333 = vmatprep.subr.mxu0 0.0
        %2334 = vmatpush1.msra.mxu0 0.0
        %2335 = vmatprep.subr.mxu0 0.0
        %2336 = vmatpush1.msra.mxu0 0.0
        %2337 = vmatprep.mubr.f32.mxu0 0.0
        %2338 = vmatmul.mubr.f32.gmra.mrb[0].mxu0 %v1936
        %v2339 = vpop.f32.mrb[0].mxu0
        %v2340 = vadd.f32 0.0, %v2339
        %v2341 = vpop.f32.mrb[0].mxu0
        %2342 = vdwg.mxu0
        %v2343 = vmax.f32 %v2260, %v2340
        %s2344 = scalar_lea.vmem %s7, 320
        %v2345 = vld [vmem:[%s2344] sm:$0xff]
        %v2346 = vld [vmem:[%s2344 + $0x8] sm:$0xff]
        %v2347 = vld [vmem:[%s2344 + $0x10] sm:$0xff]
        %v2348 = vld [vmem:[%s2344 + $0x18] sm:$0xff]
        %v2349 = vld [vmem:[%s2344 + $0x20] sm:$0xff]
        %v2350 = vld [vmem:[%s2344 + $0x28] sm:$0xff]
        %v2351 = vld [vmem:[%s2344 + $0x30] sm:$0xff]
        %v2352 = vld [vmem:[%s2344 + $0x38] sm:$0xf]
        %v2354 = vsel %vm1938, %v2352, 0
        %2356 = vmatprep.subr.mxu0 0.0
        %2357 = vmatpush1.msra.mxu0 %v2345
        %2358 = vmatprep.subr.mxu0 0.0
        %2359 = vmatpush1.msra.mxu0 %v2346
        %2360 = vmatprep.subr.mxu0 0.0
        %2361 = vmatpush1.msra.mxu0 %v2347
        %2362 = vmatprep.subr.mxu0 0.0
        %2363 = vmatpush1.msra.mxu0 %v2348
        %2364 = vmatprep.subr.mxu0 0.0
        %2365 = vmatpush1.msra.mxu0 %v2349
        %2366 = vmatprep.subr.mxu0 0.0
        %2367 = vmatpush1.msra.mxu0 %v2350
        %2368 = vmatprep.subr.mxu0 0.0
        %2369 = vmatpush1.msra.mxu0 %v2351
        %2370 = vmatprep.subr.mxu0 0.0
        %2371 = vmatpush1.msra.mxu0 %v2354
        %2372 = vmatprep.subr.mxu0 0.0
        %2373 = vmatpush1.msra.mxu0 0.0
        %2374 = vmatprep.subr.mxu0 0.0
        %2375 = vmatpush1.msra.mxu0 0.0
        %2376 = vmatprep.subr.mxu0 0.0
        %2377 = vmatpush1.msra.mxu0 0.0
        %2378 = vmatprep.subr.mxu0 0.0
        %2379 = vmatpush1.msra.mxu0 0.0
        %2380 = vmatprep.subr.mxu0 0.0
        %2381 = vmatpush1.msra.mxu0 0.0
        %2382 = vmatprep.subr.mxu0 0.0
        %2383 = vmatpush1.msra.mxu0 0.0
        %2384 = vmatprep.subr.mxu0 0.0
        %2385 = vmatpush1.msra.mxu0 0.0
        %2386 = vmatprep.subr.mxu0 0.0
        %2387 = vmatpush1.msra.mxu0 0.0
        %2388 = vmatprep.subr.mxu0 0.0
        %2389 = vmatpush1.msra.mxu0 0.0
        %2390 = vmatprep.subr.mxu0 0.0
        %2391 = vmatpush1.msra.mxu0 0.0
        %2392 = vmatprep.subr.mxu0 0.0
        %2393 = vmatpush1.msra.mxu0 0.0
        %2394 = vmatprep.subr.mxu0 0.0
        %2395 = vmatpush1.msra.mxu0 0.0
        %2396 = vmatprep.subr.mxu0 0.0
        %2397 = vmatpush1.msra.mxu0 0.0
        %2398 = vmatprep.subr.mxu0 0.0
        %2399 = vmatpush1.msra.mxu0 0.0
        %2400 = vmatprep.subr.mxu0 0.0
        %2401 = vmatpush1.msra.mxu0 0.0
        %2402 = vmatprep.subr.mxu0 0.0
        %2403 = vmatpush1.msra.mxu0 0.0
        %2404 = vmatprep.subr.mxu0 0.0
        %2405 = vmatpush1.msra.mxu0 0.0
        %2406 = vmatprep.subr.mxu0 0.0
        %2407 = vmatpush1.msra.mxu0 0.0
        %2408 = vmatprep.subr.mxu0 0.0
        %2409 = vmatpush1.msra.mxu0 0.0
        %2410 = vmatprep.subr.mxu0 0.0
        %2411 = vmatpush1.msra.mxu0 0.0
        %2412 = vmatprep.subr.mxu0 0.0
        %2413 = vmatpush1.msra.mxu0 0.0
        %2414 = vmatprep.subr.mxu0 0.0
        %2415 = vmatpush1.msra.mxu0 0.0
        %2416 = vmatprep.subr.mxu0 0.0
        %2417 = vmatpush1.msra.mxu0 0.0
        %2418 = vmatprep.subr.mxu0 0.0
        %2419 = vmatpush1.msra.mxu0 0.0
        %2420 = vmatprep.mubr.f32.mxu0 0.0
        %2421 = vmatmul.mubr.f32.gmra.mrb[0].mxu0 %v1936
        %v2422 = vpop.f32.mrb[0].mxu0
        %v2423 = vadd.f32 0.0, %v2422
        %v2424 = vpop.f32.mrb[0].mxu0
        %2425 = vdwg.mxu0
        %v2426 = vmax.f32 %v2343, %v2423
        %s2427 = scalar_lea.vmem %s7, 384
        %v2428 = vld [vmem:[%s2427] sm:$0xff]
        %v2429 = vld [vmem:[%s2427 + $0x8] sm:$0xff]
        %v2430 = vld [vmem:[%s2427 + $0x10] sm:$0xff]
        %v2431 = vld [vmem:[%s2427 + $0x18] sm:$0xff]
        %v2432 = vld [vmem:[%s2427 + $0x20] sm:$0xff]
        %v2433 = vld [vmem:[%s2427 + $0x28] sm:$0xff]
        %v2434 = vld [vmem:[%s2427 + $0x30] sm:$0xff]
        %v2435 = vld [vmem:[%s2427 + $0x38] sm:$0xf]
        %v2437 = vsel %vm1938, %v2435, 0
        %2439 = vmatprep.subr.mxu0 0.0
        %2440 = vmatpush1.msra.mxu0 %v2428
        %2441 = vmatprep.subr.mxu0 0.0
        %2442 = vmatpush1.msra.mxu0 %v2429
        %2443 = vmatprep.subr.mxu0 0.0
        %2444 = vmatpush1.msra.mxu0 %v2430
        %2445 = vmatprep.subr.mxu0 0.0
        %2446 = vmatpush1.msra.mxu0 %v2431
        %2447 = vmatprep.subr.mxu0 0.0
        %2448 = vmatpush1.msra.mxu0 %v2432
        %2449 = vmatprep.subr.mxu0 0.0
        %2450 = vmatpush1.msra.mxu0 %v2433
        %2451 = vmatprep.subr.mxu0 0.0
        %2452 = vmatpush1.msra.mxu0 %v2434
        %2453 = vmatprep.subr.mxu0 0.0
        %2454 = vmatpush1.msra.mxu0 %v2437
        %2455 = vmatprep.subr.mxu0 0.0
        %2456 = vmatpush1.msra.mxu0 0.0
        %2457 = vmatprep.subr.mxu0 0.0
        %2458 = vmatpush1.msra.mxu0 0.0
        %2459 = vmatprep.subr.mxu0 0.0
        %2460 = vmatpush1.msra.mxu0 0.0
        %2461 = vmatprep.subr.mxu0 0.0
        %2462 = vmatpush1.msra.mxu0 0.0
        %2463 = vmatprep.subr.mxu0 0.0
        %2464 = vmatpush1.msra.mxu0 0.0
        %2465 = vmatprep.subr.mxu0 0.0
        %2466 = vmatpush1.msra.mxu0 0.0
        %2467 = vmatprep.subr.mxu0 0.0
        %2468 = vmatpush1.msra.mxu0 0.0
        %2469 = vmatprep.subr.mxu0 0.0
        %2470 = vmatpush1.msra.mxu0 0.0
        %2471 = vmatprep.subr.mxu0 0.0
        %2472 = vmatpush1.msra.mxu0 0.0
        %2473 = vmatprep.subr.mxu0 0.0
        %2474 = vmatpush1.msra.mxu0 0.0
        %2475 = vmatprep.subr.mxu0 0.0
        %2476 = vmatpush1.msra.mxu0 0.0
        %2477 = vmatprep.subr.mxu0 0.0
        %2478 = vmatpush1.msra.mxu0 0.0
        %2479 = vmatprep.subr.mxu0 0.0
        %2480 = vmatpush1.msra.mxu0 0.0
        %2481 = vmatprep.subr.mxu0 0.0
        %2482 = vmatpush1.msra.mxu0 0.0
        %2483 = vmatprep.subr.mxu0 0.0
        %2484 = vmatpush1.msra.mxu0 0.0
        %2485 = vmatprep.subr.mxu0 0.0
        %2486 = vmatpush1.msra.mxu0 0.0
        %2487 = vmatprep.subr.mxu0 0.0
        %2488 = vmatpush1.msra.mxu0 0.0
        %2489 = vmatprep.subr.mxu0 0.0
        %2490 = vmatpush1.msra.mxu0 0.0
        %2491 = vmatprep.subr.mxu0 0.0
        %2492 = vmatpush1.msra.mxu0 0.0
        %2493 = vmatprep.subr.mxu0 0.0
        %2494 = vmatpush1.msra.mxu0 0.0
        %2495 = vmatprep.subr.mxu0 0.0
        %2496 = vmatpush1.msra.mxu0 0.0
        %2497 = vmatprep.subr.mxu0 0.0
        %2498 = vmatpush1.msra.mxu0 0.0
        %2499 = vmatprep.subr.mxu0 0.0
        %2500 = vmatpush1.msra.mxu0 0.0
        %2501 = vmatprep.subr.mxu0 0.0
        %2502 = vmatpush1.msra.mxu0 0.0
        %2503 = vmatprep.mubr.f32.mxu0 0.0
        %2504 = vmatmul.mubr.f32.gmra.mrb[0].mxu0 %v1936
        %v2505 = vpop.f32.mrb[0].mxu0
        %v2506 = vadd.f32 0.0, %v2505
        %v2507 = vpop.f32.mrb[0].mxu0
        %2508 = vdwg.mxu0
        %v2509 = vmax.f32 %v2426, %v2506
        %v2510 = vld [vmem:[%s8] sm:$0x7]
        %vm2511 = vcmask 23552
        %v2513 = vsel %vm2511, %v2510, 0
        %vm2515 = vcmask 1042432
        %v2517 = vsel %vm2515, %v2509, 0
        %2519 = vmatprep.subr.mxu0 0.0
        %2520 = vmatpush1.msra.mxu0 %v2517
        %2521 = vmatprep.subr.mxu0 0.0
        %2522 = vmatpush1.msra.mxu0 0.0
        %2523 = vmatprep.subr.mxu0 0.0
        %2524 = vmatpush1.msra.mxu0 0.0
        %2525 = vmatprep.subr.mxu0 0.0
        %2526 = vmatpush1.msra.mxu0 0.0
        %2527 = vmatprep.subr.mxu0 0.0
        %2528 = vmatpush1.msra.mxu0 0.0
        %2529 = vmatprep.subr.mxu0 0.0
        %2530 = vmatpush1.msra.mxu0 0.0
        %2531 = vmatprep.subr.mxu0 0.0
        %2532 = vmatpush1.msra.mxu0 0.0
        %2533 = vmatprep.subr.mxu0 0.0
        %2534 = vmatpush1.msra.mxu0 0.0
        %2535 = vmatprep.subr.mxu0 0.0
        %2536 = vmatpush1.msra.mxu0 0.0
        %2537 = vmatprep.subr.mxu0 0.0
        %2538 = vmatpush1.msra.mxu0 0.0
        %2539 = vmatprep.subr.mxu0 0.0
        %2540 = vmatpush1.msra.mxu0 0.0
        %2541 = vmatprep.subr.mxu0 0.0
        %2542 = vmatpush1.msra.mxu0 0.0
        %2543 = vmatprep.subr.mxu0 0.0
        %2544 = vmatpush1.msra.mxu0 0.0
        %2545 = vmatprep.subr.mxu0 0.0
        %2546 = vmatpush1.msra.mxu0 0.0
        %2547 = vmatprep.subr.mxu0 0.0
        %2548 = vmatpush1.msra.mxu0 0.0
        %2549 = vmatprep.subr.mxu0 0.0
        %2550 = vmatpush1.msra.mxu0 0.0
        %2551 = vmatprep.subr.mxu0 0.0
        %2552 = vmatpush1.msra.mxu0 0.0
        %2553 = vmatprep.subr.mxu0 0.0
        %2554 = vmatpush1.msra.mxu0 0.0
        %2555 = vmatprep.subr.mxu0 0.0
        %2556 = vmatpush1.msra.mxu0 0.0
        %2557 = vmatprep.subr.mxu0 0.0
        %2558 = vmatpush1.msra.mxu0 0.0
        %2559 = vmatprep.subr.mxu0 0.0
        %2560 = vmatpush1.msra.mxu0 0.0
        %2561 = vmatprep.subr.mxu0 0.0
        %2562 = vmatpush1.msra.mxu0 0.0
        %2563 = vmatprep.subr.mxu0 0.0
        %2564 = vmatpush1.msra.mxu0 0.0
        %2565 = vmatprep.subr.mxu0 0.0
        %2566 = vmatpush1.msra.mxu0 0.0
        %2567 = vmatprep.subr.mxu0 0.0
        %2568 = vmatpush1.msra.mxu0 0.0
        %2569 = vmatprep.subr.mxu0 0.0
        %2570 = vmatpush1.msra.mxu0 0.0
        %2571 = vmatprep.subr.mxu0 0.0
        %2572 = vmatpush1.msra.mxu0 0.0
        %2573 = vmatprep.subr.mxu0 0.0
        %2574 = vmatpush1.msra.mxu0 0.0
        %2575 = vmatprep.subr.mxu0 0.0
        %2576 = vmatpush1.msra.mxu0 0.0
        %2577 = vmatprep.subr.mxu0 0.0
        %2578 = vmatpush1.msra.mxu0 0.0
        %2579 = vmatprep.subr.mxu0 0.0
        %2580 = vmatpush1.msra.mxu0 0.0
        %2581 = vmatprep.subr.mxu0 0.0
        %2582 = vmatpush1.msra.mxu0 0.0
        %2583 = vmatprep.mubr.f32.mxu0 0.0
        %2584 = vmatmul.mubr.f32.gmra.mrb[0].mxu0 %v2513
        %v2585 = vpop.f32.mrb[0].mxu0
        %v2586 = vadd.f32 0.0, %v2585
        %v2587 = vpop.f32.mrb[0].mxu0
        %2588 = vdwg.mxu0
        %v2589 = vld [vmem:[%s9] sm:$0xff]
        %v2590 = vld [vmem:[%s9 + $0x8] sm:$0xf]
        %s2591 = scalar_lea.vmem %s8, 4
        %v2592 = vld [vmem:[%s2591] sm:$0x7]
        %v2594 = vsel %vm2511, %v2592, 0
        %2596 = vmatprep.subr.mxu0 0.0
        %2597 = vmatpush1.msra.mxu0 %v2517
        %2598 = vmatprep.subr.mxu0 0.0
        %2599 = vmatpush1.msra.mxu0 0.0
        %2600 = vmatprep.subr.mxu0 0.0
        %2601 = vmatpush1.msra.mxu0 0.0
        %2602 = vmatprep.subr.mxu0 0.0
        %2603 = vmatpush1.msra.mxu0 0.0
        %2604 = vmatprep.subr.mxu0 0.0
        %2605 = vmatpush1.msra.mxu0 0.0
        %2606 = vmatprep.subr.mxu0 0.0
        %2607 = vmatpush1.msra.mxu0 0.0
        %2608 = vmatprep.subr.mxu0 0.0
        %2609 = vmatpush1.msra.mxu0 0.0
        %2610 = vmatprep.subr.mxu0 0.0
        %2611 = vmatpush1.msra.mxu0 0.0
        %2612 = vmatprep.subr.mxu0 0.0
        %2613 = vmatpush1.msra.mxu0 0.0
        %2614 = vmatprep.subr.mxu0 0.0
        %2615 = vmatpush1.msra.mxu0 0.0
        %2616 = vmatprep.subr.mxu0 0.0
        %2617 = vmatpush1.msra.mxu0 0.0
        %2618 = vmatprep.subr.mxu0 0.0
        %2619 = vmatpush1.msra.mxu0 0.0
        %2620 = vmatprep.subr.mxu0 0.0
        %2621 = vmatpush1.msra.mxu0 0.0
        %2622 = vmatprep.subr.mxu0 0.0
        %2623 = vmatpush1.msra.mxu0 0.0
        %2624 = vmatprep.subr.mxu0 0.0
        %2625 = vmatpush1.msra.mxu0 0.0
        %2626 = vmatprep.subr.mxu0 0.0
        %2627 = vmatpush1.msra.mxu0 0.0
        %2628 = vmatprep.subr.mxu0 0.0
        %2629 = vmatpush1.msra.mxu0 0.0
        %2630 = vmatprep.subr.mxu0 0.0
        %2631 = vmatpush1.msra.mxu0 0.0
        %2632 = vmatprep.subr.mxu0 0.0
        %2633 = vmatpush1.msra.mxu0 0.0
        %2634 = vmatprep.subr.mxu0 0.0
        %2635 = vmatpush1.msra.mxu0 0.0
        %2636 = vmatprep.subr.mxu0 0.0
        %2637 = vmatpush1.msra.mxu0 0.0
        %2638 = vmatprep.subr.mxu0 0.0
        %2639 = vmatpush1.msra.mxu0 0.0
        %2640 = vmatprep.subr.mxu0 0.0
        %2641 = vmatpush1.msra.mxu0 0.0
        %2642 = vmatprep.subr.mxu0 0.0
        %2643 = vmatpush1.msra.mxu0 0.0
        %2644 = vmatprep.subr.mxu0 0.0
        %2645 = vmatpush1.msra.mxu0 0.0
        %2646 = vmatprep.subr.mxu0 0.0
        %2647 = vmatpush1.msra.mxu0 0.0
        %2648 = vmatprep.subr.mxu0 0.0
        %2649 = vmatpush1.msra.mxu0 0.0
        %2650 = vmatprep.subr.mxu0 0.0
        %2651 = vmatpush1.msra.mxu0 0.0
        %2652 = vmatprep.subr.mxu0 0.0
        %2653 = vmatpush1.msra.mxu0 0.0
        %2654 = vmatprep.subr.mxu0 0.0
        %2655 = vmatpush1.msra.mxu0 0.0
        %2656 = vmatprep.subr.mxu0 0.0
        %2657 = vmatpush1.msra.mxu0 0.0
        %2658 = vmatprep.subr.mxu0 0.0
        %2659 = vmatpush1.msra.mxu0 0.0
        %2660 = vmatprep.mubr.f32.mxu0 0.0
        %2661 = vmatmul.mubr.f32.gmra.mrb[0].mxu0 %v2594
        %v2662 = vpop.f32.mrb[0].mxu0
        %v2663 = vadd.f32 0.0, %v2662
        %v2664 = vpop.f32.mrb[0].mxu0
        %2665 = vdwg.mxu0
        %s2666 = scalar_lea.vmem %s9, 16
        %v2667 = vld [vmem:[%s2666] sm:$0xff]
        %v2668 = vld [vmem:[%s2666 + $0x8] sm:$0xf]
        %vm2669 = vcmask 97280
        %v2671 = vsel %vm2669, %v2663, 0
        %v2674 = vsel %vm1938, %v2668, 0
        %2676 = vmatprep.subr.mxu0 0.0
        %2677 = vmatpush1.msra.mxu0 %v2667
        %2678 = vmatprep.subr.mxu0 0.0
        %2679 = vmatpush1.msra.mxu0 %v2674
        %2680 = vmatprep.subr.mxu0 0.0
        %2681 = vmatpush1.msra.mxu0 0.0
        %2682 = vmatprep.subr.mxu0 0.0
        %2683 = vmatpush1.msra.mxu0 0.0
        %2684 = vmatprep.subr.mxu0 0.0
        %2685 = vmatpush1.msra.mxu0 0.0
        %2686 = vmatprep.subr.mxu0 0.0
        %2687 = vmatpush1.msra.mxu0 0.0
        %2688 = vmatprep.subr.mxu0 0.0
        %2689 = vmatpush1.msra.mxu0 0.0
        %2690 = vmatprep.subr.mxu0 0.0
        %2691 = vmatpush1.msra.mxu0 0.0
        %2692 = vmatprep.subr.mxu0 0.0
        %2693 = vmatpush1.msra.mxu0 0.0
        %2694 = vmatprep.subr.mxu0 0.0
        %2695 = vmatpush1.msra.mxu0 0.0
        %2696 = vmatprep.subr.mxu0 0.0
        %2697 = vmatpush1.msra.mxu0 0.0
        %2698 = vmatprep.subr.mxu0 0.0
        %2699 = vmatpush1.msra.mxu0 0.0
        %2700 = vmatprep.subr.mxu0 0.0
        %2701 = vmatpush1.msra.mxu0 0.0
        %2702 = vmatprep.subr.mxu0 0.0
        %2703 = vmatpush1.msra.mxu0 0.0
        %2704 = vmatprep.subr.mxu0 0.0
        %2705 = vmatpush1.msra.mxu0 0.0
        %2706 = vmatprep.subr.mxu0 0.0
        %2707 = vmatpush1.msra.mxu0 0.0
        %2708 = vmatprep.subr.mxu0 0.0
        %2709 = vmatpush1.msra.mxu0 0.0
        %2710 = vmatprep.subr.mxu0 0.0
        %2711 = vmatpush1.msra.mxu0 0.0
        %2712 = vmatprep.subr.mxu0 0.0
        %2713 = vmatpush1.msra.mxu0 0.0
        %2714 = vmatprep.subr.mxu0 0.0
        %2715 = vmatpush1.msra.mxu0 0.0
        %2716 = vmatprep.subr.mxu0 0.0
        %2717 = vmatpush1.msra.mxu0 0.0
        %2718 = vmatprep.subr.mxu0 0.0
        %2719 = vmatpush1.msra.mxu0 0.0
        %2720 = vmatprep.subr.mxu0 0.0
        %2721 = vmatpush1.msra.mxu0 0.0
        %2722 = vmatprep.subr.mxu0 0.0
        %2723 = vmatpush1.msra.mxu0 0.0
        %2724 = vmatprep.subr.mxu0 0.0
        %2725 = vmatpush1.msra.mxu0 0.0
        %2726 = vmatprep.subr.mxu0 0.0
        %2727 = vmatpush1.msra.mxu0 0.0
        %2728 = vmatprep.subr.mxu0 0.0
        %2729 = vmatpush1.msra.mxu0 0.0
        %2730 = vmatprep.subr.mxu0 0.0
        %2731 = vmatpush1.msra.mxu0 0.0
        %2732 = vmatprep.subr.mxu0 0.0
        %2733 = vmatpush1.msra.mxu0 0.0
        %2734 = vmatprep.subr.mxu0 0.0
        %2735 = vmatpush1.msra.mxu0 0.0
        %2736 = vmatprep.subr.mxu0 0.0
        %2737 = vmatpush1.msra.mxu0 0.0
        %2738 = vmatprep.subr.mxu0 0.0
        %2739 = vmatpush1.msra.mxu0 0.0
        %2740 = vmatprep.mubr.f32.mxu0 0.0
        %2741 = vmatmul.mubr.f32.gmra.mrb[0].mxu0 %v2671
        %v2742 = vpop.f32.mrb[0].mxu0
        %v2743 = vadd.f32 0.0, %v2742
        %v2744 = vpop.f32.mrb[0].mxu0
        %2745 = vdwg.mxu0
        %v2747 = vsel %vm2669, %v2586, 0
        %v2750 = vsel %vm1938, %v2590, 0
        %2752 = vmatprep.subr.mxu0 0.0
        %2753 = vmatpush1.msra.mxu0 %v2589
        %2754 = vmatprep.subr.mxu0 0.0
        %2755 = vmatpush1.msra.mxu0 %v2750
        %2756 = vmatprep.subr.mxu0 0.0
        %2757 = vmatpush1.msra.mxu0 0.0
        %2758 = vmatprep.subr.mxu0 0.0
        %2759 = vmatpush1.msra.mxu0 0.0
        %2760 = vmatprep.subr.mxu0 0.0
        %2761 = vmatpush1.msra.mxu0 0.0
        %2762 = vmatprep.subr.mxu0 0.0
        %2763 = vmatpush1.msra.mxu0 0.0
        %2764 = vmatprep.subr.mxu0 0.0
        %2765 = vmatpush1.msra.mxu0 0.0
        %2766 = vmatprep.subr.mxu0 0.0
        %2767 = vmatpush1.msra.mxu0 0.0
        %2768 = vmatprep.subr.mxu0 0.0
        %2769 = vmatpush1.msra.mxu0 0.0
        %2770 = vmatprep.subr.mxu0 0.0
        %2771 = vmatpush1.msra.mxu0 0.0
        %2772 = vmatprep.subr.mxu0 0.0
        %2773 = vmatpush1.msra.mxu0 0.0
        %2774 = vmatprep.subr.mxu0 0.0
        %2775 = vmatpush1.msra.mxu0 0.0
        %2776 = vmatprep.subr.mxu0 0.0
        %2777 = vmatpush1.msra.mxu0 0.0
        %2778 = vmatprep.subr.mxu0 0.0
        %2779 = vmatpush1.msra.mxu0 0.0
        %2780 = vmatprep.subr.mxu0 0.0
        %2781 = vmatpush1.msra.mxu0 0.0
        %2782 = vmatprep.subr.mxu0 0.0
        %2783 = vmatpush1.msra.mxu0 0.0
        %2784 = vmatprep.subr.mxu0 0.0
        %2785 = vmatpush1.msra.mxu0 0.0
        %2786 = vmatprep.subr.mxu0 0.0
        %2787 = vmatpush1.msra.mxu0 0.0
        %2788 = vmatprep.subr.mxu0 0.0
        %2789 = vmatpush1.msra.mxu0 0.0
        %2790 = vmatprep.subr.mxu0 0.0
        %2791 = vmatpush1.msra.mxu0 0.0
        %2792 = vmatprep.subr.mxu0 0.0
        %2793 = vmatpush1.msra.mxu0 0.0
        %2794 = vmatprep.subr.mxu0 0.0
        %2795 = vmatpush1.msra.mxu0 0.0
        %2796 = vmatprep.subr.mxu0 0.0
        %2797 = vmatpush1.msra.mxu0 0.0
        %2798 = vmatprep.subr.mxu0 0.0
        %2799 = vmatpush1.msra.mxu0 0.0
        %2800 = vmatprep.subr.mxu0 0.0
        %2801 = vmatpush1.msra.mxu0 0.0
        %2802 = vmatprep.subr.mxu0 0.0
        %2803 = vmatpush1.msra.mxu0 0.0
        %2804 = vmatprep.subr.mxu0 0.0
        %2805 = vmatpush1.msra.mxu0 0.0
        %2806 = vmatprep.subr.mxu0 0.0
        %2807 = vmatpush1.msra.mxu0 0.0
        %2808 = vmatprep.subr.mxu0 0.0
        %2809 = vmatpush1.msra.mxu0 0.0
        %2810 = vmatprep.subr.mxu0 0.0
        %2811 = vmatpush1.msra.mxu0 0.0
        %2812 = vmatprep.subr.mxu0 0.0
        %2813 = vmatpush1.msra.mxu0 0.0
        %2814 = vmatprep.subr.mxu0 0.0
        %2815 = vmatpush1.msra.mxu0 0.0
        %2816 = vmatprep.mubr.f32.mxu0 0.0
        %2817 = vmatmul.mubr.f32.gmra.mrb[0].mxu0 %v2747
        %v2818 = vpop.f32.mrb[0].mxu0
        %v2819 = vadd.f32 %v2743, %v2818
        %v2820 = vpop.f32.mrb[0].mxu0
        %2821 = vdwg.mxu0
        %s2822 = scalar_lea.vmem %s8, 8
        %v2823 = vld [vmem:[%s2822] sm:$0x7]
        %v2825 = vsel %vm2511, %v2823, 0
        %2827 = vmatprep.subr.mxu0 0.0
        %2828 = vmatpush1.msra.mxu0 %v2517
        %2829 = vmatprep.subr.mxu0 0.0
        %2830 = vmatpush1.msra.mxu0 0.0
        %2831 = vmatprep.subr.mxu0 0.0
        %2832 = vmatpush1.msra.mxu0 0.0
        %2833 = vmatprep.subr.mxu0 0.0
        %2834 = vmatpush1.msra.mxu0 0.0
        %2835 = vmatprep.subr.mxu0 0.0
        %2836 = vmatpush1.msra.mxu0 0.0
        %2837 = vmatprep.subr.mxu0 0.0
        %2838 = vmatpush1.msra.mxu0 0.0
        %2839 = vmatprep.subr.mxu0 0.0
        %2840 = vmatpush1.msra.mxu0 0.0
        %2841 = vmatprep.subr.mxu0 0.0
        %2842 = vmatpush1.msra.mxu0 0.0
        %2843 = vmatprep.subr.mxu0 0.0
        %2844 = vmatpush1.msra.mxu0 0.0
        %2845 = vmatprep.subr.mxu0 0.0
        %2846 = vmatpush1.msra.mxu0 0.0
        %2847 = vmatprep.subr.mxu0 0.0
        %2848 = vmatpush1.msra.mxu0 0.0
        %2849 = vmatprep.subr.mxu0 0.0
        %2850 = vmatpush1.msra.mxu0 0.0
        %2851 = vmatprep.subr.mxu0 0.0
        %2852 = vmatpush1.msra.mxu0 0.0
        %2853 = vmatprep.subr.mxu0 0.0
        %2854 = vmatpush1.msra.mxu0 0.0
        %2855 = vmatprep.subr.mxu0 0.0
        %2856 = vmatpush1.msra.mxu0 0.0
        %2857 = vmatprep.subr.mxu0 0.0
        %2858 = vmatpush1.msra.mxu0 0.0
        %2859 = vmatprep.subr.mxu0 0.0
        %2860 = vmatpush1.msra.mxu0 0.0
        %2861 = vmatprep.subr.mxu0 0.0
        %2862 = vmatpush1.msra.mxu0 0.0
        %2863 = vmatprep.subr.mxu0 0.0
        %2864 = vmatpush1.msra.mxu0 0.0
        %2865 = vmatprep.subr.mxu0 0.0
        %2866 = vmatpush1.msra.mxu0 0.0
        %2867 = vmatprep.subr.mxu0 0.0
        %2868 = vmatpush1.msra.mxu0 0.0
        %2869 = vmatprep.subr.mxu0 0.0
        %2870 = vmatpush1.msra.mxu0 0.0
        %2871 = vmatprep.subr.mxu0 0.0
        %2872 = vmatpush1.msra.mxu0 0.0
        %2873 = vmatprep.subr.mxu0 0.0
        %2874 = vmatpush1.msra.mxu0 0.0
        %2875 = vmatprep.subr.mxu0 0.0
        %2876 = vmatpush1.msra.mxu0 0.0
        %2877 = vmatprep.subr.mxu0 0.0
        %2878 = vmatpush1.msra.mxu0 0.0
        %2879 = vmatprep.subr.mxu0 0.0
        %2880 = vmatpush1.msra.mxu0 0.0
        %2881 = vmatprep.subr.mxu0 0.0
        %2882 = vmatpush1.msra.mxu0 0.0
        %2883 = vmatprep.subr.mxu0 0.0
        %2884 = vmatpush1.msra.mxu0 0.0
        %2885 = vmatprep.subr.mxu0 0.0
        %2886 = vmatpush1.msra.mxu0 0.0
        %2887 = vmatprep.subr.mxu0 0.0
        %2888 = vmatpush1.msra.mxu0 0.0
        %2889 = vmatprep.subr.mxu0 0.0
        %2890 = vmatpush1.msra.mxu0 0.0
        %2891 = vmatprep.mubr.f32.mxu0 0.0
        %2892 = vmatmul.mubr.f32.gmra.mrb[0].mxu0 %v2825
        %v2893 = vpop.f32.mrb[0].mxu0
        %v2894 = vadd.f32 0.0, %v2893
        %v2895 = vpop.f32.mrb[0].mxu0
        %2896 = vdwg.mxu0
        %s2897 = scalar_lea.vmem %s9, 32
        %v2898 = vld [vmem:[%s2897] sm:$0xff]
        %v2899 = vld [vmem:[%s2897 + $0x8] sm:$0xf]
        %v2901 = vsel %vm2669, %v2894, 0
        %v2904 = vsel %vm1938, %v2899, 0
        %2906 = vmatprep.subr.mxu0 0.0
        %2907 = vmatpush1.msra.mxu0 %v2898
        %2908 = vmatprep.subr.mxu0 0.0
        %2909 = vmatpush1.msra.mxu0 %v2904
        %2910 = vmatprep.subr.mxu0 0.0
        %2911 = vmatpush1.msra.mxu0 0.0
        %2912 = vmatprep.subr.mxu0 0.0
        %2913 = vmatpush1.msra.mxu0 0.0
        %2914 = vmatprep.subr.mxu0 0.0
        %2915 = vmatpush1.msra.mxu0 0.0
        %2916 = vmatprep.subr.mxu0 0.0
        %2917 = vmatpush1.msra.mxu0 0.0
        %2918 = vmatprep.subr.mxu0 0.0
        %2919 = vmatpush1.msra.mxu0 0.0
        %2920 = vmatprep.subr.mxu0 0.0
        %2921 = vmatpush1.msra.mxu0 0.0
        %2922 = vmatprep.subr.mxu0 0.0
        %2923 = vmatpush1.msra.mxu0 0.0
        %2924 = vmatprep.subr.mxu0 0.0
        %2925 = vmatpush1.msra.mxu0 0.0
        %2926 = vmatprep.subr.mxu0 0.0
        %2927 = vmatpush1.msra.mxu0 0.0
        %2928 = vmatprep.subr.mxu0 0.0
        %2929 = vmatpush1.msra.mxu0 0.0
        %2930 = vmatprep.subr.mxu0 0.0
        %2931 = vmatpush1.msra.mxu0 0.0
        %2932 = vmatprep.subr.mxu0 0.0
        %2933 = vmatpush1.msra.mxu0 0.0
        %2934 = vmatprep.subr.mxu0 0.0
        %2935 = vmatpush1.msra.mxu0 0.0
        %2936 = vmatprep.subr.mxu0 0.0
        %2937 = vmatpush1.msra.mxu0 0.0
        %2938 = vmatprep.subr.mxu0 0.0
        %2939 = vmatpush1.msra.mxu0 0.0
        %2940 = vmatprep.subr.mxu0 0.0
        %2941 = vmatpush1.msra.mxu0 0.0
        %2942 = vmatprep.subr.mxu0 0.0
        %2943 = vmatpush1.msra.mxu0 0.0
        %2944 = vmatprep.subr.mxu0 0.0
        %2945 = vmatpush1.msra.mxu0 0.0
        %2946 = vmatprep.subr.mxu0 0.0
        %2947 = vmatpush1.msra.mxu0 0.0
        %2948 = vmatprep.subr.mxu0 0.0
        %2949 = vmatpush1.msra.mxu0 0.0
        %2950 = vmatprep.subr.mxu0 0.0
        %2951 = vmatpush1.msra.mxu0 0.0
        %2952 = vmatprep.subr.mxu0 0.0
        %2953 = vmatpush1.msra.mxu0 0.0
        %2954 = vmatprep.subr.mxu0 0.0
        %2955 = vmatpush1.msra.mxu0 0.0
        %2956 = vmatprep.subr.mxu0 0.0
        %2957 = vmatpush1.msra.mxu0 0.0
        %2958 = vmatprep.subr.mxu0 0.0
        %2959 = vmatpush1.msra.mxu0 0.0
        %2960 = vmatprep.subr.mxu0 0.0
        %2961 = vmatpush1.msra.mxu0 0.0
        %2962 = vmatprep.subr.mxu0 0.0
        %2963 = vmatpush1.msra.mxu0 0.0
        %2964 = vmatprep.subr.mxu0 0.0
        %2965 = vmatpush1.msra.mxu0 0.0
        %2966 = vmatprep.subr.mxu0 0.0
        %2967 = vmatpush1.msra.mxu0 0.0
        %2968 = vmatprep.subr.mxu0 0.0
        %2969 = vmatpush1.msra.mxu0 0.0
        %2970 = vmatprep.mubr.f32.mxu0 0.0
        %2971 = vmatmul.mubr.f32.gmra.mrb[0].mxu0 %v2901
        %v2972 = vpop.f32.mrb[0].mxu0
        %v2973 = vadd.f32 0.0, %v2972
        %v2974 = vpop.f32.mrb[0].mxu0
        %2975 = vdwg.mxu0
        %v2976 = vadd.f32 %v2819, %v2973
        %v2977 = vld [vmem:[%s10] sm:$0x1]
        %v2979 = vlaneseq
        %v2980 = vshrl.u32 %v2979, 7
        %v2981 = vsub.s32 0, %v2980
        %v2982 = vrot.slane %v2977, %v2981
        %v2984 = vadd.f32 %v2976, %v2982
        %v2985 = vmax.f32 %v2984, 0.0
        %v2987 = vsel %vm2515, %v2985, 0
        %2989 = vmatprep.subr.mxu0 0.0
        %2990 = vmatpush1.msra.mxu0 %v2987
        %2991 = vmatprep.subr.mxu0 0.0
        %2992 = vmatpush1.msra.mxu0 0.0
        %2993 = vmatprep.subr.mxu0 0.0
        %2994 = vmatpush1.msra.mxu0 0.0
        %2995 = vmatprep.subr.mxu0 0.0
        %2996 = vmatpush1.msra.mxu0 0.0
        %2997 = vmatprep.subr.mxu0 0.0
        %2998 = vmatpush1.msra.mxu0 0.0
        %2999 = vmatprep.subr.mxu0 0.0
        %3000 = vmatpush1.msra.mxu0 0.0
        %3001 = vmatprep.subr.mxu0 0.0
        %3002 = vmatpush1.msra.mxu0 0.0
        %3003 = vmatprep.subr.mxu0 0.0
        %3004 = vmatpush1.msra.mxu0 0.0
        %3005 = vmatprep.subr.mxu0 0.0
        %3006 = vmatpush1.msra.mxu0 0.0
        %3007 = vmatprep.subr.mxu0 0.0
        %3008 = vmatpush1.msra.mxu0 0.0
        %3009 = vmatprep.subr.mxu0 0.0
        %3010 = vmatpush1.msra.mxu0 0.0
        %3011 = vmatprep.subr.mxu0 0.0
        %3012 = vmatpush1.msra.mxu0 0.0
        %3013 = vmatprep.subr.mxu0 0.0
        %3014 = vmatpush1.msra.mxu0 0.0
        %3015 = vmatprep.subr.mxu0 0.0
        %3016 = vmatpush1.msra.mxu0 0.0
        %3017 = vmatprep.subr.mxu0 0.0
        %3018 = vmatpush1.msra.mxu0 0.0
        %3019 = vmatprep.subr.mxu0 0.0
        %3020 = vmatpush1.msra.mxu0 0.0
        %3021 = vmatprep.subr.mxu0 0.0
        %3022 = vmatpush1.msra.mxu0 0.0
        %3023 = vmatprep.subr.mxu0 0.0
        %3024 = vmatpush1.msra.mxu0 0.0
        %3025 = vmatprep.subr.mxu0 0.0
        %3026 = vmatpush1.msra.mxu0 0.0
        %3027 = vmatprep.subr.mxu0 0.0
        %3028 = vmatpush1.msra.mxu0 0.0
        %3029 = vmatprep.subr.mxu0 0.0
        %3030 = vmatpush1.msra.mxu0 0.0
        %3031 = vmatprep.subr.mxu0 0.0
        %3032 = vmatpush1.msra.mxu0 0.0
        %3033 = vmatprep.subr.mxu0 0.0
        %3034 = vmatpush1.msra.mxu0 0.0
        %3035 = vmatprep.subr.mxu0 0.0
        %3036 = vmatpush1.msra.mxu0 0.0
        %3037 = vmatprep.subr.mxu0 0.0
        %3038 = vmatpush1.msra.mxu0 0.0
        %3039 = vmatprep.subr.mxu0 0.0
        %3040 = vmatpush1.msra.mxu0 0.0
        %3041 = vmatprep.subr.mxu0 0.0
        %3042 = vmatpush1.msra.mxu0 0.0
        %3043 = vmatprep.subr.mxu0 0.0
        %3044 = vmatpush1.msra.mxu0 0.0
        %3045 = vmatprep.subr.mxu0 0.0
        %3046 = vmatpush1.msra.mxu0 0.0
        %3047 = vmatprep.subr.mxu0 0.0
        %3048 = vmatpush1.msra.mxu0 0.0
        %3049 = vmatprep.subr.mxu0 0.0
        %3050 = vmatpush1.msra.mxu0 0.0
        %3051 = vmatprep.subr.mxu0 0.0
        %3052 = vmatpush1.msra.mxu0 0.0
        %3053 = vmatprep.mubr.f32.mxu0 0.0
        %3054 = vmatmul.mubr.f32.gmra.mrb[0].mxu0 %v2513
        %v3055 = vpop.f32.mrb[0].mxu0
        %v3056 = vadd.f32 0.0, %v3055
        %v3057 = vpop.f32.mrb[0].mxu0
        %3058 = vdwg.mxu0
        %s3059 = scalar_lea.vmem %s9, 48
        %v3060 = vld [vmem:[%s3059] sm:$0xff]
        %v3061 = vld [vmem:[%s3059 + $0x8] sm:$0xf]
        %3062 = vmatprep.subr.mxu0 0.0
        %3063 = vmatpush1.msra.mxu0 %v2987
        %3064 = vmatprep.subr.mxu0 0.0
        %3065 = vmatpush1.msra.mxu0 0.0
        %3066 = vmatprep.subr.mxu0 0.0
        %3067 = vmatpush1.msra.mxu0 0.0
        %3068 = vmatprep.subr.mxu0 0.0
        %3069 = vmatpush1.msra.mxu0 0.0
        %3070 = vmatprep.subr.mxu0 0.0
        %3071 = vmatpush1.msra.mxu0 0.0
        %3072 = vmatprep.subr.mxu0 0.0
        %3073 = vmatpush1.msra.mxu0 0.0
        %3074 = vmatprep.subr.mxu0 0.0
        %3075 = vmatpush1.msra.mxu0 0.0
        %3076 = vmatprep.subr.mxu0 0.0
        %3077 = vmatpush1.msra.mxu0 0.0
        %3078 = vmatprep.subr.mxu0 0.0
        %3079 = vmatpush1.msra.mxu0 0.0
        %3080 = vmatprep.subr.mxu0 0.0
        %3081 = vmatpush1.msra.mxu0 0.0
        %3082 = vmatprep.subr.mxu0 0.0
        %3083 = vmatpush1.msra.mxu0 0.0
        %3084 = vmatprep.subr.mxu0 0.0
        %3085 = vmatpush1.msra.mxu0 0.0
        %3086 = vmatprep.subr.mxu0 0.0
        %3087 = vmatpush1.msra.mxu0 0.0
        %3088 = vmatprep.subr.mxu0 0.0
        %3089 = vmatpush1.msra.mxu0 0.0
        %3090 = vmatprep.subr.mxu0 0.0
        %3091 = vmatpush1.msra.mxu0 0.0
        %3092 = vmatprep.subr.mxu0 0.0
        %3093 = vmatpush1.msra.mxu0 0.0
        %3094 = vmatprep.subr.mxu0 0.0
        %3095 = vmatpush1.msra.mxu0 0.0
        %3096 = vmatprep.subr.mxu0 0.0
        %3097 = vmatpush1.msra.mxu0 0.0
        %3098 = vmatprep.subr.mxu0 0.0
        %3099 = vmatpush1.msra.mxu0 0.0
        %3100 = vmatprep.subr.mxu0 0.0
        %3101 = vmatpush1.msra.mxu0 0.0
        %3102 = vmatprep.subr.mxu0 0.0
        %3103 = vmatpush1.msra.mxu0 0.0
        %3104 = vmatprep.subr.mxu0 0.0
        %3105 = vmatpush1.msra.mxu0 0.0
        %3106 = vmatprep.subr.mxu0 0.0
        %3107 = vmatpush1.msra.mxu0 0.0
        %3108 = vmatprep.subr.mxu0 0.0
        %3109 = vmatpush1.msra.mxu0 0.0
        %3110 = vmatprep.subr.mxu0 0.0
        %3111 = vmatpush1.msra.mxu0 0.0
        %3112 = vmatprep.subr.mxu0 0.0
        %3113 = vmatpush1.msra.mxu0 0.0
        %3114 = vmatprep.subr.mxu0 0.0
        %3115 = vmatpush1.msra.mxu0 0.0
        %3116 = vmatprep.subr.mxu0 0.0
        %3117 = vmatpush1.msra.mxu0 0.0
        %3118 = vmatprep.subr.mxu0 0.0
        %3119 = vmatpush1.msra.mxu0 0.0
        %3120 = vmatprep.subr.mxu0 0.0
        %3121 = vmatpush1.msra.mxu0 0.0
        %3122 = vmatprep.subr.mxu0 0.0
        %3123 = vmatpush1.msra.mxu0 0.0
        %3124 = vmatprep.subr.mxu0 0.0
        %3125 = vmatpush1.msra.mxu0 0.0
        %3126 = vmatprep.mubr.f32.mxu0 0.0
        %3127 = vmatmul.mubr.f32.gmra.mrb[0].mxu0 %v2594
        %v3128 = vpop.f32.mrb[0].mxu0
        %v3129 = vadd.f32 0.0, %v3128
        %v3130 = vpop.f32.mrb[0].mxu0
        %3131 = vdwg.mxu0
        %s3132 = scalar_lea.vmem %s9, 64
        %v3133 = vld [vmem:[%s3132] sm:$0xff]
        %v3134 = vld [vmem:[%s3132 + $0x8] sm:$0xf]
        %v3136 = vsel %vm2669, %v3129, 0
        %v3139 = vsel %vm1938, %v3134, 0
        %3141 = vmatprep.subr.mxu0 0.0
        %3142 = vmatpush1.msra.mxu0 %v3133
        %3143 = vmatprep.subr.mxu0 0.0
        %3144 = vmatpush1.msra.mxu0 %v3139
        %3145 = vmatprep.subr.mxu0 0.0
        %3146 = vmatpush1.msra.mxu0 0.0
        %3147 = vmatprep.subr.mxu0 0.0
        %3148 = vmatpush1.msra.mxu0 0.0
        %3149 = vmatprep.subr.mxu0 0.0
        %3150 = vmatpush1.msra.mxu0 0.0
        %3151 = vmatprep.subr.mxu0 0.0
        %3152 = vmatpush1.msra.mxu0 0.0
        %3153 = vmatprep.subr.mxu0 0.0
        %3154 = vmatpush1.msra.mxu0 0.0
        %3155 = vmatprep.subr.mxu0 0.0
        %3156 = vmatpush1.msra.mxu0 0.0
        %3157 = vmatprep.subr.mxu0 0.0
        %3158 = vmatpush1.msra.mxu0 0.0
        %3159 = vmatprep.subr.mxu0 0.0
        %3160 = vmatpush1.msra.mxu0 0.0
        %3161 = vmatprep.subr.mxu0 0.0
        %3162 = vmatpush1.msra.mxu0 0.0
        %3163 = vmatprep.subr.mxu0 0.0
        %3164 = vmatpush1.msra.mxu0 0.0
        %3165 = vmatprep.subr.mxu0 0.0
        %3166 = vmatpush1.msra.mxu0 0.0
        %3167 = vmatprep.subr.mxu0 0.0
        %3168 = vmatpush1.msra.mxu0 0.0
        %3169 = vmatprep.subr.mxu0 0.0
        %3170 = vmatpush1.msra.mxu0 0.0
        %3171 = vmatprep.subr.mxu0 0.0
        %3172 = vmatpush1.msra.mxu0 0.0
        %3173 = vmatprep.subr.mxu0 0.0
        %3174 = vmatpush1.msra.mxu0 0.0
        %3175 = vmatprep.subr.mxu0 0.0
        %3176 = vmatpush1.msra.mxu0 0.0
        %3177 = vmatprep.subr.mxu0 0.0
        %3178 = vmatpush1.msra.mxu0 0.0
        %3179 = vmatprep.subr.mxu0 0.0
        %3180 = vmatpush1.msra.mxu0 0.0
        %3181 = vmatprep.subr.mxu0 0.0
        %3182 = vmatpush1.msra.mxu0 0.0
        %3183 = vmatprep.subr.mxu0 0.0
        %3184 = vmatpush1.msra.mxu0 0.0
        %3185 = vmatprep.subr.mxu0 0.0
        %3186 = vmatpush1.msra.mxu0 0.0
        %3187 = vmatprep.subr.mxu0 0.0
        %3188 = vmatpush1.msra.mxu0 0.0
        %3189 = vmatprep.subr.mxu0 0.0
        %3190 = vmatpush1.msra.mxu0 0.0
        %3191 = vmatprep.subr.mxu0 0.0
        %3192 = vmatpush1.msra.mxu0 0.0
        %3193 = vmatprep.subr.mxu0 0.0
        %3194 = vmatpush1.msra.mxu0 0.0
        %3195 = vmatprep.subr.mxu0 0.0
        %3196 = vmatpush1.msra.mxu0 0.0
        %3197 = vmatprep.subr.mxu0 0.0
        %3198 = vmatpush1.msra.mxu0 0.0
        %3199 = vmatprep.subr.mxu0 0.0
        %3200 = vmatpush1.msra.mxu0 0.0
        %3201 = vmatprep.subr.mxu0 0.0
        %3202 = vmatpush1.msra.mxu0 0.0
        %3203 = vmatprep.subr.mxu0 0.0
        %3204 = vmatpush1.msra.mxu0 0.0
        %3205 = vmatprep.mubr.f32.mxu0 0.0
        %3206 = vmatmul.mubr.f32.gmra.mrb[0].mxu0 %v3136
        %v3207 = vpop.f32.mrb[0].mxu0
        %v3208 = vadd.f32 0.0, %v3207
        %v3209 = vpop.f32.mrb[0].mxu0
        %3210 = vdwg.mxu0
        %v3212 = vsel %vm2669, %v3056, 0
        %v3215 = vsel %vm1938, %v3061, 0
        %3217 = vmatprep.subr.mxu0 0.0
        %3218 = vmatpush1.msra.mxu0 %v3060
        %3219 = vmatprep.subr.mxu0 0.0
        %3220 = vmatpush1.msra.mxu0 %v3215
        %3221 = vmatprep.subr.mxu0 0.0
        %3222 = vmatpush1.msra.mxu0 0.0
        %3223 = vmatprep.subr.mxu0 0.0
        %3224 = vmatpush1.msra.mxu0 0.0
        %3225 = vmatprep.subr.mxu0 0.0
        %3226 = vmatpush1.msra.mxu0 0.0
        %3227 = vmatprep.subr.mxu0 0.0
        %3228 = vmatpush1.msra.mxu0 0.0
        %3229 = vmatprep.subr.mxu0 0.0
        %3230 = vmatpush1.msra.mxu0 0.0
        %3231 = vmatprep.subr.mxu0 0.0
        %3232 = vmatpush1.msra.mxu0 0.0
        %3233 = vmatprep.subr.mxu0 0.0
        %3234 = vmatpush1.msra.mxu0 0.0
        %3235 = vmatprep.subr.mxu0 0.0
        %3236 = vmatpush1.msra.mxu0 0.0
        %3237 = vmatprep.subr.mxu0 0.0
        %3238 = vmatpush1.msra.mxu0 0.0
        %3239 = vmatprep.subr.mxu0 0.0
        %3240 = vmatpush1.msra.mxu0 0.0
        %3241 = vmatprep.subr.mxu0 0.0
        %3242 = vmatpush1.msra.mxu0 0.0
        %3243 = vmatprep.subr.mxu0 0.0
        %3244 = vmatpush1.msra.mxu0 0.0
        %3245 = vmatprep.subr.mxu0 0.0
        %3246 = vmatpush1.msra.mxu0 0.0
        %3247 = vmatprep.subr.mxu0 0.0
        %3248 = vmatpush1.msra.mxu0 0.0
        %3249 = vmatprep.subr.mxu0 0.0
        %3250 = vmatpush1.msra.mxu0 0.0
        %3251 = vmatprep.subr.mxu0 0.0
        %3252 = vmatpush1.msra.mxu0 0.0
        %3253 = vmatprep.subr.mxu0 0.0
        %3254 = vmatpush1.msra.mxu0 0.0
        %3255 = vmatprep.subr.mxu0 0.0
        %3256 = vmatpush1.msra.mxu0 0.0
        %3257 = vmatprep.subr.mxu0 0.0
        %3258 = vmatpush1.msra.mxu0 0.0
        %3259 = vmatprep.subr.mxu0 0.0
        %3260 = vmatpush1.msra.mxu0 0.0
        %3261 = vmatprep.subr.mxu0 0.0
        %3262 = vmatpush1.msra.mxu0 0.0
        %3263 = vmatprep.subr.mxu0 0.0
        %3264 = vmatpush1.msra.mxu0 0.0
        %3265 = vmatprep.subr.mxu0 0.0
        %3266 = vmatpush1.msra.mxu0 0.0
        %3267 = vmatprep.subr.mxu0 0.0
        %3268 = vmatpush1.msra.mxu0 0.0
        %3269 = vmatprep.subr.mxu0 0.0
        %3270 = vmatpush1.msra.mxu0 0.0
        %3271 = vmatprep.subr.mxu0 0.0
        %3272 = vmatpush1.msra.mxu0 0.0
        %3273 = vmatprep.subr.mxu0 0.0
        %3274 = vmatpush1.msra.mxu0 0.0
        %3275 = vmatprep.subr.mxu0 0.0
        %3276 = vmatpush1.msra.mxu0 0.0
        %3277 = vmatprep.subr.mxu0 0.0
        %3278 = vmatpush1.msra.mxu0 0.0
        %3279 = vmatprep.subr.mxu0 0.0
        %3280 = vmatpush1.msra.mxu0 0.0
        %3281 = vmatprep.mubr.f32.mxu0 0.0
        %3282 = vmatmul.mubr.f32.gmra.mrb[0].mxu0 %v3212
        %v3283 = vpop.f32.mrb[0].mxu0
        %v3284 = vadd.f32 %v3208, %v3283
        %v3285 = vpop.f32.mrb[0].mxu0
        %3286 = vdwg.mxu0
        %3287 = vmatprep.subr.mxu0 0.0
        %3288 = vmatpush1.msra.mxu0 %v2987
        %3289 = vmatprep.subr.mxu0 0.0
        %3290 = vmatpush1.msra.mxu0 0.0
        %3291 = vmatprep.subr.mxu0 0.0
        %3292 = vmatpush1.msra.mxu0 0.0
        %3293 = vmatprep.subr.mxu0 0.0
        %3294 = vmatpush1.msra.mxu0 0.0
        %3295 = vmatprep.subr.mxu0 0.0
        %3296 = vmatpush1.msra.mxu0 0.0
        %3297 = vmatprep.subr.mxu0 0.0
        %3298 = vmatpush1.msra.mxu0 0.0
        %3299 = vmatprep.subr.mxu0 0.0
        %3300 = vmatpush1.msra.mxu0 0.0
        %3301 = vmatprep.subr.mxu0 0.0
        %3302 = vmatpush1.msra.mxu0 0.0
        %3303 = vmatprep.subr.mxu0 0.0
        %3304 = vmatpush1.msra.mxu0 0.0
        %3305 = vmatprep.subr.mxu0 0.0
        %3306 = vmatpush1.msra.mxu0 0.0
        %3307 = vmatprep.subr.mxu0 0.0
        %3308 = vmatpush1.msra.mxu0 0.0
        %3309 = vmatprep.subr.mxu0 0.0
        %3310 = vmatpush1.msra.mxu0 0.0
        %3311 = vmatprep.subr.mxu0 0.0
        %3312 = vmatpush1.msra.mxu0 0.0
        %3313 = vmatprep.subr.mxu0 0.0
        %3314 = vmatpush1.msra.mxu0 0.0
        %3315 = vmatprep.subr.mxu0 0.0
        %3316 = vmatpush1.msra.mxu0 0.0
        %3317 = vmatprep.subr.mxu0 0.0
        %3318 = vmatpush1.msra.mxu0 0.0
        %3319 = vmatprep.subr.mxu0 0.0
        %3320 = vmatpush1.msra.mxu0 0.0
        %3321 = vmatprep.subr.mxu0 0.0
        %3322 = vmatpush1.msra.mxu0 0.0
        %3323 = vmatprep.subr.mxu0 0.0
        %3324 = vmatpush1.msra.mxu0 0.0
        %3325 = vmatprep.subr.mxu0 0.0
        %3326 = vmatpush1.msra.mxu0 0.0
        %3327 = vmatprep.subr.mxu0 0.0
        %3328 = vmatpush1.msra.mxu0 0.0
        %3329 = vmatprep.subr.mxu0 0.0
        %3330 = vmatpush1.msra.mxu0 0.0
        %3331 = vmatprep.subr.mxu0 0.0
        %3332 = vmatpush1.msra.mxu0 0.0
        %3333 = vmatprep.subr.mxu0 0.0
        %3334 = vmatpush1.msra.mxu0 0.0
        %3335 = vmatprep.subr.mxu0 0.0
        %3336 = vmatpush1.msra.mxu0 0.0
        %3337 = vmatprep.subr.mxu0 0.0
        %3338 = vmatpush1.msra.mxu0 0.0
        %3339 = vmatprep.subr.mxu0 0.0
        %3340 = vmatpush1.msra.mxu0 0.0
        %3341 = vmatprep.subr.mxu0 0.0
        %3342 = vmatpush1.msra.mxu0 0.0
        %3343 = vmatprep.subr.mxu0 0.0
        %3344 = vmatpush1.msra.mxu0 0.0
        %3345 = vmatprep.subr.mxu0 0.0
        %3346 = vmatpush1.msra.mxu0 0.0
        %3347 = vmatprep.subr.mxu0 0.0
        %3348 = vmatpush1.msra.mxu0 0.0
        %3349 = vmatprep.subr.mxu0 0.0
        %3350 = vmatpush1.msra.mxu0 0.0
        %3351 = vmatprep.mubr.f32.mxu0 0.0
        %3352 = vmatmul.mubr.f32.gmra.mrb[0].mxu0 %v2825
        %v3353 = vpop.f32.mrb[0].mxu0
        %v3354 = vadd.f32 0.0, %v3353
        %v3355 = vpop.f32.mrb[0].mxu0
        %3356 = vdwg.mxu0
        %s3357 = scalar_lea.vmem %s9, 80
        %v3358 = vld [vmem:[%s3357] sm:$0xff]
        %v3359 = vld [vmem:[%s3357 + $0x8] sm:$0xf]
        %v3361 = vsel %vm2669, %v3354, 0
        %v3364 = vsel %vm1938, %v3359, 0
        %3366 = vmatprep.subr.mxu0 0.0
        %3367 = vmatpush1.msra.mxu0 %v3358
        %3368 = vmatprep.subr.mxu0 0.0
        %3369 = vmatpush1.msra.mxu0 %v3364
        %3370 = vmatprep.subr.mxu0 0.0
        %3371 = vmatpush1.msra.mxu0 0.0
        %3372 = vmatprep.subr.mxu0 0.0
        %3373 = vmatpush1.msra.mxu0 0.0
        %3374 = vmatprep.subr.mxu0 0.0
        %3375 = vmatpush1.msra.mxu0 0.0
        %3376 = vmatprep.subr.mxu0 0.0
        %3377 = vmatpush1.msra.mxu0 0.0
        %3378 = vmatprep.subr.mxu0 0.0
        %3379 = vmatpush1.msra.mxu0 0.0
        %3380 = vmatprep.subr.mxu0 0.0
        %3381 = vmatpush1.msra.mxu0 0.0
        %3382 = vmatprep.subr.mxu0 0.0
        %3383 = vmatpush1.msra.mxu0 0.0
        %3384 = vmatprep.subr.mxu0 0.0
        %3385 = vmatpush1.msra.mxu0 0.0
        %3386 = vmatprep.subr.mxu0 0.0
        %3387 = vmatpush1.msra.mxu0 0.0
        %3388 = vmatprep.subr.mxu0 0.0
        %3389 = vmatpush1.msra.mxu0 0.0
        %3390 = vmatprep.subr.mxu0 0.0
        %3391 = vmatpush1.msra.mxu0 0.0
        %3392 = vmatprep.subr.mxu0 0.0
        %3393 = vmatpush1.msra.mxu0 0.0
        %3394 = vmatprep.subr.mxu0 0.0
        %3395 = vmatpush1.msra.mxu0 0.0
        %3396 = vmatprep.subr.mxu0 0.0
        %3397 = vmatpush1.msra.mxu0 0.0
        %3398 = vmatprep.subr.mxu0 0.0
        %3399 = vmatpush1.msra.mxu0 0.0
        %3400 = vmatprep.subr.mxu0 0.0
        %3401 = vmatpush1.msra.mxu0 0.0
        %3402 = vmatprep.subr.mxu0 0.0
        %3403 = vmatpush1.msra.mxu0 0.0
        %3404 = vmatprep.subr.mxu0 0.0
        %3405 = vmatpush1.msra.mxu0 0.0
        %3406 = vmatprep.subr.mxu0 0.0
        %3407 = vmatpush1.msra.mxu0 0.0
        %3408 = vmatprep.subr.mxu0 0.0
        %3409 = vmatpush1.msra.mxu0 0.0
        %3410 = vmatprep.subr.mxu0 0.0
        %3411 = vmatpush1.msra.mxu0 0.0
        %3412 = vmatprep.subr.mxu0 0.0
        %3413 = vmatpush1.msra.mxu0 0.0
        %3414 = vmatprep.subr.mxu0 0.0
        %3415 = vmatpush1.msra.mxu0 0.0
        %3416 = vmatprep.subr.mxu0 0.0
        %3417 = vmatpush1.msra.mxu0 0.0
        %3418 = vmatprep.subr.mxu0 0.0
        %3419 = vmatpush1.msra.mxu0 0.0
        %3420 = vmatprep.subr.mxu0 0.0
        %3421 = vmatpush1.msra.mxu0 0.0
        %3422 = vmatprep.subr.mxu0 0.0
        %3423 = vmatpush1.msra.mxu0 0.0
        %3424 = vmatprep.subr.mxu0 0.0
        %3425 = vmatpush1.msra.mxu0 0.0
        %3426 = vmatprep.subr.mxu0 0.0
        %3427 = vmatpush1.msra.mxu0 0.0
        %3428 = vmatprep.subr.mxu0 0.0
        %3429 = vmatpush1.msra.mxu0 0.0
        %3430 = vmatprep.mubr.f32.mxu0 0.0
        %3431 = vmatmul.mubr.f32.gmra.mrb[0].mxu0 %v3361
        %v3432 = vpop.f32.mrb[0].mxu0
        %v3433 = vadd.f32 0.0, %v3432
        %v3434 = vpop.f32.mrb[0].mxu0
        %3435 = vdwg.mxu0
        %v3436 = vadd.f32 %v3284, %v3433
        %s3437 = scalar_lea.vmem %s10, 1
        %v3438 = vld [vmem:[%s3437] sm:$0x1]
        %v3440 = vlaneseq
        %v3441 = vshrl.u32 %v3440, 7
        %v3442 = vsub.s32 0, %v3441
        %v3443 = vrot.slane %v3438, %v3442
        %v3445 = vadd.f32 %v3436, %v3443
        %v3446 = vmax.f32 %v3445, 0.0
        %v3448 = vsel %vm2515, %v3446, 0
        %3450 = vmatprep.subr.mxu0 0.0
        %3451 = vmatpush1.msra.mxu0 %v3448
        %3452 = vmatprep.subr.mxu0 0.0
        %3453 = vmatpush1.msra.mxu0 0.0
        %3454 = vmatprep.subr.mxu0 0.0
        %3455 = vmatpush1.msra.mxu0 0.0
        %3456 = vmatprep.subr.mxu0 0.0
        %3457 = vmatpush1.msra.mxu0 0.0
        %3458 = vmatprep.subr.mxu0 0.0
        %3459 = vmatpush1.msra.mxu0 0.0
        %3460 = vmatprep.subr.mxu0 0.0
        %3461 = vmatpush1.msra.mxu0 0.0
        %3462 = vmatprep.subr.mxu0 0.0
        %3463 = vmatpush1.msra.mxu0 0.0
        %3464 = vmatprep.subr.mxu0 0.0
        %3465 = vmatpush1.msra.mxu0 0.0
        %3466 = vmatprep.subr.mxu0 0.0
        %3467 = vmatpush1.msra.mxu0 0.0
        %3468 = vmatprep.subr.mxu0 0.0
        %3469 = vmatpush1.msra.mxu0 0.0
        %3470 = vmatprep.subr.mxu0 0.0
        %3471 = vmatpush1.msra.mxu0 0.0
        %3472 = vmatprep.subr.mxu0 0.0
        %3473 = vmatpush1.msra.mxu0 0.0
        %3474 = vmatprep.subr.mxu0 0.0
        %3475 = vmatpush1.msra.mxu0 0.0
        %3476 = vmatprep.subr.mxu0 0.0
        %3477 = vmatpush1.msra.mxu0 0.0
        %3478 = vmatprep.subr.mxu0 0.0
        %3479 = vmatpush1.msra.mxu0 0.0
        %3480 = vmatprep.subr.mxu0 0.0
        %3481 = vmatpush1.msra.mxu0 0.0
        %3482 = vmatprep.subr.mxu0 0.0
        %3483 = vmatpush1.msra.mxu0 0.0
        %3484 = vmatprep.subr.mxu0 0.0
        %3485 = vmatpush1.msra.mxu0 0.0
        %3486 = vmatprep.subr.mxu0 0.0
        %3487 = vmatpush1.msra.mxu0 0.0
        %3488 = vmatprep.subr.mxu0 0.0
        %3489 = vmatpush1.msra.mxu0 0.0
        %3490 = vmatprep.subr.mxu0 0.0
        %3491 = vmatpush1.msra.mxu0 0.0
        %3492 = vmatprep.subr.mxu0 0.0
        %3493 = vmatpush1.msra.mxu0 0.0
        %3494 = vmatprep.subr.mxu0 0.0
        %3495 = vmatpush1.msra.mxu0 0.0
        %3496 = vmatprep.subr.mxu0 0.0
        %3497 = vmatpush1.msra.mxu0 0.0
        %3498 = vmatprep.subr.mxu0 0.0
        %3499 = vmatpush1.msra.mxu0 0.0
        %3500 = vmatprep.subr.mxu0 0.0
        %3501 = vmatpush1.msra.mxu0 0.0
        %3502 = vmatprep.subr.mxu0 0.0
        %3503 = vmatpush1.msra.mxu0 0.0
        %3504 = vmatprep.subr.mxu0 0.0
        %3505 = vmatpush1.msra.mxu0 0.0
        %3506 = vmatprep.subr.mxu0 0.0
        %3507 = vmatpush1.msra.mxu0 0.0
        %3508 = vmatprep.subr.mxu0 0.0
        %3509 = vmatpush1.msra.mxu0 0.0
        %3510 = vmatprep.subr.mxu0 0.0
        %3511 = vmatpush1.msra.mxu0 0.0
        %3512 = vmatprep.subr.mxu0 0.0
        %3513 = vmatpush1.msra.mxu0 0.0
        %3514 = vmatprep.mubr.f32.mxu0 0.0
        %3515 = vmatmul.mubr.f32.gmra.mrb[0].mxu0 %v2513
        %v3516 = vpop.f32.mrb[0].mxu0
        %v3517 = vadd.f32 0.0, %v3516
        %v3518 = vpop.f32.mrb[0].mxu0
        %3519 = vdwg.mxu0
        %s3520 = scalar_lea.vmem %s9, 96
        %v3521 = vld [vmem:[%s3520] sm:$0xff]
        %v3522 = vld [vmem:[%s3520 + $0x8] sm:$0xf]
        %3523 = vmatprep.subr.mxu0 0.0
        %3524 = vmatpush1.msra.mxu0 %v3448
        %3525 = vmatprep.subr.mxu0 0.0
        %3526 = vmatpush1.msra.mxu0 0.0
        %3527 = vmatprep.subr.mxu0 0.0
        %3528 = vmatpush1.msra.mxu0 0.0
        %3529 = vmatprep.subr.mxu0 0.0
        %3530 = vmatpush1.msra.mxu0 0.0
        %3531 = vmatprep.subr.mxu0 0.0
        %3532 = vmatpush1.msra.mxu0 0.0
        %3533 = vmatprep.subr.mxu0 0.0
        %3534 = vmatpush1.msra.mxu0 0.0
        %3535 = vmatprep.subr.mxu0 0.0
        %3536 = vmatpush1.msra.mxu0 0.0
        %3537 = vmatprep.subr.mxu0 0.0
        %3538 = vmatpush1.msra.mxu0 0.0
        %3539 = vmatprep.subr.mxu0 0.0
        %3540 = vmatpush1.msra.mxu0 0.0
        %3541 = vmatprep.subr.mxu0 0.0
        %3542 = vmatpush1.msra.mxu0 0.0
        %3543 = vmatprep.subr.mxu0 0.0
        %3544 = vmatpush1.msra.mxu0 0.0
        %3545 = vmatprep.subr.mxu0 0.0
        %3546 = vmatpush1.msra.mxu0 0.0
        %3547 = vmatprep.subr.mxu0 0.0
        %3548 = vmatpush1.msra.mxu0 0.0
        %3549 = vmatprep.subr.mxu0 0.0
        %3550 = vmatpush1.msra.mxu0 0.0
        %3551 = vmatprep.subr.mxu0 0.0
        %3552 = vmatpush1.msra.mxu0 0.0
        %3553 = vmatprep.subr.mxu0 0.0
        %3554 = vmatpush1.msra.mxu0 0.0
        %3555 = vmatprep.subr.mxu0 0.0
        %3556 = vmatpush1.msra.mxu0 0.0
        %3557 = vmatprep.subr.mxu0 0.0
        %3558 = vmatpush1.msra.mxu0 0.0
        %3559 = vmatprep.subr.mxu0 0.0
        %3560 = vmatpush1.msra.mxu0 0.0
        %3561 = vmatprep.subr.mxu0 0.0
        %3562 = vmatpush1.msra.mxu0 0.0
        %3563 = vmatprep.subr.mxu0 0.0
        %3564 = vmatpush1.msra.mxu0 0.0
        %3565 = vmatprep.subr.mxu0 0.0
        %3566 = vmatpush1.msra.mxu0 0.0
        %3567 = vmatprep.subr.mxu0 0.0
        %3568 = vmatpush1.msra.mxu0 0.0
        %3569 = vmatprep.subr.mxu0 0.0
        %3570 = vmatpush1.msra.mxu0 0.0
        %3571 = vmatprep.subr.mxu0 0.0
        %3572 = vmatpush1.msra.mxu0 0.0
        %3573 = vmatprep.subr.mxu0 0.0
        %3574 = vmatpush1.msra.mxu0 0.0
        %3575 = vmatprep.subr.mxu0 0.0
        %3576 = vmatpush1.msra.mxu0 0.0
        %3577 = vmatprep.subr.mxu0 0.0
        %3578 = vmatpush1.msra.mxu0 0.0
        %3579 = vmatprep.subr.mxu0 0.0
        %3580 = vmatpush1.msra.mxu0 0.0
        %3581 = vmatprep.subr.mxu0 0.0
        %3582 = vmatpush1.msra.mxu0 0.0
        %3583 = vmatprep.subr.mxu0 0.0
        %3584 = vmatpush1.msra.mxu0 0.0
        %3585 = vmatprep.subr.mxu0 0.0
        %3586 = vmatpush1.msra.mxu0 0.0
        %3587 = vmatprep.mubr.f32.mxu0 0.0
        %3588 = vmatmul.mubr.f32.gmra.mrb[0].mxu0 %v2594
        %v3589 = vpop.f32.mrb[0].mxu0
        %v3590 = vadd.f32 0.0, %v3589
        %v3591 = vpop.f32.mrb[0].mxu0
        %3592 = vdwg.mxu0
        %s3593 = scalar_lea.vmem %s9, 112
        %v3594 = vld [vmem:[%s3593] sm:$0xff]
        %v3595 = vld [vmem:[%s3593 + $0x8] sm:$0xf]
        %v3597 = vsel %vm2669, %v3590, 0
        %v3600 = vsel %vm1938, %v3595, 0
        %3602 = vmatprep.subr.mxu0 0.0
        %3603 = vmatpush1.msra.mxu0 %v3594
        %3604 = vmatprep.subr.mxu0 0.0
        %3605 = vmatpush1.msra.mxu0 %v3600
        %3606 = vmatprep.subr.mxu0 0.0
        %3607 = vmatpush1.msra.mxu0 0.0
        %3608 = vmatprep.subr.mxu0 0.0
        %3609 = vmatpush1.msra.mxu0 0.0
        %3610 = vmatprep.subr.mxu0 0.0
        %3611 = vmatpush1.msra.mxu0 0.0
        %3612 = vmatprep.subr.mxu0 0.0
        %3613 = vmatpush1.msra.mxu0 0.0
        %3614 = vmatprep.subr.mxu0 0.0
        %3615 = vmatpush1.msra.mxu0 0.0
        %3616 = vmatprep.subr.mxu0 0.0
        %3617 = vmatpush1.msra.mxu0 0.0
        %3618 = vmatprep.subr.mxu0 0.0
        %3619 = vmatpush1.msra.mxu0 0.0
        %3620 = vmatprep.subr.mxu0 0.0
        %3621 = vmatpush1.msra.mxu0 0.0
        %3622 = vmatprep.subr.mxu0 0.0
        %3623 = vmatpush1.msra.mxu0 0.0
        %3624 = vmatprep.subr.mxu0 0.0
        %3625 = vmatpush1.msra.mxu0 0.0
        %3626 = vmatprep.subr.mxu0 0.0
        %3627 = vmatpush1.msra.mxu0 0.0
        %3628 = vmatprep.subr.mxu0 0.0
        %3629 = vmatpush1.msra.mxu0 0.0
        %3630 = vmatprep.subr.mxu0 0.0
        %3631 = vmatpush1.msra.mxu0 0.0
        %3632 = vmatprep.subr.mxu0 0.0
        %3633 = vmatpush1.msra.mxu0 0.0
        %3634 = vmatprep.subr.mxu0 0.0
        %3635 = vmatpush1.msra.mxu0 0.0
        %3636 = vmatprep.subr.mxu0 0.0
        %3637 = vmatpush1.msra.mxu0 0.0
        %3638 = vmatprep.subr.mxu0 0.0
        %3639 = vmatpush1.msra.mxu0 0.0
        %3640 = vmatprep.subr.mxu0 0.0
        %3641 = vmatpush1.msra.mxu0 0.0
        %3642 = vmatprep.subr.mxu0 0.0
        %3643 = vmatpush1.msra.mxu0 0.0
        %3644 = vmatprep.subr.mxu0 0.0
        %3645 = vmatpush1.msra.mxu0 0.0
        %3646 = vmatprep.subr.mxu0 0.0
        %3647 = vmatpush1.msra.mxu0 0.0
        %3648 = vmatprep.subr.mxu0 0.0
        %3649 = vmatpush1.msra.mxu0 0.0
        %3650 = vmatprep.subr.mxu0 0.0
        %3651 = vmatpush1.msra.mxu0 0.0
        %3652 = vmatprep.subr.mxu0 0.0
        %3653 = vmatpush1.msra.mxu0 0.0
        %3654 = vmatprep.subr.mxu0 0.0
        %3655 = vmatpush1.msra.mxu0 0.0
        %3656 = vmatprep.subr.mxu0 0.0
        %3657 = vmatpush1.msra.mxu0 0.0
        %3658 = vmatprep.subr.mxu0 0.0
        %3659 = vmatpush1.msra.mxu0 0.0
        %3660 = vmatprep.subr.mxu0 0.0
        %3661 = vmatpush1.msra.mxu0 0.0
        %3662 = vmatprep.subr.mxu0 0.0
        %3663 = vmatpush1.msra.mxu0 0.0
        %3664 = vmatprep.subr.mxu0 0.0
        %3665 = vmatpush1.msra.mxu0 0.0
        %3666 = vmatprep.mubr.f32.mxu0 0.0
        %3667 = vmatmul.mubr.f32.gmra.mrb[0].mxu0 %v3597
        %v3668 = vpop.f32.mrb[0].mxu0
        %v3669 = vadd.f32 0.0, %v3668
        %v3670 = vpop.f32.mrb[0].mxu0
        %3671 = vdwg.mxu0
        %v3673 = vsel %vm2669, %v3517, 0
        %v3676 = vsel %vm1938, %v3522, 0
        %3678 = vmatprep.subr.mxu0 0.0
        %3679 = vmatpush1.msra.mxu0 %v3521
        %3680 = vmatprep.subr.mxu0 0.0
        %3681 = vmatpush1.msra.mxu0 %v3676
        %3682 = vmatprep.subr.mxu0 0.0
        %3683 = vmatpush1.msra.mxu0 0.0
        %3684 = vmatprep.subr.mxu0 0.0
        %3685 = vmatpush1.msra.mxu0 0.0
        %3686 = vmatprep.subr.mxu0 0.0
        %3687 = vmatpush1.msra.mxu0 0.0
        %3688 = vmatprep.subr.mxu0 0.0
        %3689 = vmatpush1.msra.mxu0 0.0
        %3690 = vmatprep.subr.mxu0 0.0
        %3691 = vmatpush1.msra.mxu0 0.0
        %3692 = vmatprep.subr.mxu0 0.0
        %3693 = vmatpush1.msra.mxu0 0.0
        %3694 = vmatprep.subr.mxu0 0.0
        %3695 = vmatpush1.msra.mxu0 0.0
        %3696 = vmatprep.subr.mxu0 0.0
        %3697 = vmatpush1.msra.mxu0 0.0
        %3698 = vmatprep.subr.mxu0 0.0
        %3699 = vmatpush1.msra.mxu0 0.0
        %3700 = vmatprep.subr.mxu0 0.0
        %3701 = vmatpush1.msra.mxu0 0.0
        %3702 = vmatprep.subr.mxu0 0.0
        %3703 = vmatpush1.msra.mxu0 0.0
        %3704 = vmatprep.subr.mxu0 0.0
        %3705 = vmatpush1.msra.mxu0 0.0
        %3706 = vmatprep.subr.mxu0 0.0
        %3707 = vmatpush1.msra.mxu0 0.0
        %3708 = vmatprep.subr.mxu0 0.0
        %3709 = vmatpush1.msra.mxu0 0.0
        %3710 = vmatprep.subr.mxu0 0.0
        %3711 = vmatpush1.msra.mxu0 0.0
        %3712 = vmatprep.subr.mxu0 0.0
        %3713 = vmatpush1.msra.mxu0 0.0
        %3714 = vmatprep.subr.mxu0 0.0
        %3715 = vmatpush1.msra.mxu0 0.0
        %3716 = vmatprep.subr.mxu0 0.0
        %3717 = vmatpush1.msra.mxu0 0.0
        %3718 = vmatprep.subr.mxu0 0.0
        %3719 = vmatpush1.msra.mxu0 0.0
        %3720 = vmatprep.subr.mxu0 0.0
        %3721 = vmatpush1.msra.mxu0 0.0
        %3722 = vmatprep.subr.mxu0 0.0
        %3723 = vmatpush1.msra.mxu0 0.0
        %3724 = vmatprep.subr.mxu0 0.0
        %3725 = vmatpush1.msra.mxu0 0.0
        %3726 = vmatprep.subr.mxu0 0.0
        %3727 = vmatpush1.msra.mxu0 0.0
        %3728 = vmatprep.subr.mxu0 0.0
        %3729 = vmatpush1.msra.mxu0 0.0
        %3730 = vmatprep.subr.mxu0 0.0
        %3731 = vmatpush1.msra.mxu0 0.0
        %3732 = vmatprep.subr.mxu0 0.0
        %3733 = vmatpush1.msra.mxu0 0.0
        %3734 = vmatprep.subr.mxu0 0.0
        %3735 = vmatpush1.msra.mxu0 0.0
        %3736 = vmatprep.subr.mxu0 0.0
        %3737 = vmatpush1.msra.mxu0 0.0
        %3738 = vmatprep.subr.mxu0 0.0
        %3739 = vmatpush1.msra.mxu0 0.0
        %3740 = vmatprep.subr.mxu0 0.0
        %3741 = vmatpush1.msra.mxu0 0.0
        %3742 = vmatprep.mubr.f32.mxu0 0.0
        %3743 = vmatmul.mubr.f32.gmra.mrb[0].mxu0 %v3673
        %v3744 = vpop.f32.mrb[0].mxu0
        %v3745 = vadd.f32 %v3669, %v3744
        %v3746 = vpop.f32.mrb[0].mxu0
        %3747 = vdwg.mxu0
        %3748 = vmatprep.subr.mxu0 0.0
        %3749 = vmatpush1.msra.mxu0 %v3448
        %3750 = vmatprep.subr.mxu0 0.0
        %3751 = vmatpush1.msra.mxu0 0.0
        %3752 = vmatprep.subr.mxu0 0.0
        %3753 = vmatpush1.msra.mxu0 0.0
        %3754 = vmatprep.subr.mxu0 0.0
        %3755 = vmatpush1.msra.mxu0 0.0
        %3756 = vmatprep.subr.mxu0 0.0
        %3757 = vmatpush1.msra.mxu0 0.0
        %3758 = vmatprep.subr.mxu0 0.0
        %3759 = vmatpush1.msra.mxu0 0.0
        %3760 = vmatprep.subr.mxu0 0.0
        %3761 = vmatpush1.msra.mxu0 0.0
        %3762 = vmatprep.subr.mxu0 0.0
        %3763 = vmatpush1.msra.mxu0 0.0
        %3764 = vmatprep.subr.mxu0 0.0
        %3765 = vmatpush1.msra.mxu0 0.0
        %3766 = vmatprep.subr.mxu0 0.0
        %3767 = vmatpush1.msra.mxu0 0.0
        %3768 = vmatprep.subr.mxu0 0.0
        %3769 = vmatpush1.msra.mxu0 0.0
        %3770 = vmatprep.subr.mxu0 0.0
        %3771 = vmatpush1.msra.mxu0 0.0
        %3772 = vmatprep.subr.mxu0 0.0
        %3773 = vmatpush1.msra.mxu0 0.0
        %3774 = vmatprep.subr.mxu0 0.0
        %3775 = vmatpush1.msra.mxu0 0.0
        %3776 = vmatprep.subr.mxu0 0.0
        %3777 = vmatpush1.msra.mxu0 0.0
        %3778 = vmatprep.subr.mxu0 0.0
        %3779 = vmatpush1.msra.mxu0 0.0
        %3780 = vmatprep.subr.mxu0 0.0
        %3781 = vmatpush1.msra.mxu0 0.0
        %3782 = vmatprep.subr.mxu0 0.0
        %3783 = vmatpush1.msra.mxu0 0.0
        %3784 = vmatprep.subr.mxu0 0.0
        %3785 = vmatpush1.msra.mxu0 0.0
        %3786 = vmatprep.subr.mxu0 0.0
        %3787 = vmatpush1.msra.mxu0 0.0
        %3788 = vmatprep.subr.mxu0 0.0
        %3789 = vmatpush1.msra.mxu0 0.0
        %3790 = vmatprep.subr.mxu0 0.0
        %3791 = vmatpush1.msra.mxu0 0.0
        %3792 = vmatprep.subr.mxu0 0.0
        %3793 = vmatpush1.msra.mxu0 0.0
        %3794 = vmatprep.subr.mxu0 0.0
        %3795 = vmatpush1.msra.mxu0 0.0
        %3796 = vmatprep.subr.mxu0 0.0
        %3797 = vmatpush1.msra.mxu0 0.0
        %3798 = vmatprep.subr.mxu0 0.0
        %3799 = vmatpush1.msra.mxu0 0.0
        %3800 = vmatprep.subr.mxu0 0.0
        %3801 = vmatpush1.msra.mxu0 0.0
        %3802 = vmatprep.subr.mxu0 0.0
        %3803 = vmatpush1.msra.mxu0 0.0
        %3804 = vmatprep.subr.mxu0 0.0
        %3805 = vmatpush1.msra.mxu0 0.0
        %3806 = vmatprep.subr.mxu0 0.0
        %3807 = vmatpush1.msra.mxu0 0.0
        %3808 = vmatprep.subr.mxu0 0.0
        %3809 = vmatpush1.msra.mxu0 0.0
        %3810 = vmatprep.subr.mxu0 0.0
        %3811 = vmatpush1.msra.mxu0 0.0
        %3812 = vmatprep.mubr.f32.mxu0 0.0
        %3813 = vmatmul.mubr.f32.gmra.mrb[0].mxu0 %v2825
        %v3814 = vpop.f32.mrb[0].mxu0
        %v3815 = vadd.f32 0.0, %v3814
        %v3816 = vpop.f32.mrb[0].mxu0
        %3817 = vdwg.mxu0
        %s3818 = scalar_lea.vmem %s9, 128
        %v3819 = vld [vmem:[%s3818] sm:$0xff]
        %v3820 = vld [vmem:[%s3818 + $0x8] sm:$0xf]
        %v3822 = vsel %vm2669, %v3815, 0
        %v3825 = vsel %vm1938, %v3820, 0
        %3827 = vmatprep.subr.mxu0 0.0
        %3828 = vmatpush1.msra.mxu0 %v3819
        %3829 = vmatprep.subr.mxu0 0.0
        %3830 = vmatpush1.msra.mxu0 %v3825
        %3831 = vmatprep.subr.mxu0 0.0
        %3832 = vmatpush1.msra.mxu0 0.0
        %3833 = vmatprep.subr.mxu0 0.0
        %3834 = vmatpush1.msra.mxu0 0.0
        %3835 = vmatprep.subr.mxu0 0.0
        %3836 = vmatpush1.msra.mxu0 0.0
        %3837 = vmatprep.subr.mxu0 0.0
        %3838 = vmatpush1.msra.mxu0 0.0
        %3839 = vmatprep.subr.mxu0 0.0
        %3840 = vmatpush1.msra.mxu0 0.0
        %3841 = vmatprep.subr.mxu0 0.0
        %3842 = vmatpush1.msra.mxu0 0.0
        %3843 = vmatprep.subr.mxu0 0.0
        %3844 = vmatpush1.msra.mxu0 0.0
        %3845 = vmatprep.subr.mxu0 0.0
        %3846 = vmatpush1.msra.mxu0 0.0
        %3847 = vmatprep.subr.mxu0 0.0
        %3848 = vmatpush1.msra.mxu0 0.0
        %3849 = vmatprep.subr.mxu0 0.0
        %3850 = vmatpush1.msra.mxu0 0.0
        %3851 = vmatprep.subr.mxu0 0.0
        %3852 = vmatpush1.msra.mxu0 0.0
        %3853 = vmatprep.subr.mxu0 0.0
        %3854 = vmatpush1.msra.mxu0 0.0
        %3855 = vmatprep.subr.mxu0 0.0
        %3856 = vmatpush1.msra.mxu0 0.0
        %3857 = vmatprep.subr.mxu0 0.0
        %3858 = vmatpush1.msra.mxu0 0.0
        %3859 = vmatprep.subr.mxu0 0.0
        %3860 = vmatpush1.msra.mxu0 0.0
        %3861 = vmatprep.subr.mxu0 0.0
        %3862 = vmatpush1.msra.mxu0 0.0
        %3863 = vmatprep.subr.mxu0 0.0
        %3864 = vmatpush1.msra.mxu0 0.0
        %3865 = vmatprep.subr.mxu0 0.0
        %3866 = vmatpush1.msra.mxu0 0.0
        %3867 = vmatprep.subr.mxu0 0.0
        %3868 = vmatpush1.msra.mxu0 0.0
        %3869 = vmatprep.subr.mxu0 0.0
        %3870 = vmatpush1.msra.mxu0 0.0
        %3871 = vmatprep.subr.mxu0 0.0
        %3872 = vmatpush1.msra.mxu0 0.0
        %3873 = vmatprep.subr.mxu0 0.0
        %3874 = vmatpush1.msra.mxu0 0.0
        %3875 = vmatprep.subr.mxu0 0.0
        %3876 = vmatpush1.msra.mxu0 0.0
        %3877 = vmatprep.subr.mxu0 0.0
        %3878 = vmatpush1.msra.mxu0 0.0
        %3879 = vmatprep.subr.mxu0 0.0
        %3880 = vmatpush1.msra.mxu0 0.0
        %3881 = vmatprep.subr.mxu0 0.0
        %3882 = vmatpush1.msra.mxu0 0.0
        %3883 = vmatprep.subr.mxu0 0.0
        %3884 = vmatpush1.msra.mxu0 0.0
        %3885 = vmatprep.subr.mxu0 0.0
        %3886 = vmatpush1.msra.mxu0 0.0
        %3887 = vmatprep.subr.mxu0 0.0
        %3888 = vmatpush1.msra.mxu0 0.0
        %3889 = vmatprep.subr.mxu0 0.0
        %3890 = vmatpush1.msra.mxu0 0.0
        %3891 = vmatprep.mubr.f32.mxu0 0.0
        %3892 = vmatmul.mubr.f32.gmra.mrb[0].mxu0 %v3822
        %v3893 = vpop.f32.mrb[0].mxu0
        %v3894 = vadd.f32 0.0, %v3893
        %v3895 = vpop.f32.mrb[0].mxu0
        %3896 = vdwg.mxu0
        %v3897 = vadd.f32 %v3745, %v3894
        %s3898 = scalar_lea.vmem %s10, 2
        %v3899 = vld [vmem:[%s3898] sm:$0x1]
        %v3901 = vlaneseq
        %v3902 = vshrl.u32 %v3901, 7
        %v3903 = vsub.s32 0, %v3902
        %v3904 = vrot.slane %v3899, %v3903
        %v3906 = vadd.f32 %v3897, %v3904
        %v3907 = vld [vmem:[%s11] sm:$0xff]
        %v3908 = vld [vmem:[%s11 + $0x8] sm:$0xff]
        %v3909 = vld [vmem:[%s11 + $0x10] sm:$0xff]
        %v3910 = vld [vmem:[%s11 + $0x18] sm:$0xff]
        %v3912 = vsel %vm2511, %v3907, 0
        %v3915 = vsel %vm2511, %v3908, 0
        %v3918 = vsel %vm2511, %v3909, 0
        %v3921 = vsel %vm2511, %v3910, 0
        %v3924 = vsel %vm2515, %v3906, 0
        %3926 = vmatprep.subr.mxu0 0.0
        %3927 = vmatpush1.msra.mxu0 %v3924
        %3928 = vmatprep.subr.mxu0 0.0
        %3929 = vmatpush1.msra.mxu0 0.0
        %3930 = vmatprep.subr.mxu0 0.0
        %3931 = vmatpush1.msra.mxu0 0.0
        %3932 = vmatprep.subr.mxu0 0.0
        %3933 = vmatpush1.msra.mxu0 0.0
        %3934 = vmatprep.subr.mxu0 0.0
        %3935 = vmatpush1.msra.mxu0 0.0
        %3936 = vmatprep.subr.mxu0 0.0
        %3937 = vmatpush1.msra.mxu0 0.0
        %3938 = vmatprep.subr.mxu0 0.0
        %3939 = vmatpush1.msra.mxu0 0.0
        %3940 = vmatprep.subr.mxu0 0.0
        %3941 = vmatpush1.msra.mxu0 0.0
        %3942 = vmatprep.subr.mxu0 0.0
        %3943 = vmatpush1.msra.mxu0 0.0
        %3944 = vmatprep.subr.mxu0 0.0
        %3945 = vmatpush1.msra.mxu0 0.0
        %3946 = vmatprep.subr.mxu0 0.0
        %3947 = vmatpush1.msra.mxu0 0.0
        %3948 = vmatprep.subr.mxu0 0.0
        %3949 = vmatpush1.msra.mxu0 0.0
        %3950 = vmatprep.subr.mxu0 0.0
        %3951 = vmatpush1.msra.mxu0 0.0
        %3952 = vmatprep.subr.mxu0 0.0
        %3953 = vmatpush1.msra.mxu0 0.0
        %3954 = vmatprep.subr.mxu0 0.0
        %3955 = vmatpush1.msra.mxu0 0.0
        %3956 = vmatprep.subr.mxu0 0.0
        %3957 = vmatpush1.msra.mxu0 0.0
        %3958 = vmatprep.subr.mxu0 0.0
        %3959 = vmatpush1.msra.mxu0 0.0
        %3960 = vmatprep.subr.mxu0 0.0
        %3961 = vmatpush1.msra.mxu0 0.0
        %3962 = vmatprep.subr.mxu0 0.0
        %3963 = vmatpush1.msra.mxu0 0.0
        %3964 = vmatprep.subr.mxu0 0.0
        %3965 = vmatpush1.msra.mxu0 0.0
        %3966 = vmatprep.subr.mxu0 0.0
        %3967 = vmatpush1.msra.mxu0 0.0
        %3968 = vmatprep.subr.mxu0 0.0
        %3969 = vmatpush1.msra.mxu0 0.0
        %3970 = vmatprep.subr.mxu0 0.0
        %3971 = vmatpush1.msra.mxu0 0.0
        %3972 = vmatprep.subr.mxu0 0.0
        %3973 = vmatpush1.msra.mxu0 0.0
        %3974 = vmatprep.subr.mxu0 0.0
        %3975 = vmatpush1.msra.mxu0 0.0
        %3976 = vmatprep.subr.mxu0 0.0
        %3977 = vmatpush1.msra.mxu0 0.0
        %3978 = vmatprep.subr.mxu0 0.0
        %3979 = vmatpush1.msra.mxu0 0.0
        %3980 = vmatprep.subr.mxu0 0.0
        %3981 = vmatpush1.msra.mxu0 0.0
        %3982 = vmatprep.subr.mxu0 0.0
        %3983 = vmatpush1.msra.mxu0 0.0
        %3984 = vmatprep.subr.mxu0 0.0
        %3985 = vmatpush1.msra.mxu0 0.0
        %3986 = vmatprep.subr.mxu0 0.0
        %3987 = vmatpush1.msra.mxu0 0.0
        %3988 = vmatprep.subr.mxu0 0.0
        %3989 = vmatpush1.msra.mxu0 0.0
        %3990 = vmatprep.mubr.f32.mxu0 0.0
        %3991 = vmatmul.mubr.f32.gmra.mrb[0].mxu0 %v3912
        %v3992 = vpop.f32.mrb[0].mxu0
        %v3993 = vadd.f32 0.0, %v3992
        %v3994 = vpop.f32.mrb[0].mxu0
        %3995 = vmatprep.mubr.f32.mxu0 0.0
        %3996 = vmatmul.mubr.f32.gmra.mrb[0].mxu0 %v3915
        %v3997 = vpop.f32.mrb[0].mxu0
        %v3998 = vadd.f32 0.0, %v3997
        %v3999 = vpop.f32.mrb[0].mxu0
        %4000 = vmatprep.mubr.f32.mxu0 0.0
        %4001 = vmatmul.mubr.f32.gmra.mrb[0].mxu0 %v3918
        %v4002 = vpop.f32.mrb[0].mxu0
        %v4003 = vadd.f32 0.0, %v4002
        %v4004 = vpop.f32.mrb[0].mxu0
        %4005 = vmatprep.mubr.f32.mxu0 0.0
        %4006 = vmatmul.mubr.f32.gmra.mrb[0].mxu0 %v3921
        %v4007 = vpop.f32.mrb[0].mxu0
        %v4008 = vadd.f32 0.0, %v4007
        %v4009 = vpop.f32.mrb[0].mxu0
        %4010 = vdwg.mxu0
        %v4011 = vld [vmem:[%s12] sm:$0xff]
        %v4012 = vld [vmem:[%s12 + $0x8] sm:$0xf]
        %v4013 = vld [vmem:[#allocation7] sm:$0xff]
        %v4014 = vld [vmem:[#allocation7 + $0x8] sm:$0xff]
        %v4015 = vld [vmem:[#allocation7 + $0x10] sm:$0xff]
        %v4016 = vld [vmem:[#allocation7 + $0x18] sm:$0xff]
        %v4017 = vld [vmem:[#allocation7 + $0x20] sm:$0xff]
        %v4018 = vld [vmem:[#allocation7 + $0x28] sm:$0xff]
        %v4019 = vld [vmem:[#allocation7 + $0x30] sm:$0xff]
        %v4020 = vld [vmem:[#allocation7 + $0x38] sm:$0xff]
        %v4021 = vld [vmem:[#allocation7 + $0x40] sm:$0xff]
        %v4022 = vld [vmem:[#allocation7 + $0x48] sm:$0xff]
        %v4023 = vld [vmem:[#allocation7 + $0x50] sm:$0xff]
        %v4024 = vld [vmem:[#allocation7 + $0x58] sm:$0xff]
        %v4025 = vld [vmem:[#allocation7 + $0x60] sm:$0xff]
        %v4026 = vld [vmem:[#allocation7 + $0x68] sm:$0xff]
        %v4027 = vld [vmem:[#allocation7 + $0x70] sm:$0xff]
        %v4028 = vld [vmem:[#allocation7 + $0x78] sm:$0xff]
        %4029 = vmatprep.subr.mxu0 0.0
        %4030 = vmatpush1.msra.mxu0 %v4013
        %4031 = vmatprep.subr.mxu0 0.0
        %4032 = vmatpush1.msra.mxu0 %v4014
        %4033 = vmatprep.subr.mxu0 0.0
        %4034 = vmatpush1.msra.mxu0 %v4015
        %4035 = vmatprep.subr.mxu0 0.0
        %4036 = vmatpush1.msra.mxu0 %v4016
        %4037 = vmatprep.subr.mxu0 0.0
        %4038 = vmatpush1.msra.mxu0 %v4017
        %4039 = vmatprep.subr.mxu0 0.0
        %4040 = vmatpush1.msra.mxu0 %v4018
        %4041 = vmatprep.subr.mxu0 0.0
        %4042 = vmatpush1.msra.mxu0 %v4019
        %4043 = vmatprep.subr.mxu0 0.0
        %4044 = vmatpush1.msra.mxu0 %v4020
        %4045 = vmatprep.subr.mxu0 0.0
        %4046 = vmatpush1.msra.mxu0 %v4021
        %4047 = vmatprep.subr.mxu0 0.0
        %4048 = vmatpush1.msra.mxu0 %v4022
        %4049 = vmatprep.subr.mxu0 0.0
        %4050 = vmatpush1.msra.mxu0 %v4023
        %4051 = vmatprep.subr.mxu0 0.0
        %4052 = vmatpush1.msra.mxu0 %v4024
        %4053 = vmatprep.subr.mxu0 0.0
        %4054 = vmatpush1.msra.mxu0 %v4025
        %4055 = vmatprep.subr.mxu0 0.0
        %4056 = vmatpush1.msra.mxu0 %v4026
        %4057 = vmatprep.subr.mxu0 0.0
        %4058 = vmatpush1.msra.mxu0 %v4027
        %4059 = vmatprep.subr.mxu0 0.0
        %4060 = vmatpush1.msra.mxu0 %v4028
        %4061 = vmatprep.subr.mxu0 0.0
        %4062 = vmatpush1.msra.mxu0 0.0
        %4063 = vmatprep.subr.mxu0 0.0
        %4064 = vmatpush1.msra.mxu0 0.0
        %4065 = vmatprep.subr.mxu0 0.0
        %4066 = vmatpush1.msra.mxu0 0.0
        %4067 = vmatprep.subr.mxu0 0.0
        %4068 = vmatpush1.msra.mxu0 0.0
        %4069 = vmatprep.subr.mxu0 0.0
        %4070 = vmatpush1.msra.mxu0 0.0
        %4071 = vmatprep.subr.mxu0 0.0
        %4072 = vmatpush1.msra.mxu0 0.0
        %4073 = vmatprep.subr.mxu0 0.0
        %4074 = vmatpush1.msra.mxu0 0.0
        %4075 = vmatprep.subr.mxu0 0.0
        %4076 = vmatpush1.msra.mxu0 0.0
        %4077 = vmatprep.subr.mxu0 0.0
        %4078 = vmatpush1.msra.mxu0 0.0
        %4079 = vmatprep.subr.mxu0 0.0
        %4080 = vmatpush1.msra.mxu0 0.0
        %4081 = vmatprep.subr.mxu0 0.0
        %4082 = vmatpush1.msra.mxu0 0.0
        %4083 = vmatprep.subr.mxu0 0.0
        %4084 = vmatpush1.msra.mxu0 0.0
        %4085 = vmatprep.subr.mxu0 0.0
        %4086 = vmatpush1.msra.mxu0 0.0
        %4087 = vmatprep.subr.mxu0 0.0
        %4088 = vmatpush1.msra.mxu0 0.0
        %4089 = vmatprep.subr.mxu0 0.0
        %4090 = vmatpush1.msra.mxu0 0.0
        %4091 = vmatprep.subr.mxu0 0.0
        %4092 = vmatpush1.msra.mxu0 0.0
        %4093 = vmatprep.mubr.f32.mxu0 0.0
        %4094 = vmatmul.mubr.f32.gmra.mrb[0].mxu0 %v835
        %v4095 = vpop.f32.mrb[0].mxu0
        %v4096 = vadd.f32 0.0, %v4095
        %v4097 = vpop.f32.mrb[0].mxu0
        %4098 = vmatprep.mubr.f32.mxu0 0.0
        %4099 = vmatmul.mubr.f32.gmra.mrb[0].mxu0 %v840
        %v4100 = vpop.f32.mrb[0].mxu0
        %v4101 = vadd.f32 0.0, %v4100
        %v4102 = vpop.f32.mrb[0].mxu0
        %4103 = vmatprep.mubr.f32.mxu0 0.0
        %4104 = vmatmul.mubr.f32.gmra.mrb[0].mxu0 %v845
        %v4105 = vpop.f32.mrb[0].mxu0
        %v4106 = vadd.f32 0.0, %v4105
        %v4107 = vpop.f32.mrb[0].mxu0
        %4108 = vmatprep.mubr.f32.mxu0 0.0
        %4109 = vmatmul.mubr.f32.gmra.mrb[0].mxu0 %v850
        %v4110 = vpop.f32.mrb[0].mxu0
        %v4111 = vadd.f32 0.0, %v4110
        %v4112 = vpop.f32.mrb[0].mxu0
        %4113 = vdwg.mxu0
        %v4115 = vsel %vm2669, %v3993, 0
        %v4118 = vsel %vm2669, %v3998, 0
        %v4121 = vsel %vm2669, %v4003, 0
        %v4124 = vsel %vm2669, %v4008, 0
        %v4127 = vsel %vm1938, %v4012, 0
        %4129 = vmatprep.subr.mxu0 0.0
        %4130 = vmatpush1.msra.mxu0 %v4011
        %4131 = vmatprep.subr.mxu0 0.0
        %4132 = vmatpush1.msra.mxu0 %v4127
        %4133 = vmatprep.subr.mxu0 0.0
        %4134 = vmatpush1.msra.mxu0 0.0
        %4135 = vmatprep.subr.mxu0 0.0
        %4136 = vmatpush1.msra.mxu0 0.0
        %4137 = vmatprep.subr.mxu0 0.0
        %4138 = vmatpush1.msra.mxu0 0.0
        %4139 = vmatprep.subr.mxu0 0.0
        %4140 = vmatpush1.msra.mxu0 0.0
        %4141 = vmatprep.subr.mxu0 0.0
        %4142 = vmatpush1.msra.mxu0 0.0
        %4143 = vmatprep.subr.mxu0 0.0
        %4144 = vmatpush1.msra.mxu0 0.0
        %4145 = vmatprep.subr.mxu0 0.0
        %4146 = vmatpush1.msra.mxu0 0.0
        %4147 = vmatprep.subr.mxu0 0.0
        %4148 = vmatpush1.msra.mxu0 0.0
        %4149 = vmatprep.subr.mxu0 0.0
        %4150 = vmatpush1.msra.mxu0 0.0
        %4151 = vmatprep.subr.mxu0 0.0
        %4152 = vmatpush1.msra.mxu0 0.0
        %4153 = vmatprep.subr.mxu0 0.0
        %4154 = vmatpush1.msra.mxu0 0.0
        %4155 = vmatprep.subr.mxu0 0.0
        %4156 = vmatpush1.msra.mxu0 0.0
        %4157 = vmatprep.subr.mxu0 0.0
        %4158 = vmatpush1.msra.mxu0 0.0
        %4159 = vmatprep.subr.mxu0 0.0
        %4160 = vmatpush1.msra.mxu0 0.0
        %4161 = vmatprep.subr.mxu0 0.0
        %4162 = vmatpush1.msra.mxu0 0.0
        %4163 = vmatprep.subr.mxu0 0.0
        %4164 = vmatpush1.msra.mxu0 0.0
        %4165 = vmatprep.subr.mxu0 0.0
        %4166 = vmatpush1.msra.mxu0 0.0
        %4167 = vmatprep.subr.mxu0 0.0
        %4168 = vmatpush1.msra.mxu0 0.0
        %4169 = vmatprep.subr.mxu0 0.0
        %4170 = vmatpush1.msra.mxu0 0.0
        %4171 = vmatprep.subr.mxu0 0.0
        %4172 = vmatpush1.msra.mxu0 0.0
        %4173 = vmatprep.subr.mxu0 0.0
        %4174 = vmatpush1.msra.mxu0 0.0
        %4175 = vmatprep.subr.mxu0 0.0
        %4176 = vmatpush1.msra.mxu0 0.0
        %4177 = vmatprep.subr.mxu0 0.0
        %4178 = vmatpush1.msra.mxu0 0.0
        %4179 = vmatprep.subr.mxu0 0.0
        %4180 = vmatpush1.msra.mxu0 0.0
        %4181 = vmatprep.subr.mxu0 0.0
        %4182 = vmatpush1.msra.mxu0 0.0
        %4183 = vmatprep.subr.mxu0 0.0
        %4184 = vmatpush1.msra.mxu0 0.0
        %4185 = vmatprep.subr.mxu0 0.0
        %4186 = vmatpush1.msra.mxu0 0.0
        %4187 = vmatprep.subr.mxu0 0.0
        %4188 = vmatpush1.msra.mxu0 0.0
        %4189 = vmatprep.subr.mxu0 0.0
        %4190 = vmatpush1.msra.mxu0 0.0
        %4191 = vmatprep.subr.mxu0 0.0
        %4192 = vmatpush1.msra.mxu0 0.0
        %4193 = vmatprep.mubr.f32.mxu0 0.0
        %4194 = vmatmul.mubr.f32.gmra.mrb[0].mxu0 %v4115
        %v4195 = vpop.f32.mrb[0].mxu0
        %v4196 = vadd.f32 %v4096, %v4195
        %v4197 = vpop.f32.mrb[0].mxu0
        %4198 = vmatprep.mubr.f32.mxu0 0.0
        %4199 = vmatmul.mubr.f32.gmra.mrb[0].mxu0 %v4118
        %v4200 = vpop.f32.mrb[0].mxu0
        %v4201 = vadd.f32 %v4101, %v4200
        %v4202 = vpop.f32.mrb[0].mxu0
        %4203 = vmatprep.mubr.f32.mxu0 0.0
        %4204 = vmatmul.mubr.f32.gmra.mrb[0].mxu0 %v4121
        %v4205 = vpop.f32.mrb[0].mxu0
        %v4206 = vadd.f32 %v4106, %v4205
        %v4207 = vpop.f32.mrb[0].mxu0
        %4208 = vmatprep.mubr.f32.mxu0 0.0
        %4209 = vmatmul.mubr.f32.gmra.mrb[0].mxu0 %v4124
        %v4210 = vpop.f32.mrb[0].mxu0
        %v4211 = vadd.f32 %v4111, %v4210
        %v4212 = vpop.f32.mrb[0].mxu0
        %4213 = vdwg.mxu0
        %v4214 = vld [vmem:[%s14] sm:$0x1]
        %v4216 = vlaneseq
        %v4217 = vshrl.u32 %v4216, 7
        %v4218 = vsub.s32 0, %v4217
        %v4219 = vrot.slane %v4214, %v4218
        %v4221 = vadd.f32 %v4196, %v4219
        %v4222 = vadd.f32 %v4201, %v4219
        %v4223 = vadd.f32 %v4206, %v4219
        %v4224 = vadd.f32 %v4211, %v4219
        %v4225 = vld [vmem:[%s15] sm:$0xff]
        %v4226 = vld [vmem:[%s15 + $0x8] sm:$0xff]
        %v4227 = vld [vmem:[%s15 + $0x10] sm:$0xff]
        %v4228 = vld [vmem:[%s15 + $0x18] sm:$0xff]
        %v4229 = vld [vmem:[%s15 + $0x20] sm:$0xff]
        %v4230 = vld [vmem:[%s15 + $0x28] sm:$0xff]
        %v4231 = vld [vmem:[%s15 + $0x30] sm:$0xff]
        %v4232 = vld [vmem:[%s15 + $0x38] sm:$0xff]
        %v4233 = vld [vmem:[%s15 + $0x40] sm:$0xff]
        %v4234 = vld [vmem:[%s15 + $0x48] sm:$0xff]
        %v4235 = vld [vmem:[%s15 + $0x50] sm:$0xff]
        %v4236 = vld [vmem:[%s15 + $0x58] sm:$0xff]
        %v4237 = vld [vmem:[%s15 + $0x60] sm:$0xff]
        %v4238 = vld [vmem:[%s15 + $0x68] sm:$0xff]
        %v4239 = vld [vmem:[%s15 + $0x70] sm:$0xff]
        %v4240 = vld [vmem:[%s15 + $0x78] sm:$0xff]
        %v4241 = vld [vmem:[%s15 + $0x80] sm:$0xff]
        %v4242 = vld [vmem:[%s15 + $0x88] sm:$0xff]
        %v4243 = vld [vmem:[%s15 + $0x90] sm:$0xff]
        %v4244 = vld [vmem:[%s15 + $0x98] sm:$0xff]
        %v4245 = vld [vmem:[%s15 + $0xa0] sm:$0xff]
        %v4246 = vld [vmem:[%s15 + $0xa8] sm:$0xff]
        %v4247 = vld [vmem:[%s15 + $0xb0] sm:$0xff]
        %v4248 = vld [vmem:[%s15 + $0xb8] sm:$0xff]
        %v4249 = vld [vmem:[%s15 + $0xc0] sm:$0xff]
        %v4250 = vld [vmem:[%s15 + $0xc8] sm:$0xff]
        %v4251 = vld [vmem:[%s15 + $0xd0] sm:$0xff]
        %v4252 = vld [vmem:[%s15 + $0xd8] sm:$0xff]
        %v4253 = vld [vmem:[%s15 + $0xe0] sm:$0xff]
        %v4254 = vld [vmem:[%s15 + $0xe8] sm:$0xff]
        %v4255 = vld [vmem:[%s15 + $0xf0] sm:$0xff]
        %v4256 = vld [vmem:[%s15 + $0xf8] sm:$0xff]
        %v4257 = vld [vmem:[%s15 + $0x100] sm:$0xff]
        %v4258 = vld [vmem:[%s15 + $0x108] sm:$0xff]
        %v4259 = vld [vmem:[%s15 + $0x110] sm:$0xff]
        %v4260 = vld [vmem:[%s15 + $0x118] sm:$0xff]
        %v4261 = vld [vmem:[%s15 + $0x120] sm:$0xff]
        %v4262 = vld [vmem:[%s15 + $0x128] sm:$0xff]
        %v4263 = vld [vmem:[%s15 + $0x130] sm:$0xff]
        %v4264 = vld [vmem:[%s15 + $0x138] sm:$0xff]
        %v4265 = vld [vmem:[%s15 + $0x140] sm:$0xff]
        %v4266 = vld [vmem:[%s15 + $0x148] sm:$0xff]
        %v4267 = vld [vmem:[%s15 + $0x150] sm:$0xff]
        %v4268 = vld [vmem:[%s15 + $0x158] sm:$0xff]
        %v4269 = vld [vmem:[%s15 + $0x160] sm:$0xff]
        %v4270 = vld [vmem:[%s15 + $0x168] sm:$0xff]
        %v4271 = vld [vmem:[%s15 + $0x170] sm:$0xff]
        %v4272 = vld [vmem:[%s15 + $0x178] sm:$0xff]
        %v4273 = vld [vmem:[%s15 + $0x180] sm:$0xff]
        %v4274 = vld [vmem:[%s15 + $0x188] sm:$0xff]
        %v4275 = vld [vmem:[%s15 + $0x190] sm:$0xff]
        %v4276 = vld [vmem:[%s15 + $0x198] sm:$0xff]
        %v4277 = vld [vmem:[%s15 + $0x1a0] sm:$0xff]
        %v4278 = vld [vmem:[%s15 + $0x1a8] sm:$0xff]
        %v4279 = vld [vmem:[%s15 + $0x1b0] sm:$0xff]
        %v4280 = vld [vmem:[%s15 + $0x1b8] sm:$0xff]
        %v4281 = vld [vmem:[%s15 + $0x1c0] sm:$0xff]
        %v4282 = vld [vmem:[%s15 + $0x1c8] sm:$0xff]
        %v4283 = vld [vmem:[%s15 + $0x1d0] sm:$0xff]
        %v4284 = vld [vmem:[%s15 + $0x1d8] sm:$0xff]
        %v4285 = vld [vmem:[%s15 + $0x1e0] sm:$0xff]
        %v4286 = vld [vmem:[%s15 + $0x1e8] sm:$0xff]
        %v4287 = vld [vmem:[%s15 + $0x1f0] sm:$0xff]
        %v4288 = vld [vmem:[%s15 + $0x1f8] sm:$0xff]
        %v4289 = vld [vmem:[%s16] sm:$0xf]
        %v4291 = vlaneseq
        %v4292 = vshrl.u32 %v4291, 7
        %v4293 = vsub.s32 0, %v4292
        %v4294 = vrot.slane %v4289, %v4293
        %v4295 = vlaneseq
        %v4296 = vshrl.u32 %v4295, 7
        %v4297 = vsub.s32 1, %v4296
        %v4298 = vrot.slane %v4289, %v4297
        %v4299 = vlaneseq
        %v4300 = vshrl.u32 %v4299, 7
        %v4301 = vsub.s32 2, %v4300
        %v4302 = vrot.slane %v4289, %v4301
        %v4303 = vlaneseq
        %v4304 = vshrl.u32 %v4303, 7
        %v4305 = vsub.s32 3, %v4304
        %v4306 = vrot.slane %v4289, %v4305
        %4311 = vmatprep.subr.mxu0 %v4226
        %4312 = vmatpush1.msra.mxu0 %v4225
        %4313 = vmatprep.subr.mxu0 %v4230
        %4314 = vmatpush1.msra.mxu0 %v4229
        %4315 = vmatprep.subr.mxu0 %v4234
        %4316 = vmatpush1.msra.mxu0 %v4233
        %4317 = vmatprep.subr.mxu0 %v4238
        %4318 = vmatpush1.msra.mxu0 %v4237
        %4319 = vmatprep.subr.mxu0 %v4242
        %4320 = vmatpush1.msra.mxu0 %v4241
        %4321 = vmatprep.subr.mxu0 %v4246
        %4322 = vmatpush1.msra.mxu0 %v4245
        %4323 = vmatprep.subr.mxu0 %v4250
        %4324 = vmatpush1.msra.mxu0 %v4249
        %4325 = vmatprep.subr.mxu0 %v4254
        %4326 = vmatpush1.msra.mxu0 %v4253
        %4327 = vmatprep.subr.mxu0 %v4258
        %4328 = vmatpush1.msra.mxu0 %v4257
        %4329 = vmatprep.subr.mxu0 %v4262
        %4330 = vmatpush1.msra.mxu0 %v4261
        %4331 = vmatprep.subr.mxu0 %v4266
        %4332 = vmatpush1.msra.mxu0 %v4265
        %4333 = vmatprep.subr.mxu0 %v4270
        %4334 = vmatpush1.msra.mxu0 %v4269
        %4335 = vmatprep.subr.mxu0 %v4274
        %4336 = vmatpush1.msra.mxu0 %v4273
        %4337 = vmatprep.subr.mxu0 %v4278
        %4338 = vmatpush1.msra.mxu0 %v4277
        %4339 = vmatprep.subr.mxu0 %v4282
        %4340 = vmatpush1.msra.mxu0 %v4281
        %4341 = vmatprep.subr.mxu0 %v4286
        %4342 = vmatpush1.msra.mxu0 %v4285
        %4343 = vmatprep.subr.mxu0 0.0
        %4344 = vmatpush1.msra.mxu0 0.0
        %4345 = vmatprep.subr.mxu0 0.0
        %4346 = vmatpush1.msra.mxu0 0.0
        %4347 = vmatprep.subr.mxu0 0.0
        %4348 = vmatpush1.msra.mxu0 0.0
        %4349 = vmatprep.subr.mxu0 0.0
        %4350 = vmatpush1.msra.mxu0 0.0
        %4351 = vmatprep.subr.mxu0 0.0
        %4352 = vmatpush1.msra.mxu0 0.0
        %4353 = vmatprep.subr.mxu0 0.0
        %4354 = vmatpush1.msra.mxu0 0.0
        %4355 = vmatprep.subr.mxu0 0.0
        %4356 = vmatpush1.msra.mxu0 0.0
        %4357 = vmatprep.subr.mxu0 0.0
        %4358 = vmatpush1.msra.mxu0 0.0
        %4359 = vmatprep.subr.mxu0 0.0
        %4360 = vmatpush1.msra.mxu0 0.0
        %4361 = vmatprep.subr.mxu0 0.0
        %4362 = vmatpush1.msra.mxu0 0.0
        %4363 = vmatprep.subr.mxu0 0.0
        %4364 = vmatpush1.msra.mxu0 0.0
        %4365 = vmatprep.subr.mxu0 0.0
        %4366 = vmatpush1.msra.mxu0 0.0
        %4367 = vmatprep.subr.mxu0 0.0
        %4368 = vmatpush1.msra.mxu0 0.0
        %4369 = vmatprep.subr.mxu0 0.0
        %4370 = vmatpush1.msra.mxu0 0.0
        %4371 = vmatprep.subr.mxu0 0.0
        %4372 = vmatpush1.msra.mxu0 0.0
        %4373 = vmatprep.subr.mxu0 0.0
        %4374 = vmatpush1.msra.mxu0 0.0
        %4375 = vmatprep.mubr.f32.mxu0 0.0
        %4376 = vmatmul.mubr.f32.gmra.mrb[0].mxu0 %v4221
        %v4377 = vpop.f32.mrb[0].mxu0
        %v4378 = vadd.f32 %v4294, %v4377
        %v4379 = vpop.f32.mrb[0].mxu0
        %v4380 = vadd.f32 %v4298, %v4379
        %4381 = vmatprep.mubr.f32.mxu0 0.0
        %4382 = vmatmul.mubr.f32.gmra.mrb[0].mxu0 %v4222
        %v4383 = vpop.f32.mrb[0].mxu0
        %v4384 = vadd.f32 %v4294, %v4383
        %v4385 = vpop.f32.mrb[0].mxu0
        %v4386 = vadd.f32 %v4298, %v4385
        %4387 = vmatprep.mubr.f32.mxu0 0.0
        %4388 = vmatmul.mubr.f32.gmra.mrb[0].mxu0 %v4223
        %v4389 = vpop.f32.mrb[0].mxu0
        %v4390 = vadd.f32 %v4294, %v4389
        %v4391 = vpop.f32.mrb[0].mxu0
        %v4392 = vadd.f32 %v4298, %v4391
        %4393 = vmatprep.mubr.f32.mxu0 0.0
        %4394 = vmatmul.mubr.f32.gmra.mrb[0].mxu0 %v4224
        %v4395 = vpop.f32.mrb[0].mxu0
        %v4396 = vadd.f32 %v4294, %v4395
        %v4397 = vpop.f32.mrb[0].mxu0
        %v4398 = vadd.f32 %v4298, %v4397
        %4399 = vdwg.mxu0
        %4400 = vmatprep.subr.mxu0 %v4228
        %4401 = vmatpush1.msra.mxu0 %v4227
        %4402 = vmatprep.subr.mxu0 %v4232
        %4403 = vmatpush1.msra.mxu0 %v4231
        %4404 = vmatprep.subr.mxu0 %v4236
        %4405 = vmatpush1.msra.mxu0 %v4235
        %4406 = vmatprep.subr.mxu0 %v4240
        %4407 = vmatpush1.msra.mxu0 %v4239
        %4408 = vmatprep.subr.mxu0 %v4244
        %4409 = vmatpush1.msra.mxu0 %v4243
        %4410 = vmatprep.subr.mxu0 %v4248
        %4411 = vmatpush1.msra.mxu0 %v4247
        %4412 = vmatprep.subr.mxu0 %v4252
        %4413 = vmatpush1.msra.mxu0 %v4251
        %4414 = vmatprep.subr.mxu0 %v4256
        %4415 = vmatpush1.msra.mxu0 %v4255
        %4416 = vmatprep.subr.mxu0 %v4260
        %4417 = vmatpush1.msra.mxu0 %v4259
        %4418 = vmatprep.subr.mxu0 %v4264
        %4419 = vmatpush1.msra.mxu0 %v4263
        %4420 = vmatprep.subr.mxu0 %v4268
        %4421 = vmatpush1.msra.mxu0 %v4267
        %4422 = vmatprep.subr.mxu0 %v4272
        %4423 = vmatpush1.msra.mxu0 %v4271
        %4424 = vmatprep.subr.mxu0 %v4276
        %4425 = vmatpush1.msra.mxu0 %v4275
        %4426 = vmatprep.subr.mxu0 %v4280
        %4427 = vmatpush1.msra.mxu0 %v4279
        %4428 = vmatprep.subr.mxu0 %v4284
        %4429 = vmatpush1.msra.mxu0 %v4283
        %4430 = vmatprep.subr.mxu0 %v4288
        %4431 = vmatpush1.msra.mxu0 %v4287
        %4432 = vmatprep.subr.mxu0 0.0
        %4433 = vmatpush1.msra.mxu0 0.0
        %4434 = vmatprep.subr.mxu0 0.0
        %4435 = vmatpush1.msra.mxu0 0.0
        %4436 = vmatprep.subr.mxu0 0.0
        %4437 = vmatpush1.msra.mxu0 0.0
        %4438 = vmatprep.subr.mxu0 0.0
        %4439 = vmatpush1.msra.mxu0 0.0
        %4440 = vmatprep.subr.mxu0 0.0
        %4441 = vmatpush1.msra.mxu0 0.0
        %4442 = vmatprep.subr.mxu0 0.0
        %4443 = vmatpush1.msra.mxu0 0.0
        %4444 = vmatprep.subr.mxu0 0.0
        %4445 = vmatpush1.msra.mxu0 0.0
        %4446 = vmatprep.subr.mxu0 0.0
        %4447 = vmatpush1.msra.mxu0 0.0
        %4448 = vmatprep.subr.mxu0 0.0
        %4449 = vmatpush1.msra.mxu0 0.0
        %4450 = vmatprep.subr.mxu0 0.0
        %4451 = vmatpush1.msra.mxu0 0.0
        %4452 = vmatprep.subr.mxu0 0.0
        %4453 = vmatpush1.msra.mxu0 0.0
        %4454 = vmatprep.subr.mxu0 0.0
        %4455 = vmatpush1.msra.mxu0 0.0
        %4456 = vmatprep.subr.mxu0 0.0
        %4457 = vmatpush1.msra.mxu0 0.0
        %4458 = vmatprep.subr.mxu0 0.0
        %4459 = vmatpush1.msra.mxu0 0.0
        %4460 = vmatprep.subr.mxu0 0.0
        %4461 = vmatpush1.msra.mxu0 0.0
        %4462 = vmatprep.subr.mxu0 0.0
        %4463 = vmatpush1.msra.mxu0 0.0
        %4464 = vmatprep.mubr.f32.mxu0 0.0
        %4465 = vmatmul.mubr.f32.gmra.mrb[0].mxu0 %v4221
        %v4466 = vpop.f32.mrb[0].mxu0
        %v4467 = vadd.f32 %v4302, %v4466
        %v4468 = vpop.f32.mrb[0].mxu0
        %v4469 = vadd.f32 %v4306, %v4468
        %4470 = vmatprep.mubr.f32.mxu0 0.0
        %4471 = vmatmul.mubr.f32.gmra.mrb[0].mxu0 %v4222
        %v4472 = vpop.f32.mrb[0].mxu0
        %v4473 = vadd.f32 %v4302, %v4472
        %v4474 = vpop.f32.mrb[0].mxu0
        %v4475 = vadd.f32 %v4306, %v4474
        %4476 = vmatprep.mubr.f32.mxu0 0.0
        %4477 = vmatmul.mubr.f32.gmra.mrb[0].mxu0 %v4223
        %v4478 = vpop.f32.mrb[0].mxu0
        %v4479 = vadd.f32 %v4302, %v4478
        %v4480 = vpop.f32.mrb[0].mxu0
        %v4481 = vadd.f32 %v4306, %v4480
        %4482 = vmatprep.mubr.f32.mxu0 0.0
        %4483 = vmatmul.mubr.f32.gmra.mrb[0].mxu0 %v4224
        %v4484 = vpop.f32.mrb[0].mxu0
        %v4485 = vadd.f32 %v4302, %v4484
        %v4486 = vpop.f32.mrb[0].mxu0
        %v4487 = vadd.f32 %v4306, %v4486
        %4488 = vdwg.mxu0
        %v4489 = vxor.u32 %v4378, 2147483648
        %v4490 = vxor.u32 %v4380, 2147483648
        %v4491 = vxor.u32 %v4467, 2147483648
        %v4492 = vxor.u32 %v4469, 2147483648
        %v4493 = vxor.u32 %v4384, 2147483648
        %v4494 = vxor.u32 %v4386, 2147483648
        %v4495 = vxor.u32 %v4473, 2147483648
        %v4496 = vxor.u32 %v4475, 2147483648
        %v4497 = vxor.u32 %v4390, 2147483648
        %v4498 = vxor.u32 %v4392, 2147483648
        %v4499 = vxor.u32 %v4479, 2147483648
        %v4500 = vxor.u32 %v4481, 2147483648
        %v4501 = vxor.u32 %v4396, 2147483648
        %v4502 = vxor.u32 %v4398, 2147483648
        %v4503 = vxor.u32 %v4485, 2147483648
        %v4504 = vxor.u32 %v4487, 2147483648
        %v4505 = vmul.f32 %v4489, 1.442695
        %v4506 = vpow.pop %v4505
        %v4507 = vmul.f32 %v4490, 1.442695
        %v4508 = vpow.pop %v4507
        %v4509 = vmul.f32 %v4491, 1.442695
        %v4510 = vpow.pop %v4509
        %v4511 = vmul.f32 %v4492, 1.442695
        %v4512 = vpow.pop %v4511
        %v4513 = vmul.f32 %v4493, 1.442695
        %v4514 = vpow.pop %v4513
        %v4515 = vmul.f32 %v4494, 1.442695
        %v4516 = vpow.pop %v4515
        %v4517 = vmul.f32 %v4495, 1.442695
        %v4518 = vpow.pop %v4517
        %v4519 = vmul.f32 %v4496, 1.442695
        %v4520 = vpow.pop %v4519
        %v4521 = vmul.f32 %v4497, 1.442695
        %v4522 = vpow.pop %v4521
        %v4523 = vmul.f32 %v4498, 1.442695
        %v4524 = vpow.pop %v4523
        %v4525 = vmul.f32 %v4499, 1.442695
        %v4526 = vpow.pop %v4525
        %v4527 = vmul.f32 %v4500, 1.442695
        %v4528 = vpow.pop %v4527
        %v4529 = vmul.f32 %v4501, 1.442695
        %v4530 = vpow.pop %v4529
        %v4531 = vmul.f32 %v4502, 1.442695
        %v4532 = vpow.pop %v4531
        %v4533 = vmul.f32 %v4503, 1.442695
        %v4534 = vpow.pop %v4533
        %v4535 = vmul.f32 %v4504, 1.442695
        %v4536 = vpow.pop %v4535
        %v4537 = vadd.f32 %v4506, 1.0
        %v4538 = vadd.f32 %v4508, 1.0
        %v4539 = vadd.f32 %v4510, 1.0
        %v4540 = vadd.f32 %v4512, 1.0
        %v4541 = vadd.f32 %v4514, 1.0
        %v4542 = vadd.f32 %v4516, 1.0
        %v4543 = vadd.f32 %v4518, 1.0
        %v4544 = vadd.f32 %v4520, 1.0
        %v4545 = vadd.f32 %v4522, 1.0
        %v4546 = vadd.f32 %v4524, 1.0
        %v4547 = vadd.f32 %v4526, 1.0
        %v4548 = vadd.f32 %v4528, 1.0
        %v4549 = vadd.f32 %v4530, 1.0
        %v4550 = vadd.f32 %v4532, 1.0
        %v4551 = vadd.f32 %v4534, 1.0
        %v4552 = vadd.f32 %v4536, 1.0
        %v4553 = vrcp.pop %v4537
        %v4554 = vmul.f32 1.0, %v4553
        %v4555 = vrcp.pop %v4538
        %v4556 = vmul.f32 1.0, %v4555
        %v4557 = vrcp.pop %v4539
        %v4558 = vmul.f32 1.0, %v4557
        %v4559 = vrcp.pop %v4540
        %v4560 = vmul.f32 1.0, %v4559
        %v4561 = vrcp.pop %v4541
        %v4562 = vmul.f32 1.0, %v4561
        %v4563 = vrcp.pop %v4542
        %v4564 = vmul.f32 1.0, %v4563
        %v4565 = vrcp.pop %v4543
        %v4566 = vmul.f32 1.0, %v4565
        %v4567 = vrcp.pop %v4544
        %v4568 = vmul.f32 1.0, %v4567
        %v4569 = vrcp.pop %v4545
        %v4570 = vmul.f32 1.0, %v4569
        %v4571 = vrcp.pop %v4546
        %v4572 = vmul.f32 1.0, %v4571
        %v4573 = vrcp.pop %v4547
        %v4574 = vmul.f32 1.0, %v4573
        %v4575 = vrcp.pop %v4548
        %v4576 = vmul.f32 1.0, %v4575
        %v4577 = vrcp.pop %v4549
        %v4578 = vmul.f32 1.0, %v4577
        %v4579 = vrcp.pop %v4550
        %v4580 = vmul.f32 1.0, %v4579
        %v4581 = vrcp.pop %v4551
        %v4582 = vmul.f32 1.0, %v4581
        %v4583 = vrcp.pop %v4552
        %v4584 = vmul.f32 1.0, %v4583
        %v4585 = vmul.f32 %v596, %v4554
        %v4586 = vmul.f32 %v597, %v4556
        %v4587 = vmul.f32 %v598, %v4558
        %v4588 = vmul.f32 %v599, %v4560
        %v4589 = vmul.f32 %v600, %v4562
        %v4590 = vmul.f32 %v601, %v4564
        %v4591 = vmul.f32 %v602, %v4566
        %v4592 = vmul.f32 %v603, %v4568
        %v4593 = vmul.f32 %v604, %v4570
        %v4594 = vmul.f32 %v605, %v4572
        %v4595 = vmul.f32 %v606, %v4574
        %v4596 = vmul.f32 %v607, %v4576
        %v4597 = vmul.f32 %v608, %v4578
        %v4598 = vmul.f32 %v609, %v4580
        %v4599 = vmul.f32 %v610, %v4582
        %v4600 = vmul.f32 %v611, %v4584
        %4601 = vst [vmem:[%s595] sm:$0xff] %v4585
        %4602 = vst [vmem:[%s595 + $0x8] sm:$0xff] %v4586
        %4603 = vst [vmem:[%s595 + $0x10] sm:$0xff] %v4587
        %4604 = vst [vmem:[%s595 + $0x18] sm:$0xff] %v4588
        %4605 = vst [vmem:[%s595 + $0x20] sm:$0xff] %v4589
        %4606 = vst [vmem:[%s595 + $0x28] sm:$0xff] %v4590
        %4607 = vst [vmem:[%s595 + $0x30] sm:$0xff] %v4591
        %4608 = vst [vmem:[%s595 + $0x38] sm:$0xff] %v4592
        %4609 = vst [vmem:[%s595 + $0x40] sm:$0xff] %v4593
        %4610 = vst [vmem:[%s595 + $0x48] sm:$0xff] %v4594
        %4611 = vst [vmem:[%s595 + $0x50] sm:$0xff] %v4595
        %4612 = vst [vmem:[%s595 + $0x58] sm:$0xff] %v4596
        %4613 = vst [vmem:[%s595 + $0x60] sm:$0xff] %v4597
        %4614 = vst [vmem:[%s595 + $0x68] sm:$0xff] %v4598
        %4615 = vst [vmem:[%s595 + $0x70] sm:$0xff] %v4599
        %4616 = vst [vmem:[%s595 + $0x78] sm:$0xff] %v4600
        %s4617 = sand.u32 %s405, 1
        %s4618 = scalar_lea.sflag [#allocation4], %s4617
        %s4619 = sand.u32 %s405, 1
        %s4620 = smul.addr %s4619, 128
        %s4621 = scalar_lea.vmem [#allocation8], %s4620
        // Predicated region
        $region101: #{tpu_custom_call.1} parent=87 // pred_check
          %p4622 = pneg %p415
        $region102: #{tpu_custom_call.1} parent=87 // pred_check_branch
          %4624 = sbr.rel (%p4622) target = $region104
        $region103: #{tpu_custom_call.1} parent=87 // pred_region
          %s4626 = ssub.s32 2048, 2048
          %4627 = vsyncadd %s4618, %s4626
          %s4628 = smul.addr %s35, 16
          %s4629 = smul.addr %s4628, 128
          %s4630 = scalar_lea.hbm %s17, %s4629
          %s4631 = sshll.u32 %s4621, 4
          %s4632 = int_to_ptr.vmem [resolvable:$true] %s4631
          %4637 = dma.vmem_to_hbm [thread:$0]  %s4632, 2048, %s4630, %s4618, 512, 512, 32
        $region104: #{tpu_custom_call.1} parent=87 // pred_fallthru
          _
      $region88: #{tpu_custom_call.1} parent=5 // pred_fallthru
        _
      %p4638 = scmp.le.s32.totalorder 2, %s30
      // Predicated region
      $region105: #{tpu_custom_call.1} parent=5 // pred_check
        %p4639 = pneg %p4638
      $region106: #{tpu_custom_call.1} parent=5 // pred_check_branch
        %4641 = sbr.rel (%p4639) target = $region108
      $region107: #{tpu_custom_call.1} parent=5 // pred_region
        %s4642 = ssub.s32 %s30, 2
        // Predicated region
        $region109: #{tpu_custom_call.1} parent=107 // pred_check
          %p4643 = pneg %p421
        $region110: #{tpu_custom_call.1} parent=107 // pred_check_branch
          %4645 = sbr.rel (%p4643) target = $region112
        $region111: #{tpu_custom_call.1} parent=107 // pred_region
          %s4646 = sand.u32 %s406, 1
          %s4647 = scalar_lea.sflag [#allocation4], %s4646
          %s4648 = sand.u32 %s406, 1
          %s4649 = smul.addr %s4648, 128
          %s4650 = scalar_lea.vmem [#allocation8], %s4649
          %4651 = dma.done %s4647, 2048
        $region112: #{tpu_custom_call.1} parent=107 // pred_fallthru
          _
      $region108: #{tpu_custom_call.1} parent=5 // pred_fallthru
        _
    $region6: #{tpu_custom_call.1} parent=1 // loop_footer
      %s34 = sadd.s32 1, %s30
    $region7: #{tpu_custom_call.1} parent=1 // loop_footer_branch
      %29 = sbr.rel target = $region3
    $region8: #{tpu_custom_call.1} parent=1 // loop_exit
      _
    %4652 = vsyncpa [#allocation3], 1
    %s4653 = scalar_lea.sflag [#allocation3], 1
    %4654 = vsyncpa %s4653, 1
    %4655 = vsyncpa [#allocation6], 1
    %4656 = vsyncpa [#allocation4], 1
    %s4657 = scalar_lea.sflag [#allocation4], 1
    %4658 = vsyncpa %s4657, 1

</llo_original>
